<compile_context>
chip_gen: v5e
topology: v5e:2x2
jax: 0.10.0
libtpu: 0.0.40
codegen_flags: <defaults>
</compile_context>

<pallas_src>
import jax
import jax.numpy as jnp
from jax.experimental import pallas as pl
from jax.experimental.pallas import tpu as pltpu


X_DIM, H1, H2, Z_DIM = 784, 512, 256, 128
X_PAD = 896            # 7 * 128, lane-dense padding of the 784-wide dims
HEAD = 2 * Z_DIM       # fused mu | log_var head width (256)


def _vae_kernel(x_ref, eps_ref,
                w1_ref, b1_ref, w2_ref, b2_ref, w3_ref, b3_ref,
                w4_ref, b4_ref, w5_ref, b5_ref, w6_ref, b6_ref,
                dec_ref, mu_ref, logvar_ref):
    """One batch tile: encoder -> reparameterize -> decoder, all in VMEM."""
    bf16 = jnp.bfloat16

    # ---- Encoder ----
    h = jnp.dot(x_ref[...].astype(bf16), w1_ref[...],
                preferred_element_type=jnp.float32) + b1_ref[...]
    h = jnp.maximum(h, 0.0)                                   # relu(fc1)
    h = jnp.dot(h.astype(bf16), w2_ref[...],
                preferred_element_type=jnp.float32) + b2_ref[...]
    h = jnp.maximum(h, 0.0)                                   # relu(fc2)

    # fused fc31 | fc32 head: one N=256 MXU pass, then static 128-lane slices
    head = jnp.dot(h.astype(bf16), w3_ref[...],
                   preferred_element_type=jnp.float32) + b3_ref[...]
    mu = head[:, :Z_DIM]
    log_var = head[:, Z_DIM:]

    # ---- Reparameterization: z = eps * exp(0.5*log_var) + mu ----
    std = jnp.exp(0.5 * log_var)
    z = eps_ref[...] * std + mu

    # ---- Decoder ----
    d = jnp.dot(z.astype(bf16), w4_ref[...],
                preferred_element_type=jnp.float32) + b4_ref[...]
    d = jnp.maximum(d, 0.0)                                   # relu(fc4)
    d = jnp.dot(d.astype(bf16), w5_ref[...],
                preferred_element_type=jnp.float32) + b5_ref[...]
    d = jnp.maximum(d, 0.0)                                   # relu(fc5)
    d = jnp.dot(d.astype(bf16), w6_ref[...],
                preferred_element_type=jnp.float32) + b6_ref[...]
    d = jnp.tanh(d)                                           # tanh_(fc6)

    dec_ref[...] = d
    mu_ref[...] = mu
    logvar_ref[...] = log_var


def _linear_params(key, in_dim, out_dim):
    """Deterministic init mimicking nn.Linear default (uniform +/- 1/sqrt(in)).

    Weight is stored transposed as (in, out); bias as a (1, out) row.
    """
    kw, kb = jax.random.split(key)
    bound = 1.0 / (in_dim ** 0.5)
    w_t = jax.random.uniform(kw, (in_dim, out_dim), jnp.float32, -bound, bound)
    b = jax.random.uniform(kb, (1, out_dim), jnp.float32, -bound, bound)
    return w_t, b


def init_vae_params(seed=0):
    keys = jax.random.split(jax.random.PRNGKey(seed), 7)
    return {
        "fc1": _linear_params(keys[0], X_DIM, H1),
        "fc2": _linear_params(keys[1], H1, H2),
        "fc31": _linear_params(keys[2], H2, Z_DIM),
        "fc32": _linear_params(keys[3], H2, Z_DIM),
        "fc4": _linear_params(keys[4], Z_DIM, H2),
        "fc5": _linear_params(keys[5], H2, H1),
        "fc6": _linear_params(keys[6], H1, X_DIM),
    }


def pack_params(params):
    """Pad / fuse / downcast weights for the kernel. Biases stay f32."""
    bf16 = jnp.bfloat16
    w1, b1 = params["fc1"]                       # (784, 512)
    w1p = jnp.zeros((X_PAD, H1), jnp.float32).at[:X_DIM, :].set(w1)

    w2, b2 = params["fc2"]                       # (512, 256)

    w31, b31 = params["fc31"]                    # (256, 128)
    w32, b32 = params["fc32"]                    # (256, 128)
    w3 = jnp.concatenate([w31, w32], axis=1)     # (256, 256)
    b3 = jnp.concatenate([b31, b32], axis=1)     # (1, 256)

    w4, b4 = params["fc4"]                       # (128, 256)
    w5, b5 = params["fc5"]                       # (256, 512)

    w6, b6 = params["fc6"]                       # (512, 784)
    w6p = jnp.zeros((H1, X_PAD), jnp.float32).at[:, :X_DIM].set(w6)
    b6p = jnp.zeros((1, X_PAD), jnp.float32).at[:, :X_DIM].set(b6)

    return (w1p.astype(bf16), b1,
            w2.astype(bf16), b2,
            w3.astype(bf16), b3,
            w4.astype(bf16), b4,
            w5.astype(bf16), b5,
            w6p.astype(bf16), b6p)


def vae_forward(x_nchw, eps, packed):
    """x_nchw: (B, 1, 28, 28) f32; eps: (B, Z_DIM) f32 reparameterization noise."""
    B = x_nchw.shape[0]
    x_flat = x_nchw.reshape(B, X_DIM).astype(jnp.float32)     # == x.view(-1, 784)
    x_pad = jnp.pad(x_flat, ((0, 0), (0, X_PAD - X_DIM)))     # lane-dense K dim

    # Batch tile: 256 for large batches (amortizes weight residency, fills the
    # MXU), otherwise round B up to a sublane multiple of 8 (single tile).
    if B >= 256:
        tb = 256
    else:
        tb = max(8, ((B + 7) // 8) * 8)
    n_tiles = pl.cdiv(B, tb)
    b_pad = n_tiles * tb
    if b_pad != B:
        x_pad = jnp.pad(x_pad, ((0, b_pad - B), (0, 0)))
        eps_p = jnp.pad(eps, ((0, b_pad - B), (0, 0)))
    else:
        eps_p = eps

    batch_spec = lambda dim: pl.BlockSpec((tb, dim), lambda i: (i, 0))
    # Weights / biases: constant block index -> DMA'd once, VMEM resident.
    resident = lambda arr: pl.BlockSpec(arr.shape, lambda i: (0, 0))

    in_specs = [batch_spec(X_PAD), batch_spec(Z_DIM)] + [resident(p) for p in packed]
    out_specs = (batch_spec(X_PAD), batch_spec(Z_DIM), batch_spec(Z_DIM))
    out_shapes = (
        jax.ShapeDtypeStruct((b_pad, X_PAD), jnp.float32),    # decode (padded)
        jax.ShapeDtypeStruct((b_pad, Z_DIM), jnp.float32),    # mu
        jax.ShapeDtypeStruct((b_pad, Z_DIM), jnp.float32),    # log_var
    )

    dec, mu, log_var = pl.pallas_call(
        _vae_kernel,
        out_shape=out_shapes,
        grid_spec=pltpu.PrefetchScalarGridSpec(
            num_scalar_prefetch=0,
            grid=(n_tiles,),
            in_specs=in_specs,
            out_specs=out_specs,
        ),
        compiler_params=pltpu.CompilerParams(
            dimension_semantics=("parallel",),   # v7x megacore; no-op on v5e/v6e
            vmem_limit_bytes=32 << 20,
        ),
    )(x_pad, eps_p, *packed)

    return dec[:B, :X_DIM], mu[:B], log_var[:B]


def vae_forward_ref(x_nchw, eps, params):
    """Pure-JAX reference with the same bf16-operand / f32-accum matmul math."""
    def lin(a, w, b):
        return jnp.dot(a.astype(jnp.bfloat16), w.astype(jnp.bfloat16),
                       preferred_element_type=jnp.float32) + b

    B = x_nchw.shape[0]
    x = x_nchw.reshape(B, X_DIM).astype(jnp.float32)
    h = jax.nn.relu(lin(x, *params["fc1"]))
    h = jax.nn.relu(lin(h, *params["fc2"]))
    mu = lin(h, *params["fc31"])
    log_var = lin(h, *params["fc32"])
    z = eps * jnp.exp(0.5 * log_var) + mu
    d = jax.nn.relu(lin(z, *params["fc4"]))
    d = jax.nn.relu(lin(d, *params["fc5"]))
    d = jnp.tanh(lin(d, *params["fc6"]))
    return d, mu, log_var


if __name__ == "__main__":
    B = 8
    key = jax.random.PRNGKey(0)
    kx, keps = jax.random.split(key)

    x = jax.random.normal(kx, (B, 1, 28, 28), dtype=jnp.float32)
    # torch.randn_like(std) in Encoder.sampling() -> supplied as a deterministic input.
    eps = jax.random.normal(keps, (B, Z_DIM), dtype=jnp.float32)

    params = init_vae_params(seed=0)
    packed = pack_params(params)

    dec, mu, log_var = jax.block_until_ready(vae_forward(x, eps, packed))

    # sanity check against a pure-JAX reference using the same bf16 matmul math
    dec_r, mu_r, lv_r = vae_forward_ref(x, eps, params)
    assert dec.shape == (B, X_DIM) and mu.shape == (B, Z_DIM) and log_var.shape == (B, Z_DIM)
    assert jnp.allclose(dec, dec_r, atol=5e-3, rtol=5e-3)
    assert jnp.allclose(mu, mu_r, atol=5e-3, rtol=5e-3)
    assert jnp.allclose(log_var, lv_r, atol=5e-3, rtol=5e-3)

    print("KERNEL_OK")
</pallas_src>

<mosaic_0001>
module attributes {stable_mosaic.version = 11 : i64} {
  func.func @_vae_kernel(%arg0: i32, %arg1: memref<8x896xf32, #tpu.memory_space<vmem>>, %arg2: memref<8x128xf32, #tpu.memory_space<vmem>>, %arg3: memref<896x512xbf16, #tpu.memory_space<vmem>>, %arg4: memref<1x512xf32, #tpu.memory_space<vmem>>, %arg5: memref<512x256xbf16, #tpu.memory_space<vmem>>, %arg6: memref<1x256xf32, #tpu.memory_space<vmem>>, %arg7: memref<256x256xbf16, #tpu.memory_space<vmem>>, %arg8: memref<1x256xf32, #tpu.memory_space<vmem>>, %arg9: memref<128x256xbf16, #tpu.memory_space<vmem>>, %arg10: memref<1x256xf32, #tpu.memory_space<vmem>>, %arg11: memref<256x512xbf16, #tpu.memory_space<vmem>>, %arg12: memref<1x512xf32, #tpu.memory_space<vmem>>, %arg13: memref<512x896xbf16, #tpu.memory_space<vmem>>, %arg14: memref<1x896xf32, #tpu.memory_space<vmem>>, %arg15: memref<8x896xf32, #tpu.memory_space<vmem>>, %arg16: memref<8x128xf32, #tpu.memory_space<vmem>>, %arg17: memref<8x128xf32, #tpu.memory_space<vmem>>) attributes {dimension_semantics = [#tpu.dimension_semantics<parallel>], iteration_bounds = array<i64: 1>, scalar_prefetch = 0 : i64, scratch_operands = 0 : i64, tpu.core_type = #tpu.core_type<tc>, window_params = [{transform_indices = @transform_0, window_bounds = array<i64: 8, 896>}, {transform_indices = @transform_1, window_bounds = array<i64: 8, 128>}, {pipeline_mode = #tpu.pipeline_mode<synchronous>, transform_indices = @transform_2, window_bounds = array<i64: 896, 512>}, {pipeline_mode = #tpu.pipeline_mode<synchronous>, transform_indices = @transform_3, window_bounds = array<i64: 1, 512>}, {pipeline_mode = #tpu.pipeline_mode<synchronous>, transform_indices = @transform_4, window_bounds = array<i64: 512, 256>}, {pipeline_mode = #tpu.pipeline_mode<synchronous>, transform_indices = @transform_5, window_bounds = array<i64: 1, 256>}, {pipeline_mode = #tpu.pipeline_mode<synchronous>, transform_indices = @transform_6, window_bounds = array<i64: 256, 256>}, {pipeline_mode = #tpu.pipeline_mode<synchronous>, transform_indices = @transform_7, window_bounds = array<i64: 1, 256>}, {pipeline_mode = #tpu.pipeline_mode<synchronous>, transform_indices = @transform_8, window_bounds = array<i64: 128, 256>}, {pipeline_mode = #tpu.pipeline_mode<synchronous>, transform_indices = @transform_9, window_bounds = array<i64: 1, 256>}, {pipeline_mode = #tpu.pipeline_mode<synchronous>, transform_indices = @transform_10, window_bounds = array<i64: 256, 512>}, {pipeline_mode = #tpu.pipeline_mode<synchronous>, transform_indices = @transform_11, window_bounds = array<i64: 1, 512>}, {pipeline_mode = #tpu.pipeline_mode<synchronous>, transform_indices = @transform_12, window_bounds = array<i64: 512, 896>}, {pipeline_mode = #tpu.pipeline_mode<synchronous>, transform_indices = @transform_13, window_bounds = array<i64: 1, 896>}, {transform_indices = @transform_14, window_bounds = array<i64: 8, 896>}, {transform_indices = @transform_15, window_bounds = array<i64: 8, 128>}, {transform_indices = @transform_16, window_bounds = array<i64: 8, 128>}]} {
    %c0 = arith.constant 0 : index
    %c0_0 = arith.constant 0 : index
    %0 = vector.load %arg1[%c0, %c0_0] : memref<8x896xf32, #tpu.memory_space<vmem>>, vector<8x896xf32>
    %1 = arith.truncf %0 : vector<8x896xf32> to vector<8x896xbf16>
    %c0_1 = arith.constant 0 : index
    %c0_2 = arith.constant 0 : index
    %2 = vector.load %arg3[%c0_1, %c0_2] : memref<896x512xbf16, #tpu.memory_space<vmem>>, vector<896x512xbf16>
    %cst = arith.constant dense<0.000000e+00> : vector<8x512xf32>
    %3 = tpu.matmul %1, %2, %cst {dimension_numbers = #tpu.dot_dimension_numbers<[1], [0], [0], [1], [0, 0, 1, 1], [], []>} : vector<8x896xbf16>, vector<896x512xbf16>, vector<8x512xf32> -> vector<8x512xf32>
    %c0_3 = arith.constant 0 : index
    %c0_4 = arith.constant 0 : index
    %4 = vector.load %arg4[%c0_3, %c0_4] : memref<1x512xf32, #tpu.memory_space<vmem>>, vector<1x512xf32>
    %5 = vector.broadcast %4 : vector<1x512xf32> to vector<8x512xf32>
    %6 = arith.addf %3, %5 : vector<8x512xf32>
    %cst_5 = arith.constant 0.000000e+00 : f32
    %7 = vector.broadcast %cst_5 : f32 to vector<8x512xf32>
    %8 = arith.maximumf %6, %7 : vector<8x512xf32>
    %9 = arith.truncf %8 : vector<8x512xf32> to vector<8x512xbf16>
    %c0_6 = arith.constant 0 : index
    %c0_7 = arith.constant 0 : index
    %10 = vector.load %arg5[%c0_6, %c0_7] : memref<512x256xbf16, #tpu.memory_space<vmem>>, vector<512x256xbf16>
    %cst_8 = arith.constant dense<0.000000e+00> : vector<8x256xf32>
    %11 = tpu.matmul %9, %10, %cst_8 {dimension_numbers = #tpu.dot_dimension_numbers<[1], [0], [0], [1], [0, 0, 1, 1], [], []>} : vector<8x512xbf16>, vector<512x256xbf16>, vector<8x256xf32> -> vector<8x256xf32>
    %c0_9 = arith.constant 0 : index
    %c0_10 = arith.constant 0 : index
    %12 = vector.load %arg6[%c0_9, %c0_10] : memref<1x256xf32, #tpu.memory_space<vmem>>, vector<1x256xf32>
    %13 = vector.broadcast %12 : vector<1x256xf32> to vector<8x256xf32>
    %14 = arith.addf %11, %13 : vector<8x256xf32>
    %cst_11 = arith.constant 0.000000e+00 : f32
    %15 = vector.broadcast %cst_11 : f32 to vector<8x256xf32>
    %16 = arith.maximumf %14, %15 : vector<8x256xf32>
    %17 = arith.truncf %16 : vector<8x256xf32> to vector<8x256xbf16>
    %c0_12 = arith.constant 0 : index
    %c0_13 = arith.constant 0 : index
    %18 = vector.load %arg7[%c0_12, %c0_13] : memref<256x256xbf16, #tpu.memory_space<vmem>>, vector<256x256xbf16>
    %cst_14 = arith.constant dense<0.000000e+00> : vector<8x256xf32>
    %19 = tpu.matmul %17, %18, %cst_14 {dimension_numbers = #tpu.dot_dimension_numbers<[1], [0], [0], [1], [0, 0, 1, 1], [], []>} : vector<8x256xbf16>, vector<256x256xbf16>, vector<8x256xf32> -> vector<8x256xf32>
    %c0_15 = arith.constant 0 : index
    %c0_16 = arith.constant 0 : index
    %20 = vector.load %arg8[%c0_15, %c0_16] : memref<1x256xf32, #tpu.memory_space<vmem>>, vector<1x256xf32>
    %21 = vector.broadcast %20 : vector<1x256xf32> to vector<8x256xf32>
    %22 = arith.addf %19, %21 : vector<8x256xf32>
    %23 = vector.extract_strided_slice %22 {offsets = [0, 0], sizes = [8, 128], strides = [1, 1]} : vector<8x256xf32> to vector<8x128xf32>
    %24 = vector.extract_strided_slice %22 {offsets = [0, 128], sizes = [8, 128], strides = [1, 1]} : vector<8x256xf32> to vector<8x128xf32>
    %cst_17 = arith.constant 5.000000e-01 : f32
    %25 = vector.broadcast %cst_17 : f32 to vector<8x128xf32>
    %26 = arith.mulf %25, %24 : vector<8x128xf32>
    %27 = math.exp %26 : vector<8x128xf32>
    %c0_18 = arith.constant 0 : index
    %c0_19 = arith.constant 0 : index
    %28 = vector.load %arg2[%c0_18, %c0_19] : memref<8x128xf32, #tpu.memory_space<vmem>>, vector<8x128xf32>
    %29 = arith.mulf %28, %27 : vector<8x128xf32>
    %30 = arith.addf %29, %23 : vector<8x128xf32>
    %31 = arith.truncf %30 : vector<8x128xf32> to vector<8x128xbf16>
    %c0_20 = arith.constant 0 : index
    %c0_21 = arith.constant 0 : index
    %32 = vector.load %arg9[%c0_20, %c0_21] : memref<128x256xbf16, #tpu.memory_space<vmem>>, vector<128x256xbf16>
    %cst_22 = arith.constant dense<0.000000e+00> : vector<8x256xf32>
    %33 = tpu.matmul %31, %32, %cst_22 {dimension_numbers = #tpu.dot_dimension_numbers<[1], [0], [0], [1], [0, 0, 1, 1], [], []>} : vector<8x128xbf16>, vector<128x256xbf16>, vector<8x256xf32> -> vector<8x256xf32>
    %c0_23 = arith.constant 0 : index
    %c0_24 = arith.constant 0 : index
    %34 = vector.load %arg10[%c0_23, %c0_24] : memref<1x256xf32, #tpu.memory_space<vmem>>, vector<1x256xf32>
    %35 = vector.broadcast %34 : vector<1x256xf32> to vector<8x256xf32>
    %36 = arith.addf %33, %35 : vector<8x256xf32>
    %cst_25 = arith.constant 0.000000e+00 : f32
    %37 = vector.broadcast %cst_25 : f32 to vector<8x256xf32>
    %38 = arith.maximumf %36, %37 : vector<8x256xf32>
    %39 = arith.truncf %38 : vector<8x256xf32> to vector<8x256xbf16>
    %c0_26 = arith.constant 0 : index
    %c0_27 = arith.constant 0 : index
    %40 = vector.load %arg11[%c0_26, %c0_27] : memref<256x512xbf16, #tpu.memory_space<vmem>>, vector<256x512xbf16>
    %cst_28 = arith.constant dense<0.000000e+00> : vector<8x512xf32>
    %41 = tpu.matmul %39, %40, %cst_28 {dimension_numbers = #tpu.dot_dimension_numbers<[1], [0], [0], [1], [0, 0, 1, 1], [], []>} : vector<8x256xbf16>, vector<256x512xbf16>, vector<8x512xf32> -> vector<8x512xf32>
    %c0_29 = arith.constant 0 : index
    %c0_30 = arith.constant 0 : index
    %42 = vector.load %arg12[%c0_29, %c0_30] : memref<1x512xf32, #tpu.memory_space<vmem>>, vector<1x512xf32>
    %43 = vector.broadcast %42 : vector<1x512xf32> to vector<8x512xf32>
    %44 = arith.addf %41, %43 : vector<8x512xf32>
    %cst_31 = arith.constant 0.000000e+00 : f32
    %45 = vector.broadcast %cst_31 : f32 to vector<8x512xf32>
    %46 = arith.maximumf %44, %45 : vector<8x512xf32>
    %47 = arith.truncf %46 : vector<8x512xf32> to vector<8x512xbf16>
    %c0_32 = arith.constant 0 : index
    %c0_33 = arith.constant 0 : index
    %48 = vector.load %arg13[%c0_32, %c0_33] : memref<512x896xbf16, #tpu.memory_space<vmem>>, vector<512x896xbf16>
    %cst_34 = arith.constant dense<0.000000e+00> : vector<8x896xf32>
    %49 = tpu.matmul %47, %48, %cst_34 {dimension_numbers = #tpu.dot_dimension_numbers<[1], [0], [0], [1], [0, 0, 1, 1], [], []>} : vector<8x512xbf16>, vector<512x896xbf16>, vector<8x896xf32> -> vector<8x896xf32>
    %c0_35 = arith.constant 0 : index
    %c0_36 = arith.constant 0 : index
    %50 = vector.load %arg14[%c0_35, %c0_36] : memref<1x896xf32, #tpu.memory_space<vmem>>, vector<1x896xf32>
    %51 = vector.broadcast %50 : vector<1x896xf32> to vector<8x896xf32>
    %52 = arith.addf %49, %51 : vector<8x896xf32>
    %53 = math.tanh %52 : vector<8x896xf32>
    %c0_37 = arith.constant 0 : index
    %c0_38 = arith.constant 0 : index
    %54 = vector.load %arg15[%c0_37, %c0_38] : memref<8x896xf32, #tpu.memory_space<vmem>>, vector<8x896xf32>
    tpu.vector_store %arg15[%c0_37, %c0_38], %53 {strides = array<i32>} : memref<8x896xf32, #tpu.memory_space<vmem>>, vector<8x896xf32>,
    %c0_39 = arith.constant 0 : index
    %c0_40 = arith.constant 0 : index
    %55 = vector.load %arg16[%c0_39, %c0_40] : memref<8x128xf32, #tpu.memory_space<vmem>>, vector<8x128xf32>
    tpu.vector_store %arg16[%c0_39, %c0_40], %23 {strides = array<i32>} : memref<8x128xf32, #tpu.memory_space<vmem>>, vector<8x128xf32>,
    %c0_41 = arith.constant 0 : index
    %c0_42 = arith.constant 0 : index
    %56 = vector.load %arg17[%c0_41, %c0_42] : memref<8x128xf32, #tpu.memory_space<vmem>>, vector<8x128xf32>
    tpu.vector_store %arg17[%c0_41, %c0_42], %24 {strides = array<i32>} : memref<8x128xf32, #tpu.memory_space<vmem>>, vector<8x128xf32>,
    return
  }
  func.func @transform_0(%arg0: i32) -> (i32, i32) {
    %c0_i32 = arith.constant 0 : i32
    %c0_i32_0 = arith.constant 0 : i32
    return %arg0, %c0_i32 : i32, i32
  }
  func.func @transform_1(%arg0: i32) -> (i32, i32) {
    %c0_i32 = arith.constant 0 : i32
    %c0_i32_0 = arith.constant 0 : i32
    return %arg0, %c0_i32 : i32, i32
  }
  func.func @transform_2(%arg0: i32) -> (i32, i32) {
    %c0_i32 = arith.constant 0 : i32
    %c0_i32_0 = arith.constant 0 : i32
    %c0_i32_1 = arith.constant 0 : i32
    return %c0_i32, %c0_i32_0 : i32, i32
  }
  func.func @transform_3(%arg0: i32) -> (i32, i32) {
    %c0_i32 = arith.constant 0 : i32
    %c0_i32_0 = arith.constant 0 : i32
    %c0_i32_1 = arith.constant 0 : i32
    return %c0_i32, %c0_i32_0 : i32, i32
  }
  func.func @transform_4(%arg0: i32) -> (i32, i32) {
    %c0_i32 = arith.constant 0 : i32
    %c0_i32_0 = arith.constant 0 : i32
    %c0_i32_1 = arith.constant 0 : i32
    return %c0_i32, %c0_i32_0 : i32, i32
  }
  func.func @transform_5(%arg0: i32) -> (i32, i32) {
    %c0_i32 = arith.constant 0 : i32
    %c0_i32_0 = arith.constant 0 : i32
    %c0_i32_1 = arith.constant 0 : i32
    return %c0_i32, %c0_i32_0 : i32, i32
  }
  func.func @transform_6(%arg0: i32) -> (i32, i32) {
    %c0_i32 = arith.constant 0 : i32
    %c0_i32_0 = arith.constant 0 : i32
    %c0_i32_1 = arith.constant 0 : i32
    return %c0_i32, %c0_i32_0 : i32, i32
  }
  func.func @transform_7(%arg0: i32) -> (i32, i32) {
    %c0_i32 = arith.constant 0 : i32
    %c0_i32_0 = arith.constant 0 : i32
    %c0_i32_1 = arith.constant 0 : i32
    return %c0_i32, %c0_i32_0 : i32, i32
  }
  func.func @transform_8(%arg0: i32) -> (i32, i32) {
    %c0_i32 = arith.constant 0 : i32
    %c0_i32_0 = arith.constant 0 : i32
    %c0_i32_1 = arith.constant 0 : i32
    return %c0_i32, %c0_i32_0 : i32, i32
  }
  func.func @transform_9(%arg0: i32) -> (i32, i32) {
    %c0_i32 = arith.constant 0 : i32
    %c0_i32_0 = arith.constant 0 : i32
    %c0_i32_1 = arith.constant 0 : i32
    return %c0_i32, %c0_i32_0 : i32, i32
  }
  func.func @transform_10(%arg0: i32) -> (i32, i32) {
    %c0_i32 = arith.constant 0 : i32
    %c0_i32_0 = arith.constant 0 : i32
    %c0_i32_1 = arith.constant 0 : i32
    return %c0_i32, %c0_i32_0 : i32, i32
  }
  func.func @transform_11(%arg0: i32) -> (i32, i32) {
    %c0_i32 = arith.constant 0 : i32
    %c0_i32_0 = arith.constant 0 : i32
    %c0_i32_1 = arith.constant 0 : i32
    return %c0_i32, %c0_i32_0 : i32, i32
  }
  func.func @transform_12(%arg0: i32) -> (i32, i32) {
    %c0_i32 = arith.constant 0 : i32
    %c0_i32_0 = arith.constant 0 : i32
    %c0_i32_1 = arith.constant 0 : i32
    return %c0_i32, %c0_i32_0 : i32, i32
  }
  func.func @transform_13(%arg0: i32) -> (i32, i32) {
    %c0_i32 = arith.constant 0 : i32
    %c0_i32_0 = arith.constant 0 : i32
    %c0_i32_1 = arith.constant 0 : i32
    return %c0_i32, %c0_i32_0 : i32, i32
  }
  func.func @transform_14(%arg0: i32) -> (i32, i32) {
    %c0_i32 = arith.constant 0 : i32
    %c0_i32_0 = arith.constant 0 : i32
    return %arg0, %c0_i32 : i32, i32
  }
  func.func @transform_15(%arg0: i32) -> (i32, i32) {
    %c0_i32 = arith.constant 0 : i32
    %c0_i32_0 = arith.constant 0 : i32
    return %arg0, %c0_i32 : i32, i32
  }
  func.func @transform_16(%arg0: i32) -> (i32, i32) {
    %c0_i32 = arith.constant 0 : i32
    %c0_i32_0 = arith.constant 0 : i32
    return %arg0, %c0_i32 : i32, i32
  }
}

</mosaic_0001>

<llo_original>
// kernel: tpu_custom_call.1
$region0: #{tpu_custom_call.1}
  #allocation0 [shape = 'u32[]', space=smem, size = 0x4, offset = 0x4, fixed_abs, tag = 'smem constant byte address 0x4 - core index']
  #allocation1 [shape = 'u32[72,128]{1,0:T(1,128)}', space=vmem, size = 0x9000, scoped, tag = 'internal scratch']
  %s0 = inlined_call_operand.hbm [shape: f32[8,896], index: 0, kind: input, shape index: {}]
  %s1 = inlined_call_operand.hbm [shape: f32[8,128], index: 1, kind: input, shape index: {}]
  %s2 = inlined_call_operand.hbm [shape: bf16[896,512], index: 2, kind: input, shape index: {}]
  %s3 = inlined_call_operand.hbm [shape: f32[1,512], index: 3, kind: input, shape index: {}]
  %s4 = inlined_call_operand.hbm [shape: bf16[512,256], index: 4, kind: input, shape index: {}]
  %s5 = inlined_call_operand.hbm [shape: f32[1,256], index: 5, kind: input, shape index: {}]
  %s6 = inlined_call_operand.hbm [shape: bf16[256,256], index: 6, kind: input, shape index: {}]
  %s7 = inlined_call_operand.hbm [shape: f32[1,256], index: 7, kind: input, shape index: {}]
  %s8 = inlined_call_operand.hbm [shape: bf16[128,256], index: 8, kind: input, shape index: {}]
  %s9 = inlined_call_operand.hbm [shape: f32[1,256], index: 9, kind: input, shape index: {}]
  %s10 = inlined_call_operand.hbm [shape: bf16[256,512], index: 10, kind: input, shape index: {}]
  %s11 = inlined_call_operand.vmem [shape: f32[1,512], index: 11, kind: input, shape index: {}]
  %s12 = inlined_call_operand.hbm [shape: bf16[512,896], index: 12, kind: input, shape index: {}]
  %s13 = inlined_call_operand.vmem [shape: f32[1,896], index: 13, kind: input, shape index: {}]
  %s14 = inlined_call_operand.hbm [shape: f32[8,896], index: 14, kind: output, shape index: {0}]
  %s15 = inlined_call_operand.hbm [shape: f32[8,128], index: 15, kind: output, shape index: {1}]
  %s16 = inlined_call_operand.hbm [shape: f32[8,128], index: 16, kind: output, shape index: {2}]
  %17 = xla_tuple %s14, %s15, %s16
  %s18 = sld [smem:[#allocation0]]
  $region130: #{tpu_custom_call.1} parent=0
    _
  %s20 = ssub.s32 1, %s18
  %s21 = scalar_select 0, %s20, %s18
  $region1: #{tpu_custom_call.1} parent=0
    #allocation2 [shape = 'u8[28672]{0}', space=vmem, size = 0x7000, scoped, tag = 'input window, operand 0, single buffered']
    #allocation3 [shape = 's32[1]{0}', space=sflag, size = 0x4, scoped, tag = 'scoped memory for tpu_custom_call.1']
    #allocation4 [shape = 's32[1]{0}', space=sflag, size = 0x4, scoped, tag = 'scoped memory for tpu_custom_call.1']
    #allocation5 [shape = 'u8[4096]{0}', space=vmem, size = 0x1000, scoped, tag = 'input window, operand 1, single buffered']
    #allocation6 [shape = 's32[1]{0}', space=sflag, size = 0x4, scoped, tag = 'scoped memory for tpu_custom_call.1']
    #allocation7 [shape = 'u8[917504]{0}', space=vmem, size = 0xe0000, scoped, tag = 'input window, operand 2, single buffered']
    #allocation8 [shape = 'u8[2048]{0}', space=vmem, size = 0x800, scoped, tag = 'input window, operand 3, single buffered']
    #allocation9 [shape = 's32[1]{0}', space=sflag, size = 0x4, scoped, tag = 'scoped memory for tpu_custom_call.1']
    #allocation10 [shape = 'u8[262144]{0}', space=vmem, size = 0x40000, scoped, tag = 'input window, operand 4, single buffered']
    #allocation11 [shape = 'u8[1024]{0}', space=vmem, size = 0x400, scoped, tag = 'input window, operand 5, single buffered']
    #allocation12 [shape = 's32[1]{0}', space=sflag, size = 0x4, scoped, tag = 'scoped memory for tpu_custom_call.1']
    #allocation13 [shape = 'u8[131072]{0}', space=vmem, size = 0x20000, scoped, tag = 'input window, operand 6, single buffered']
    #allocation14 [shape = 'u8[1024]{0}', space=vmem, size = 0x400, scoped, tag = 'input window, operand 7, single buffered']
    #allocation15 [shape = 's32[1]{0}', space=sflag, size = 0x4, scoped, tag = 'scoped memory for tpu_custom_call.1']
    #allocation16 [shape = 'u8[65536]{0}', space=vmem, size = 0x10000, scoped, tag = 'input window, operand 8, single buffered']
    #allocation17 [shape = 'u8[1024]{0}', space=vmem, size = 0x400, scoped, tag = 'input window, operand 9, single buffered']
    #allocation18 [shape = 's32[1]{0}', space=sflag, size = 0x4, scoped, tag = 'scoped memory for tpu_custom_call.1']
    #allocation19 [shape = 'u8[262144]{0}', space=vmem, size = 0x40000, scoped, tag = 'input window, operand 10, single buffered']
    #allocation20 [shape = 'u8[917504]{0}', space=vmem, size = 0xe0000, scoped, tag = 'input window, operand 12, single buffered']
    #allocation21 [shape = 's32[1]{0}', space=sflag, size = 0x4, scoped, tag = 'scoped memory for tpu_custom_call.1']
    #allocation22 [shape = 'u8[28672]{0}', space=vmem, size = 0x7000, scoped, tag = 'output window, operand 0, single buffered']
    #allocation23 [shape = 'u8[4096]{0}', space=vmem, size = 0x1000, scoped, tag = 'output window, operand 1, single buffered']
    #allocation24 [shape = 's32[1]{0}', space=sflag, size = 0x4, scoped, tag = 'scoped memory for tpu_custom_call.1']
    #allocation25 [shape = 'u8[4096]{0}', space=vmem, size = 0x1000, scoped, tag = 'output window, operand 2, single buffered']
    %22 = vsyncpa [#allocation3], 0
    %23 = vsyncpa [#allocation6], 0
    %24 = vsyncpa [#allocation9], 0
    %25 = vsyncpa [#allocation12], 0
    %26 = vsyncpa [#allocation15], 0
    %27 = vsyncpa [#allocation18], 0
    %28 = vsyncpa [#allocation21], 0
    %29 = vsyncpa [#allocation4], 0
    %30 = vsyncpa [#allocation24], 0
    // Predicated region
    $region2: #{tpu_custom_call.1} parent=1 // pred_check
      _
    $region3: #{tpu_custom_call.1} parent=1 // pred_check_branch
      %32 = sbr.rel (0) target = $region5
    $region4: #{tpu_custom_call.1} parent=1 // pred_region
      %34 = vsyncadd [#allocation3], 0
      %s36 = sshll.u32 %s0, 4
      %s37 = int_to_ptr.hbm [resolvable:$true] %s36
      %s38 = sshll.u32 [#allocation2], 4
      %s39 = int_to_ptr.vmem [resolvable:$true] %s38
      %41 = dma.hbm_to_vmem [thread:$0]  %s37, 896, %s39, [#allocation3]
    $region5: #{tpu_custom_call.1} parent=1 // pred_fallthru
      _
    // Predicated region
    $region6: #{tpu_custom_call.1} parent=1 // pred_check
      _
    $region7: #{tpu_custom_call.1} parent=1 // pred_check_branch
      %43 = sbr.rel (0) target = $region9
    $region8: #{tpu_custom_call.1} parent=1 // pred_region
      %45 = vsyncadd [#allocation6], 0
      %s47 = sshll.u32 %s1, 4
      %s48 = int_to_ptr.hbm [resolvable:$true] %s47
      %s49 = sshll.u32 [#allocation5], 4
      %s50 = int_to_ptr.vmem [resolvable:$true] %s49
      %52 = dma.hbm_to_vmem [thread:$0]  %s48, 128, %s50, [#allocation6]
    $region9: #{tpu_custom_call.1} parent=1 // pred_fallthru
      _
    // Predicated region
    $region10: #{tpu_custom_call.1} parent=1 // pred_check
      _
    $region11: #{tpu_custom_call.1} parent=1 // pred_check_branch
      %54 = sbr.rel (0) target = $region13
    $region12: #{tpu_custom_call.1} parent=1 // pred_region
      %56 = vsyncadd [#allocation6], 0
      %s57 = sshll.u32 %s2, 4
      %s58 = int_to_ptr.hbm [resolvable:$true] %s57
      %s59 = sshll.u32 [#allocation7], 4
      %s60 = int_to_ptr.vmem [resolvable:$true] %s59
      %65 = dma.hbm_to_vmem [thread:$0]  %s58, 28672, %s60, [#allocation6], 256, 256, 16
    $region13: #{tpu_custom_call.1} parent=1 // pred_fallthru
      _
    // Predicated region
    $region14: #{tpu_custom_call.1} parent=1 // pred_check
      _
    $region15: #{tpu_custom_call.1} parent=1 // pred_check_branch
      %67 = sbr.rel (0) target = $region17
    $region16: #{tpu_custom_call.1} parent=1 // pred_region
      %69 = vsyncadd [#allocation9], 0
      %s71 = sshll.u32 %s3, 4
      %s72 = int_to_ptr.hbm [resolvable:$true] %s71
      %s73 = sshll.u32 [#allocation8], 4
      %s74 = int_to_ptr.vmem [resolvable:$true] %s73
      %76 = dma.hbm_to_vmem [thread:$0]  %s72, 64, %s74, [#allocation9]
    $region17: #{tpu_custom_call.1} parent=1 // pred_fallthru
      _
    // Predicated region
    $region18: #{tpu_custom_call.1} parent=1 // pred_check
      _
    $region19: #{tpu_custom_call.1} parent=1 // pred_check_branch
      %78 = sbr.rel (0) target = $region21
    $region20: #{tpu_custom_call.1} parent=1 // pred_region
      %80 = vsyncadd [#allocation9], 0
      %s81 = sshll.u32 %s4, 4
      %s82 = int_to_ptr.hbm [resolvable:$true] %s81
      %s83 = sshll.u32 [#allocation10], 4
      %s84 = int_to_ptr.vmem [resolvable:$true] %s83
      %89 = dma.hbm_to_vmem [thread:$0]  %s82, 8192, %s84, [#allocation9], 128, 128, 8
    $region21: #{tpu_custom_call.1} parent=1 // pred_fallthru
      _
    // Predicated region
    $region22: #{tpu_custom_call.1} parent=1 // pred_check
      _
    $region23: #{tpu_custom_call.1} parent=1 // pred_check_branch
      %91 = sbr.rel (0) target = $region25
    $region24: #{tpu_custom_call.1} parent=1 // pred_region
      %93 = vsyncadd [#allocation12], 0
      %s95 = sshll.u32 %s5, 4
      %s96 = int_to_ptr.hbm [resolvable:$true] %s95
      %s97 = sshll.u32 [#allocation11], 4
      %s98 = int_to_ptr.vmem [resolvable:$true] %s97
      %100 = dma.hbm_to_vmem [thread:$0]  %s96, 32, %s98, [#allocation12]
    $region25: #{tpu_custom_call.1} parent=1 // pred_fallthru
      _
    // Predicated region
    $region26: #{tpu_custom_call.1} parent=1 // pred_check
      _
    $region27: #{tpu_custom_call.1} parent=1 // pred_check_branch
      %102 = sbr.rel (0) target = $region29
    $region28: #{tpu_custom_call.1} parent=1 // pred_region
      %104 = vsyncadd [#allocation12], 0
      %s105 = sshll.u32 %s6, 4
      %s106 = int_to_ptr.hbm [resolvable:$true] %s105
      %s107 = sshll.u32 [#allocation13], 4
      %s108 = int_to_ptr.vmem [resolvable:$true] %s107
      %113 = dma.hbm_to_vmem [thread:$0]  %s106, 4096, %s108, [#allocation12], 128, 128, 8
    $region29: #{tpu_custom_call.1} parent=1 // pred_fallthru
      _
    // Predicated region
    $region30: #{tpu_custom_call.1} parent=1 // pred_check
      _
    $region31: #{tpu_custom_call.1} parent=1 // pred_check_branch
      %115 = sbr.rel (0) target = $region33
    $region32: #{tpu_custom_call.1} parent=1 // pred_region
      %117 = vsyncadd [#allocation15], 0
      %s119 = sshll.u32 %s7, 4
      %s120 = int_to_ptr.hbm [resolvable:$true] %s119
      %s121 = sshll.u32 [#allocation14], 4
      %s122 = int_to_ptr.vmem [resolvable:$true] %s121
      %124 = dma.hbm_to_vmem [thread:$0]  %s120, 32, %s122, [#allocation15]
    $region33: #{tpu_custom_call.1} parent=1 // pred_fallthru
      _
    // Predicated region
    $region34: #{tpu_custom_call.1} parent=1 // pred_check
      _
    $region35: #{tpu_custom_call.1} parent=1 // pred_check_branch
      %126 = sbr.rel (0) target = $region37
    $region36: #{tpu_custom_call.1} parent=1 // pred_region
      %128 = vsyncadd [#allocation15], 0
      %s129 = sshll.u32 %s8, 4
      %s130 = int_to_ptr.hbm [resolvable:$true] %s129
      %s131 = sshll.u32 [#allocation16], 4
      %s132 = int_to_ptr.vmem [resolvable:$true] %s131
      %137 = dma.hbm_to_vmem [thread:$0]  %s130, 2048, %s132, [#allocation15], 128, 128, 8
    $region37: #{tpu_custom_call.1} parent=1 // pred_fallthru
      _
    // Predicated region
    $region38: #{tpu_custom_call.1} parent=1 // pred_check
      _
    $region39: #{tpu_custom_call.1} parent=1 // pred_check_branch
      %139 = sbr.rel (0) target = $region41
    $region40: #{tpu_custom_call.1} parent=1 // pred_region
      %141 = vsyncadd [#allocation18], 0
      %s143 = sshll.u32 %s9, 4
      %s144 = int_to_ptr.hbm [resolvable:$true] %s143
      %s145 = sshll.u32 [#allocation17], 4
      %s146 = int_to_ptr.vmem [resolvable:$true] %s145
      %148 = dma.hbm_to_vmem [thread:$0]  %s144, 32, %s146, [#allocation18]
    $region41: #{tpu_custom_call.1} parent=1 // pred_fallthru
      _
    // Predicated region
    $region42: #{tpu_custom_call.1} parent=1 // pred_check
      _
    $region43: #{tpu_custom_call.1} parent=1 // pred_check_branch
      %150 = sbr.rel (0) target = $region45
    $region44: #{tpu_custom_call.1} parent=1 // pred_region
      %152 = vsyncadd [#allocation18], 0
      %s153 = sshll.u32 %s10, 4
      %s154 = int_to_ptr.hbm [resolvable:$true] %s153
      %s155 = sshll.u32 [#allocation19], 4
      %s156 = int_to_ptr.vmem [resolvable:$true] %s155
      %161 = dma.hbm_to_vmem [thread:$0]  %s154, 8192, %s156, [#allocation18], 256, 256, 16
    $region45: #{tpu_custom_call.1} parent=1 // pred_fallthru
      _
    // Predicated region
    $region46: #{tpu_custom_call.1} parent=1 // pred_check
      _
    $region47: #{tpu_custom_call.1} parent=1 // pred_check_branch
      %163 = sbr.rel (0) target = $region49
    $region48: #{tpu_custom_call.1} parent=1 // pred_region
      _
    $region49: #{tpu_custom_call.1} parent=1 // pred_fallthru
      _
    // Predicated region
    $region50: #{tpu_custom_call.1} parent=1 // pred_check
      _
    $region51: #{tpu_custom_call.1} parent=1 // pred_check_branch
      %165 = sbr.rel (0) target = $region53
    $region52: #{tpu_custom_call.1} parent=1 // pred_region
      %167 = vsyncadd [#allocation21], 0
      %s168 = sshll.u32 %s12, 4
      %s169 = int_to_ptr.hbm [resolvable:$true] %s168
      %s170 = sshll.u32 [#allocation20], 4
      %s171 = int_to_ptr.vmem [resolvable:$true] %s170
      %176 = dma.hbm_to_vmem [thread:$0]  %s169, 28672, %s171, [#allocation21], 448, 448, 28
    $region53: #{tpu_custom_call.1} parent=1 // pred_fallthru
      _
    // Predicated region
    $region54: #{tpu_custom_call.1} parent=1 // pred_check
      _
    $region55: #{tpu_custom_call.1} parent=1 // pred_check_branch
      %178 = sbr.rel (0) target = $region57
    $region56: #{tpu_custom_call.1} parent=1 // pred_region
      _
    $region57: #{tpu_custom_call.1} parent=1 // pred_fallthru
      _
    // Predicated region
    $region58: #{tpu_custom_call.1} parent=1 // pred_check
      _
    $region59: #{tpu_custom_call.1} parent=1 // pred_check_branch
      %180 = sbr.rel (0) target = $region61
    $region60: #{tpu_custom_call.1} parent=1 // pred_region
      %182 = dma.done [#allocation3], 896
    $region61: #{tpu_custom_call.1} parent=1 // pred_fallthru
      _
    // Predicated region
    $region62: #{tpu_custom_call.1} parent=1 // pred_check
      _
    $region63: #{tpu_custom_call.1} parent=1 // pred_check_branch
      %184 = sbr.rel (0) target = $region65
    $region64: #{tpu_custom_call.1} parent=1 // pred_region
      %186 = dma.done [#allocation6], 128
    $region65: #{tpu_custom_call.1} parent=1 // pred_fallthru
      _
    // Predicated region
    $region66: #{tpu_custom_call.1} parent=1 // pred_check
      _
    $region67: #{tpu_custom_call.1} parent=1 // pred_check_branch
      %188 = sbr.rel (0) target = $region69
    $region68: #{tpu_custom_call.1} parent=1 // pred_region
      %190 = dma.done [#allocation6], 28672
    $region69: #{tpu_custom_call.1} parent=1 // pred_fallthru
      _
    // Predicated region
    $region70: #{tpu_custom_call.1} parent=1 // pred_check
      _
    $region71: #{tpu_custom_call.1} parent=1 // pred_check_branch
      %192 = sbr.rel (0) target = $region73
    $region72: #{tpu_custom_call.1} parent=1 // pred_region
      %194 = dma.done [#allocation9], 64
    $region73: #{tpu_custom_call.1} parent=1 // pred_fallthru
      _
    // Predicated region
    $region74: #{tpu_custom_call.1} parent=1 // pred_check
      _
    $region75: #{tpu_custom_call.1} parent=1 // pred_check_branch
      %196 = sbr.rel (0) target = $region77
    $region76: #{tpu_custom_call.1} parent=1 // pred_region
      %198 = dma.done [#allocation9], 8192
    $region77: #{tpu_custom_call.1} parent=1 // pred_fallthru
      _
    // Predicated region
    $region78: #{tpu_custom_call.1} parent=1 // pred_check
      _
    $region79: #{tpu_custom_call.1} parent=1 // pred_check_branch
      %200 = sbr.rel (0) target = $region81
    $region80: #{tpu_custom_call.1} parent=1 // pred_region
      %202 = dma.done [#allocation12], 32
    $region81: #{tpu_custom_call.1} parent=1 // pred_fallthru
      _
    // Predicated region
    $region82: #{tpu_custom_call.1} parent=1 // pred_check
      _
    $region83: #{tpu_custom_call.1} parent=1 // pred_check_branch
      %204 = sbr.rel (0) target = $region85
    $region84: #{tpu_custom_call.1} parent=1 // pred_region
      %206 = dma.done [#allocation12], 4096
    $region85: #{tpu_custom_call.1} parent=1 // pred_fallthru
      _
    // Predicated region
    $region86: #{tpu_custom_call.1} parent=1 // pred_check
      _
    $region87: #{tpu_custom_call.1} parent=1 // pred_check_branch
      %208 = sbr.rel (0) target = $region89
    $region88: #{tpu_custom_call.1} parent=1 // pred_region
      %210 = dma.done [#allocation15], 32
    $region89: #{tpu_custom_call.1} parent=1 // pred_fallthru
      _
    // Predicated region
    $region90: #{tpu_custom_call.1} parent=1 // pred_check
      _
    $region91: #{tpu_custom_call.1} parent=1 // pred_check_branch
      %212 = sbr.rel (0) target = $region93
    $region92: #{tpu_custom_call.1} parent=1 // pred_region
      %214 = dma.done [#allocation15], 2048
    $region93: #{tpu_custom_call.1} parent=1 // pred_fallthru
      _
    // Predicated region
    $region94: #{tpu_custom_call.1} parent=1 // pred_check
      _
    $region95: #{tpu_custom_call.1} parent=1 // pred_check_branch
      %216 = sbr.rel (0) target = $region97
    $region96: #{tpu_custom_call.1} parent=1 // pred_region
      %218 = dma.done [#allocation18], 32
    $region97: #{tpu_custom_call.1} parent=1 // pred_fallthru
      _
    // Predicated region
    $region98: #{tpu_custom_call.1} parent=1 // pred_check
      _
    $region99: #{tpu_custom_call.1} parent=1 // pred_check_branch
      %220 = sbr.rel (0) target = $region101
    $region100: #{tpu_custom_call.1} parent=1 // pred_region
      %222 = dma.done [#allocation18], 8192
    $region101: #{tpu_custom_call.1} parent=1 // pred_fallthru
      _
    // Predicated region
    $region102: #{tpu_custom_call.1} parent=1 // pred_check
      _
    $region103: #{tpu_custom_call.1} parent=1 // pred_check_branch
      %224 = sbr.rel (0) target = $region105
    $region104: #{tpu_custom_call.1} parent=1 // pred_region
      %226 = dma.done [#allocation21], 28672
    $region105: #{tpu_custom_call.1} parent=1 // pred_fallthru
      _
    %v227 = vld [vmem:[#allocation2] sm:$0xff]
    %v228 = vld [vmem:[#allocation2 + $0x8] sm:$0xff]
    %v229 = vld [vmem:[#allocation2 + $0x10] sm:$0xff]
    %v230 = vld [vmem:[#allocation2 + $0x18] sm:$0xff]
    %v231 = vld [vmem:[#allocation2 + $0x20] sm:$0xff]
    %v232 = vld [vmem:[#allocation2 + $0x28] sm:$0xff]
    %v233 = vld [vmem:[#allocation2 + $0x30] sm:$0xff]
    %v234 = vpack.c.bf16 %v227, %v227
    %v235 = vpack.c.bf16 %v228, %v228
    %v236 = vpack.c.bf16 %v229, %v229
    %v237 = vpack.c.bf16 %v230, %v230
    %v238 = vpack.c.bf16 %v231, %v231
    %v239 = vpack.c.bf16 %v232, %v232
    %v240 = vpack.c.bf16 %v233, %v233
    %v241 = vld [vmem:[#allocation7] sm:$0xff]
    %v242 = vld [vmem:[#allocation7 + $0x8] sm:$0xff]
    %v243 = vld [vmem:[#allocation7 + $0x10] sm:$0xff]
    %v244 = vld [vmem:[#allocation7 + $0x18] sm:$0xff]
    %v245 = vld [vmem:[#allocation7 + $0x20] sm:$0xff]
    %v246 = vld [vmem:[#allocation7 + $0x28] sm:$0xff]
    %v247 = vld [vmem:[#allocation7 + $0x30] sm:$0xff]
    %v248 = vld [vmem:[#allocation7 + $0x38] sm:$0xff]
    %v249 = vld [vmem:[#allocation7 + $0x40] sm:$0xff]
    %v250 = vld [vmem:[#allocation7 + $0x48] sm:$0xff]
    %v251 = vld [vmem:[#allocation7 + $0x50] sm:$0xff]
    %v252 = vld [vmem:[#allocation7 + $0x58] sm:$0xff]
    %v253 = vld [vmem:[#allocation7 + $0x60] sm:$0xff]
    %v254 = vld [vmem:[#allocation7 + $0x68] sm:$0xff]
    %v255 = vld [vmem:[#allocation7 + $0x70] sm:$0xff]
    %v256 = vld [vmem:[#allocation7 + $0x78] sm:$0xff]
    %v257 = vld [vmem:[#allocation7 + $0x80] sm:$0xff]
    %v258 = vld [vmem:[#allocation7 + $0x88] sm:$0xff]
    %v259 = vld [vmem:[#allocation7 + $0x90] sm:$0xff]
    %v260 = vld [vmem:[#allocation7 + $0x98] sm:$0xff]
    %v261 = vld [vmem:[#allocation7 + $0xa0] sm:$0xff]
    %v262 = vld [vmem:[#allocation7 + $0xa8] sm:$0xff]
    %v263 = vld [vmem:[#allocation7 + $0xb0] sm:$0xff]
    %v264 = vld [vmem:[#allocation7 + $0xb8] sm:$0xff]
    %v265 = vld [vmem:[#allocation7 + $0xc0] sm:$0xff]
    %v266 = vld [vmem:[#allocation7 + $0xc8] sm:$0xff]
    %v267 = vld [vmem:[#allocation7 + $0xd0] sm:$0xff]
    %v268 = vld [vmem:[#allocation7 + $0xd8] sm:$0xff]
    %v269 = vld [vmem:[#allocation7 + $0xe0] sm:$0xff]
    %v270 = vld [vmem:[#allocation7 + $0xe8] sm:$0xff]
    %v271 = vld [vmem:[#allocation7 + $0xf0] sm:$0xff]
    %v272 = vld [vmem:[#allocation7 + $0xf8] sm:$0xff]
    %v273 = vld [vmem:[#allocation7 + $0x100] sm:$0xff]
    %v274 = vld [vmem:[#allocation7 + $0x108] sm:$0xff]
    %v275 = vld [vmem:[#allocation7 + $0x110] sm:$0xff]
    %v276 = vld [vmem:[#allocation7 + $0x118] sm:$0xff]
    %v277 = vld [vmem:[#allocation7 + $0x120] sm:$0xff]
    %v278 = vld [vmem:[#allocation7 + $0x128] sm:$0xff]
    %v279 = vld [vmem:[#allocation7 + $0x130] sm:$0xff]
    %v280 = vld [vmem:[#allocation7 + $0x138] sm:$0xff]
    %v281 = vld [vmem:[#allocation7 + $0x140] sm:$0xff]
    %v282 = vld [vmem:[#allocation7 + $0x148] sm:$0xff]
    %v283 = vld [vmem:[#allocation7 + $0x150] sm:$0xff]
    %v284 = vld [vmem:[#allocation7 + $0x158] sm:$0xff]
    %v285 = vld [vmem:[#allocation7 + $0x160] sm:$0xff]
    %v286 = vld [vmem:[#allocation7 + $0x168] sm:$0xff]
    %v287 = vld [vmem:[#allocation7 + $0x170] sm:$0xff]
    %v288 = vld [vmem:[#allocation7 + $0x178] sm:$0xff]
    %v289 = vld [vmem:[#allocation7 + $0x180] sm:$0xff]
    %v290 = vld [vmem:[#allocation7 + $0x188] sm:$0xff]
    %v291 = vld [vmem:[#allocation7 + $0x190] sm:$0xff]
    %v292 = vld [vmem:[#allocation7 + $0x198] sm:$0xff]
    %v293 = vld [vmem:[#allocation7 + $0x1a0] sm:$0xff]
    %v294 = vld [vmem:[#allocation7 + $0x1a8] sm:$0xff]
    %v295 = vld [vmem:[#allocation7 + $0x1b0] sm:$0xff]
    %v296 = vld [vmem:[#allocation7 + $0x1b8] sm:$0xff]
    %v297 = vld [vmem:[#allocation7 + $0x1c0] sm:$0xff]
    %v298 = vld [vmem:[#allocation7 + $0x1c8] sm:$0xff]
    %v299 = vld [vmem:[#allocation7 + $0x1d0] sm:$0xff]
    %v300 = vld [vmem:[#allocation7 + $0x1d8] sm:$0xff]
    %v301 = vld [vmem:[#allocation7 + $0x1e0] sm:$0xff]
    %v302 = vld [vmem:[#allocation7 + $0x1e8] sm:$0xff]
    %v303 = vld [vmem:[#allocation7 + $0x1f0] sm:$0xff]
    %v304 = vld [vmem:[#allocation7 + $0x1f8] sm:$0xff]
    %v305 = vld [vmem:[#allocation7 + $0x200] sm:$0xff]
    %v306 = vld [vmem:[#allocation7 + $0x208] sm:$0xff]
    %v307 = vld [vmem:[#allocation7 + $0x210] sm:$0xff]
    %v308 = vld [vmem:[#allocation7 + $0x218] sm:$0xff]
    %v309 = vld [vmem:[#allocation7 + $0x220] sm:$0xff]
    %v310 = vld [vmem:[#allocation7 + $0x228] sm:$0xff]
    %v311 = vld [vmem:[#allocation7 + $0x230] sm:$0xff]
    %v312 = vld [vmem:[#allocation7 + $0x238] sm:$0xff]
    %v313 = vld [vmem:[#allocation7 + $0x240] sm:$0xff]
    %v314 = vld [vmem:[#allocation7 + $0x248] sm:$0xff]
    %v315 = vld [vmem:[#allocation7 + $0x250] sm:$0xff]
    %v316 = vld [vmem:[#allocation7 + $0x258] sm:$0xff]
    %v317 = vld [vmem:[#allocation7 + $0x260] sm:$0xff]
    %v318 = vld [vmem:[#allocation7 + $0x268] sm:$0xff]
    %v319 = vld [vmem:[#allocation7 + $0x270] sm:$0xff]
    %v320 = vld [vmem:[#allocation7 + $0x278] sm:$0xff]
    %v321 = vld [vmem:[#allocation7 + $0x280] sm:$0xff]
    %v322 = vld [vmem:[#allocation7 + $0x288] sm:$0xff]
    %v323 = vld [vmem:[#allocation7 + $0x290] sm:$0xff]
    %v324 = vld [vmem:[#allocation7 + $0x298] sm:$0xff]
    %v325 = vld [vmem:[#allocation7 + $0x2a0] sm:$0xff]
    %v326 = vld [vmem:[#allocation7 + $0x2a8] sm:$0xff]
    %v327 = vld [vmem:[#allocation7 + $0x2b0] sm:$0xff]
    %v328 = vld [vmem:[#allocation7 + $0x2b8] sm:$0xff]
    %v329 = vld [vmem:[#allocation7 + $0x2c0] sm:$0xff]
    %v330 = vld [vmem:[#allocation7 + $0x2c8] sm:$0xff]
    %v331 = vld [vmem:[#allocation7 + $0x2d0] sm:$0xff]
    %v332 = vld [vmem:[#allocation7 + $0x2d8] sm:$0xff]
    %v333 = vld [vmem:[#allocation7 + $0x2e0] sm:$0xff]
    %v334 = vld [vmem:[#allocation7 + $0x2e8] sm:$0xff]
    %v335 = vld [vmem:[#allocation7 + $0x2f0] sm:$0xff]
    %v336 = vld [vmem:[#allocation7 + $0x2f8] sm:$0xff]
    %v337 = vld [vmem:[#allocation7 + $0x300] sm:$0xff]
    %v338 = vld [vmem:[#allocation7 + $0x308] sm:$0xff]
    %v339 = vld [vmem:[#allocation7 + $0x310] sm:$0xff]
    %v340 = vld [vmem:[#allocation7 + $0x318] sm:$0xff]
    %v341 = vld [vmem:[#allocation7 + $0x320] sm:$0xff]
    %v342 = vld [vmem:[#allocation7 + $0x328] sm:$0xff]
    %v343 = vld [vmem:[#allocation7 + $0x330] sm:$0xff]
    %v344 = vld [vmem:[#allocation7 + $0x338] sm:$0xff]
    %v345 = vld [vmem:[#allocation7 + $0x340] sm:$0xff]
    %v346 = vld [vmem:[#allocation7 + $0x348] sm:$0xff]
    %v347 = vld [vmem:[#allocation7 + $0x350] sm:$0xff]
    %v348 = vld [vmem:[#allocation7 + $0x358] sm:$0xff]
    %v349 = vld [vmem:[#allocation7 + $0x360] sm:$0xff]
    %v350 = vld [vmem:[#allocation7 + $0x368] sm:$0xff]
    %v351 = vld [vmem:[#allocation7 + $0x370] sm:$0xff]
    %v352 = vld [vmem:[#allocation7 + $0x378] sm:$0xff]
    %v353 = vld [vmem:[#allocation7 + $0x380] sm:$0xff]
    %v354 = vld [vmem:[#allocation7 + $0x388] sm:$0xff]
    %v355 = vld [vmem:[#allocation7 + $0x390] sm:$0xff]
    %v356 = vld [vmem:[#allocation7 + $0x398] sm:$0xff]
    %v357 = vld [vmem:[#allocation7 + $0x3a0] sm:$0xff]
    %v358 = vld [vmem:[#allocation7 + $0x3a8] sm:$0xff]
    %v359 = vld [vmem:[#allocation7 + $0x3b0] sm:$0xff]
    %v360 = vld [vmem:[#allocation7 + $0x3b8] sm:$0xff]
    %v361 = vld [vmem:[#allocation7 + $0x3c0] sm:$0xff]
    %v362 = vld [vmem:[#allocation7 + $0x3c8] sm:$0xff]
    %v363 = vld [vmem:[#allocation7 + $0x3d0] sm:$0xff]
    %v364 = vld [vmem:[#allocation7 + $0x3d8] sm:$0xff]
    %v365 = vld [vmem:[#allocation7 + $0x3e0] sm:$0xff]
    %v366 = vld [vmem:[#allocation7 + $0x3e8] sm:$0xff]
    %v367 = vld [vmem:[#allocation7 + $0x3f0] sm:$0xff]
    %v368 = vld [vmem:[#allocation7 + $0x3f8] sm:$0xff]
    %v369 = vld [vmem:[#allocation7 + $0x400] sm:$0xff]
    %v370 = vld [vmem:[#allocation7 + $0x408] sm:$0xff]
    %v371 = vld [vmem:[#allocation7 + $0x410] sm:$0xff]
    %v372 = vld [vmem:[#allocation7 + $0x418] sm:$0xff]
    %v373 = vld [vmem:[#allocation7 + $0x420] sm:$0xff]
    %v374 = vld [vmem:[#allocation7 + $0x428] sm:$0xff]
    %v375 = vld [vmem:[#allocation7 + $0x430] sm:$0xff]
    %v376 = vld [vmem:[#allocation7 + $0x438] sm:$0xff]
    %v377 = vld [vmem:[#allocation7 + $0x440] sm:$0xff]
    %v378 = vld [vmem:[#allocation7 + $0x448] sm:$0xff]
    %v379 = vld [vmem:[#allocation7 + $0x450] sm:$0xff]
    %v380 = vld [vmem:[#allocation7 + $0x458] sm:$0xff]
    %v381 = vld [vmem:[#allocation7 + $0x460] sm:$0xff]
    %v382 = vld [vmem:[#allocation7 + $0x468] sm:$0xff]
    %v383 = vld [vmem:[#allocation7 + $0x470] sm:$0xff]
    %v384 = vld [vmem:[#allocation7 + $0x478] sm:$0xff]
    %v385 = vld [vmem:[#allocation7 + $0x480] sm:$0xff]
    %v386 = vld [vmem:[#allocation7 + $0x488] sm:$0xff]
    %v387 = vld [vmem:[#allocation7 + $0x490] sm:$0xff]
    %v388 = vld [vmem:[#allocation7 + $0x498] sm:$0xff]
    %v389 = vld [vmem:[#allocation7 + $0x4a0] sm:$0xff]
    %v390 = vld [vmem:[#allocation7 + $0x4a8] sm:$0xff]
    %v391 = vld [vmem:[#allocation7 + $0x4b0] sm:$0xff]
    %v392 = vld [vmem:[#allocation7 + $0x4b8] sm:$0xff]
    %v393 = vld [vmem:[#allocation7 + $0x4c0] sm:$0xff]
    %v394 = vld [vmem:[#allocation7 + $0x4c8] sm:$0xff]
    %v395 = vld [vmem:[#allocation7 + $0x4d0] sm:$0xff]
    %v396 = vld [vmem:[#allocation7 + $0x4d8] sm:$0xff]
    %v397 = vld [vmem:[#allocation7 + $0x4e0] sm:$0xff]
    %v398 = vld [vmem:[#allocation7 + $0x4e8] sm:$0xff]
    %v399 = vld [vmem:[#allocation7 + $0x4f0] sm:$0xff]
    %v400 = vld [vmem:[#allocation7 + $0x4f8] sm:$0xff]
    %v401 = vld [vmem:[#allocation7 + $0x500] sm:$0xff]
    %v402 = vld [vmem:[#allocation7 + $0x508] sm:$0xff]
    %v403 = vld [vmem:[#allocation7 + $0x510] sm:$0xff]
    %v404 = vld [vmem:[#allocation7 + $0x518] sm:$0xff]
    %v405 = vld [vmem:[#allocation7 + $0x520] sm:$0xff]
    %v406 = vld [vmem:[#allocation7 + $0x528] sm:$0xff]
    %v407 = vld [vmem:[#allocation7 + $0x530] sm:$0xff]
    %v408 = vld [vmem:[#allocation7 + $0x538] sm:$0xff]
    %v409 = vld [vmem:[#allocation7 + $0x540] sm:$0xff]
    %v410 = vld [vmem:[#allocation7 + $0x548] sm:$0xff]
    %v411 = vld [vmem:[#allocation7 + $0x550] sm:$0xff]
    %v412 = vld [vmem:[#allocation7 + $0x558] sm:$0xff]
    %v413 = vld [vmem:[#allocation7 + $0x560] sm:$0xff]
    %v414 = vld [vmem:[#allocation7 + $0x568] sm:$0xff]
    %v415 = vld [vmem:[#allocation7 + $0x570] sm:$0xff]
    %v416 = vld [vmem:[#allocation7 + $0x578] sm:$0xff]
    %v417 = vld [vmem:[#allocation7 + $0x580] sm:$0xff]
    %v418 = vld [vmem:[#allocation7 + $0x588] sm:$0xff]
    %v419 = vld [vmem:[#allocation7 + $0x590] sm:$0xff]
    %v420 = vld [vmem:[#allocation7 + $0x598] sm:$0xff]
    %v421 = vld [vmem:[#allocation7 + $0x5a0] sm:$0xff]
    %v422 = vld [vmem:[#allocation7 + $0x5a8] sm:$0xff]
    %v423 = vld [vmem:[#allocation7 + $0x5b0] sm:$0xff]
    %v424 = vld [vmem:[#allocation7 + $0x5b8] sm:$0xff]
    %v425 = vld [vmem:[#allocation7 + $0x5c0] sm:$0xff]
    %v426 = vld [vmem:[#allocation7 + $0x5c8] sm:$0xff]
    %v427 = vld [vmem:[#allocation7 + $0x5d0] sm:$0xff]
    %v428 = vld [vmem:[#allocation7 + $0x5d8] sm:$0xff]
    %v429 = vld [vmem:[#allocation7 + $0x5e0] sm:$0xff]
    %v430 = vld [vmem:[#allocation7 + $0x5e8] sm:$0xff]
    %v431 = vld [vmem:[#allocation7 + $0x5f0] sm:$0xff]
    %v432 = vld [vmem:[#allocation7 + $0x5f8] sm:$0xff]
    %v433 = vld [vmem:[#allocation7 + $0x600] sm:$0xff]
    %v434 = vld [vmem:[#allocation7 + $0x608] sm:$0xff]
    %v435 = vld [vmem:[#allocation7 + $0x610] sm:$0xff]
    %v436 = vld [vmem:[#allocation7 + $0x618] sm:$0xff]
    %v437 = vld [vmem:[#allocation7 + $0x620] sm:$0xff]
    %v438 = vld [vmem:[#allocation7 + $0x628] sm:$0xff]
    %v439 = vld [vmem:[#allocation7 + $0x630] sm:$0xff]
    %v440 = vld [vmem:[#allocation7 + $0x638] sm:$0xff]
    %v441 = vld [vmem:[#allocation7 + $0x640] sm:$0xff]
    %v442 = vld [vmem:[#allocation7 + $0x648] sm:$0xff]
    %v443 = vld [vmem:[#allocation7 + $0x650] sm:$0xff]
    %v444 = vld [vmem:[#allocation7 + $0x658] sm:$0xff]
    %v445 = vld [vmem:[#allocation7 + $0x660] sm:$0xff]
    %v446 = vld [vmem:[#allocation7 + $0x668] sm:$0xff]
    %v447 = vld [vmem:[#allocation7 + $0x670] sm:$0xff]
    %v448 = vld [vmem:[#allocation7 + $0x678] sm:$0xff]
    %v449 = vld [vmem:[#allocation7 + $0x680] sm:$0xff]
    %v450 = vld [vmem:[#allocation7 + $0x688] sm:$0xff]
    %v451 = vld [vmem:[#allocation7 + $0x690] sm:$0xff]
    %v452 = vld [vmem:[#allocation7 + $0x698] sm:$0xff]
    %v453 = vld [vmem:[#allocation7 + $0x6a0] sm:$0xff]
    %v454 = vld [vmem:[#allocation7 + $0x6a8] sm:$0xff]
    %v455 = vld [vmem:[#allocation7 + $0x6b0] sm:$0xff]
    %v456 = vld [vmem:[#allocation7 + $0x6b8] sm:$0xff]
    %v457 = vld [vmem:[#allocation7 + $0x6c0] sm:$0xff]
    %v458 = vld [vmem:[#allocation7 + $0x6c8] sm:$0xff]
    %v459 = vld [vmem:[#allocation7 + $0x6d0] sm:$0xff]
    %v460 = vld [vmem:[#allocation7 + $0x6d8] sm:$0xff]
    %v461 = vld [vmem:[#allocation7 + $0x6e0] sm:$0xff]
    %v462 = vld [vmem:[#allocation7 + $0x6e8] sm:$0xff]
    %v463 = vld [vmem:[#allocation7 + $0x6f0] sm:$0xff]
    %v464 = vld [vmem:[#allocation7 + $0x6f8] sm:$0xff]
    %v465 = vld [vmem:[#allocation8] sm:$0xf]
    %v467 = vperm.slane %v465, 0
    %v468 = vperm.slane %v465, 1
    %v469 = vperm.slane %v465, 2
    %v470 = vperm.slane %v465, 3
    %v699 = vunpack.c.l.b16 %v241
    %v700 = vunpack.c.h.b16 %v241
    %v701 = vunpack.c.l.b16 %v242
    %v702 = vunpack.c.h.b16 %v242
    %v703 = vunpack.c.l.b16 %v243
    %v704 = vunpack.c.h.b16 %v243
    %v705 = vunpack.c.l.b16 %v244
    %v706 = vunpack.c.h.b16 %v244
    %v707 = vunpack.c.l.b16 %v245
    %v708 = vunpack.c.h.b16 %v245
    %v709 = vunpack.c.l.b16 %v246
    %v710 = vunpack.c.h.b16 %v246
    %v711 = vunpack.c.l.b16 %v247
    %v712 = vunpack.c.h.b16 %v247
    %v713 = vunpack.c.l.b16 %v248
    %v714 = vunpack.c.h.b16 %v248
    %v715 = vunpack.c.l.b16 %v249
    %v716 = vunpack.c.h.b16 %v249
    %v717 = vunpack.c.l.b16 %v250
    %v718 = vunpack.c.h.b16 %v250
    %v719 = vunpack.c.l.b16 %v251
    %v720 = vunpack.c.h.b16 %v251
    %v721 = vunpack.c.l.b16 %v252
    %v722 = vunpack.c.h.b16 %v252
    %v723 = vunpack.c.l.b16 %v253
    %v724 = vunpack.c.h.b16 %v253
    %v725 = vunpack.c.l.b16 %v254
    %v726 = vunpack.c.h.b16 %v254
    %v727 = vunpack.c.l.b16 %v255
    %v728 = vunpack.c.h.b16 %v255
    %v729 = vunpack.c.l.b16 %v256
    %v730 = vunpack.c.h.b16 %v256
    %v731 = vunpack.c.l.b16 %v257
    %v732 = vunpack.c.h.b16 %v257
    %v733 = vunpack.c.l.b16 %v258
    %v734 = vunpack.c.h.b16 %v258
    %v735 = vunpack.c.l.b16 %v259
    %v736 = vunpack.c.h.b16 %v259
    %v737 = vunpack.c.l.b16 %v260
    %v738 = vunpack.c.h.b16 %v260
    %v739 = vunpack.c.l.b16 %v261
    %v740 = vunpack.c.h.b16 %v261
    %v741 = vunpack.c.l.b16 %v262
    %v742 = vunpack.c.h.b16 %v262
    %v743 = vunpack.c.l.b16 %v263
    %v744 = vunpack.c.h.b16 %v263
    %v745 = vunpack.c.l.b16 %v264
    %v746 = vunpack.c.h.b16 %v264
    %v747 = vunpack.c.l.b16 %v265
    %v748 = vunpack.c.h.b16 %v265
    %v749 = vunpack.c.l.b16 %v266
    %v750 = vunpack.c.h.b16 %v266
    %v751 = vunpack.c.l.b16 %v267
    %v752 = vunpack.c.h.b16 %v267
    %v753 = vunpack.c.l.b16 %v268
    %v754 = vunpack.c.h.b16 %v268
    %v755 = vunpack.c.l.b16 %v269
    %v756 = vunpack.c.h.b16 %v269
    %v757 = vunpack.c.l.b16 %v270
    %v758 = vunpack.c.h.b16 %v270
    %v759 = vunpack.c.l.b16 %v271
    %v760 = vunpack.c.h.b16 %v271
    %v761 = vunpack.c.l.b16 %v272
    %v762 = vunpack.c.h.b16 %v272
    %v763 = vunpack.c.l.b16 %v273
    %v764 = vunpack.c.h.b16 %v273
    %v765 = vunpack.c.l.b16 %v274
    %v766 = vunpack.c.h.b16 %v274
    %v767 = vunpack.c.l.b16 %v275
    %v768 = vunpack.c.h.b16 %v275
    %v769 = vunpack.c.l.b16 %v276
    %v770 = vunpack.c.h.b16 %v276
    %v771 = vunpack.c.l.b16 %v277
    %v772 = vunpack.c.h.b16 %v277
    %v773 = vunpack.c.l.b16 %v278
    %v774 = vunpack.c.h.b16 %v278
    %v775 = vunpack.c.l.b16 %v279
    %v776 = vunpack.c.h.b16 %v279
    %v777 = vunpack.c.l.b16 %v280
    %v778 = vunpack.c.h.b16 %v280
    %v779 = vunpack.c.l.b16 %v281
    %v780 = vunpack.c.h.b16 %v281
    %v781 = vunpack.c.l.b16 %v282
    %v782 = vunpack.c.h.b16 %v282
    %v783 = vunpack.c.l.b16 %v283
    %v784 = vunpack.c.h.b16 %v283
    %v785 = vunpack.c.l.b16 %v284
    %v786 = vunpack.c.h.b16 %v284
    %v787 = vunpack.c.l.b16 %v285
    %v788 = vunpack.c.h.b16 %v285
    %v789 = vunpack.c.l.b16 %v286
    %v790 = vunpack.c.h.b16 %v286
    %v791 = vunpack.c.l.b16 %v287
    %v792 = vunpack.c.h.b16 %v287
    %v793 = vunpack.c.l.b16 %v288
    %v794 = vunpack.c.h.b16 %v288
    %v795 = vunpack.c.l.b16 %v289
    %v796 = vunpack.c.h.b16 %v289
    %v797 = vunpack.c.l.b16 %v290
    %v798 = vunpack.c.h.b16 %v290
    %v799 = vunpack.c.l.b16 %v291
    %v800 = vunpack.c.h.b16 %v291
    %v801 = vunpack.c.l.b16 %v292
    %v802 = vunpack.c.h.b16 %v292
    %v803 = vunpack.c.l.b16 %v293
    %v804 = vunpack.c.h.b16 %v293
    %v805 = vunpack.c.l.b16 %v294
    %v806 = vunpack.c.h.b16 %v294
    %v807 = vunpack.c.l.b16 %v295
    %v808 = vunpack.c.h.b16 %v295
    %v809 = vunpack.c.l.b16 %v296
    %v810 = vunpack.c.h.b16 %v296
    %v811 = vunpack.c.l.b16 %v297
    %v812 = vunpack.c.h.b16 %v297
    %v813 = vunpack.c.l.b16 %v298
    %v814 = vunpack.c.h.b16 %v298
    %v815 = vunpack.c.l.b16 %v299
    %v816 = vunpack.c.h.b16 %v299
    %v817 = vunpack.c.l.b16 %v300
    %v818 = vunpack.c.h.b16 %v300
    %v819 = vunpack.c.l.b16 %v301
    %v820 = vunpack.c.h.b16 %v301
    %v821 = vunpack.c.l.b16 %v302
    %v822 = vunpack.c.h.b16 %v302
    %v823 = vunpack.c.l.b16 %v303
    %v824 = vunpack.c.h.b16 %v303
    %v825 = vunpack.c.l.b16 %v304
    %v826 = vunpack.c.h.b16 %v304
    %v827 = vunpack.c.l.b16 %v305
    %v828 = vunpack.c.h.b16 %v305
    %v829 = vunpack.c.l.b16 %v306
    %v830 = vunpack.c.h.b16 %v306
    %v831 = vunpack.c.l.b16 %v307
    %v832 = vunpack.c.h.b16 %v307
    %v833 = vunpack.c.l.b16 %v308
    %v834 = vunpack.c.h.b16 %v308
    %v835 = vunpack.c.l.b16 %v309
    %v836 = vunpack.c.h.b16 %v309
    %v837 = vunpack.c.l.b16 %v310
    %v838 = vunpack.c.h.b16 %v310
    %v839 = vunpack.c.l.b16 %v311
    %v840 = vunpack.c.h.b16 %v311
    %v841 = vunpack.c.l.b16 %v312
    %v842 = vunpack.c.h.b16 %v312
    %v843 = vunpack.c.l.b16 %v313
    %v844 = vunpack.c.h.b16 %v313
    %v845 = vunpack.c.l.b16 %v314
    %v846 = vunpack.c.h.b16 %v314
    %v847 = vunpack.c.l.b16 %v315
    %v848 = vunpack.c.h.b16 %v315
    %v849 = vunpack.c.l.b16 %v316
    %v850 = vunpack.c.h.b16 %v316
    %v851 = vunpack.c.l.b16 %v317
    %v852 = vunpack.c.h.b16 %v317
    %v853 = vunpack.c.l.b16 %v318
    %v854 = vunpack.c.h.b16 %v318
    %v855 = vunpack.c.l.b16 %v319
    %v856 = vunpack.c.h.b16 %v319
    %v857 = vunpack.c.l.b16 %v320
    %v858 = vunpack.c.h.b16 %v320
    %v859 = vunpack.c.l.b16 %v321
    %v860 = vunpack.c.h.b16 %v321
    %v861 = vunpack.c.l.b16 %v322
    %v862 = vunpack.c.h.b16 %v322
    %v863 = vunpack.c.l.b16 %v323
    %v864 = vunpack.c.h.b16 %v323
    %v865 = vunpack.c.l.b16 %v324
    %v866 = vunpack.c.h.b16 %v324
    %v867 = vunpack.c.l.b16 %v325
    %v868 = vunpack.c.h.b16 %v325
    %v869 = vunpack.c.l.b16 %v326
    %v870 = vunpack.c.h.b16 %v326
    %v871 = vunpack.c.l.b16 %v327
    %v872 = vunpack.c.h.b16 %v327
    %v873 = vunpack.c.l.b16 %v328
    %v874 = vunpack.c.h.b16 %v328
    %v875 = vunpack.c.l.b16 %v329
    %v876 = vunpack.c.h.b16 %v329
    %v877 = vunpack.c.l.b16 %v330
    %v878 = vunpack.c.h.b16 %v330
    %v879 = vunpack.c.l.b16 %v331
    %v880 = vunpack.c.h.b16 %v331
    %v881 = vunpack.c.l.b16 %v332
    %v882 = vunpack.c.h.b16 %v332
    %v883 = vunpack.c.l.b16 %v333
    %v884 = vunpack.c.h.b16 %v333
    %v885 = vunpack.c.l.b16 %v334
    %v886 = vunpack.c.h.b16 %v334
    %v887 = vunpack.c.l.b16 %v335
    %v888 = vunpack.c.h.b16 %v335
    %v889 = vunpack.c.l.b16 %v336
    %v890 = vunpack.c.h.b16 %v336
    %v891 = vunpack.c.l.b16 %v337
    %v892 = vunpack.c.h.b16 %v337
    %v893 = vunpack.c.l.b16 %v338
    %v894 = vunpack.c.h.b16 %v338
    %v895 = vunpack.c.l.b16 %v339
    %v896 = vunpack.c.h.b16 %v339
    %v897 = vunpack.c.l.b16 %v340
    %v898 = vunpack.c.h.b16 %v340
    %v899 = vunpack.c.l.b16 %v341
    %v900 = vunpack.c.h.b16 %v341
    %v901 = vunpack.c.l.b16 %v342
    %v902 = vunpack.c.h.b16 %v342
    %v903 = vunpack.c.l.b16 %v343
    %v904 = vunpack.c.h.b16 %v343
    %v905 = vunpack.c.l.b16 %v344
    %v906 = vunpack.c.h.b16 %v344
    %v907 = vunpack.c.l.b16 %v345
    %v908 = vunpack.c.h.b16 %v345
    %v909 = vunpack.c.l.b16 %v346
    %v910 = vunpack.c.h.b16 %v346
    %v911 = vunpack.c.l.b16 %v347
    %v912 = vunpack.c.h.b16 %v347
    %v913 = vunpack.c.l.b16 %v348
    %v914 = vunpack.c.h.b16 %v348
    %v915 = vunpack.c.l.b16 %v349
    %v916 = vunpack.c.h.b16 %v349
    %v917 = vunpack.c.l.b16 %v350
    %v918 = vunpack.c.h.b16 %v350
    %v919 = vunpack.c.l.b16 %v351
    %v920 = vunpack.c.h.b16 %v351
    %v921 = vunpack.c.l.b16 %v352
    %v922 = vunpack.c.h.b16 %v352
    %v923 = vunpack.c.l.b16 %v353
    %v924 = vunpack.c.h.b16 %v353
    %v925 = vunpack.c.l.b16 %v354
    %v926 = vunpack.c.h.b16 %v354
    %v927 = vunpack.c.l.b16 %v355
    %v928 = vunpack.c.h.b16 %v355
    %v929 = vunpack.c.l.b16 %v356
    %v930 = vunpack.c.h.b16 %v356
    %v931 = vunpack.c.l.b16 %v357
    %v932 = vunpack.c.h.b16 %v357
    %v933 = vunpack.c.l.b16 %v358
    %v934 = vunpack.c.h.b16 %v358
    %v935 = vunpack.c.l.b16 %v359
    %v936 = vunpack.c.h.b16 %v359
    %v937 = vunpack.c.l.b16 %v360
    %v938 = vunpack.c.h.b16 %v360
    %v939 = vunpack.c.l.b16 %v361
    %v940 = vunpack.c.h.b16 %v361
    %v941 = vunpack.c.l.b16 %v362
    %v942 = vunpack.c.h.b16 %v362
    %v943 = vunpack.c.l.b16 %v363
    %v944 = vunpack.c.h.b16 %v363
    %v945 = vunpack.c.l.b16 %v364
    %v946 = vunpack.c.h.b16 %v364
    %v947 = vunpack.c.l.b16 %v365
    %v948 = vunpack.c.h.b16 %v365
    %v949 = vunpack.c.l.b16 %v366
    %v950 = vunpack.c.h.b16 %v366
    %v951 = vunpack.c.l.b16 %v367
    %v952 = vunpack.c.h.b16 %v367
    %v953 = vunpack.c.l.b16 %v368
    %v954 = vunpack.c.h.b16 %v368
    %v955 = vunpack.c.l.b16 %v369
    %v956 = vunpack.c.h.b16 %v369
    %v957 = vunpack.c.l.b16 %v370
    %v958 = vunpack.c.h.b16 %v370
    %v959 = vunpack.c.l.b16 %v371
    %v960 = vunpack.c.h.b16 %v371
    %v961 = vunpack.c.l.b16 %v372
    %v962 = vunpack.c.h.b16 %v372
    %v963 = vunpack.c.l.b16 %v373
    %v964 = vunpack.c.h.b16 %v373
    %v965 = vunpack.c.l.b16 %v374
    %v966 = vunpack.c.h.b16 %v374
    %v967 = vunpack.c.l.b16 %v375
    %v968 = vunpack.c.h.b16 %v375
    %v969 = vunpack.c.l.b16 %v376
    %v970 = vunpack.c.h.b16 %v376
    %v971 = vunpack.c.l.b16 %v377
    %v972 = vunpack.c.h.b16 %v377
    %v973 = vunpack.c.l.b16 %v378
    %v974 = vunpack.c.h.b16 %v378
    %v975 = vunpack.c.l.b16 %v379
    %v976 = vunpack.c.h.b16 %v379
    %v977 = vunpack.c.l.b16 %v380
    %v978 = vunpack.c.h.b16 %v380
    %v979 = vunpack.c.l.b16 %v381
    %v980 = vunpack.c.h.b16 %v381
    %v981 = vunpack.c.l.b16 %v382
    %v982 = vunpack.c.h.b16 %v382
    %v983 = vunpack.c.l.b16 %v383
    %v984 = vunpack.c.h.b16 %v383
    %v985 = vunpack.c.l.b16 %v384
    %v986 = vunpack.c.h.b16 %v384
    %v987 = vunpack.c.l.b16 %v385
    %v988 = vunpack.c.h.b16 %v385
    %v989 = vunpack.c.l.b16 %v386
    %v990 = vunpack.c.h.b16 %v386
    %v991 = vunpack.c.l.b16 %v387
    %v992 = vunpack.c.h.b16 %v387
    %v993 = vunpack.c.l.b16 %v388
    %v994 = vunpack.c.h.b16 %v388
    %v995 = vunpack.c.l.b16 %v389
    %v996 = vunpack.c.h.b16 %v389
    %v997 = vunpack.c.l.b16 %v390
    %v998 = vunpack.c.h.b16 %v390
    %v999 = vunpack.c.l.b16 %v391
    %v1000 = vunpack.c.h.b16 %v391
    %v1001 = vunpack.c.l.b16 %v392
    %v1002 = vunpack.c.h.b16 %v392
    %v1003 = vunpack.c.l.b16 %v393
    %v1004 = vunpack.c.h.b16 %v393
    %v1005 = vunpack.c.l.b16 %v394
    %v1006 = vunpack.c.h.b16 %v394
    %v1007 = vunpack.c.l.b16 %v395
    %v1008 = vunpack.c.h.b16 %v395
    %v1009 = vunpack.c.l.b16 %v396
    %v1010 = vunpack.c.h.b16 %v396
    %v1011 = vunpack.c.l.b16 %v397
    %v1012 = vunpack.c.h.b16 %v397
    %v1013 = vunpack.c.l.b16 %v398
    %v1014 = vunpack.c.h.b16 %v398
    %v1015 = vunpack.c.l.b16 %v399
    %v1016 = vunpack.c.h.b16 %v399
    %v1017 = vunpack.c.l.b16 %v400
    %v1018 = vunpack.c.h.b16 %v400
    %v1019 = vunpack.c.l.b16 %v401
    %v1020 = vunpack.c.h.b16 %v401
    %v1021 = vunpack.c.l.b16 %v402
    %v1022 = vunpack.c.h.b16 %v402
    %v1023 = vunpack.c.l.b16 %v403
    %v1024 = vunpack.c.h.b16 %v403
    %v1025 = vunpack.c.l.b16 %v404
    %v1026 = vunpack.c.h.b16 %v404
    %v1027 = vunpack.c.l.b16 %v405
    %v1028 = vunpack.c.h.b16 %v405
    %v1029 = vunpack.c.l.b16 %v406
    %v1030 = vunpack.c.h.b16 %v406
    %v1031 = vunpack.c.l.b16 %v407
    %v1032 = vunpack.c.h.b16 %v407
    %v1033 = vunpack.c.l.b16 %v408
    %v1034 = vunpack.c.h.b16 %v408
    %v1035 = vunpack.c.l.b16 %v409
    %v1036 = vunpack.c.h.b16 %v409
    %v1037 = vunpack.c.l.b16 %v410
    %v1038 = vunpack.c.h.b16 %v410
    %v1039 = vunpack.c.l.b16 %v411
    %v1040 = vunpack.c.h.b16 %v411
    %v1041 = vunpack.c.l.b16 %v412
    %v1042 = vunpack.c.h.b16 %v412
    %v1043 = vunpack.c.l.b16 %v413
    %v1044 = vunpack.c.h.b16 %v413
    %v1045 = vunpack.c.l.b16 %v414
    %v1046 = vunpack.c.h.b16 %v414
    %v1047 = vunpack.c.l.b16 %v415
    %v1048 = vunpack.c.h.b16 %v415
    %v1049 = vunpack.c.l.b16 %v416
    %v1050 = vunpack.c.h.b16 %v416
    %v1051 = vunpack.c.l.b16 %v417
    %v1052 = vunpack.c.h.b16 %v417
    %v1053 = vunpack.c.l.b16 %v418
    %v1054 = vunpack.c.h.b16 %v418
    %v1055 = vunpack.c.l.b16 %v419
    %v1056 = vunpack.c.h.b16 %v419
    %v1057 = vunpack.c.l.b16 %v420
    %v1058 = vunpack.c.h.b16 %v420
    %v1059 = vunpack.c.l.b16 %v421
    %v1060 = vunpack.c.h.b16 %v421
    %v1061 = vunpack.c.l.b16 %v422
    %v1062 = vunpack.c.h.b16 %v422
    %v1063 = vunpack.c.l.b16 %v423
    %v1064 = vunpack.c.h.b16 %v423
    %v1065 = vunpack.c.l.b16 %v424
    %v1066 = vunpack.c.h.b16 %v424
    %v1067 = vunpack.c.l.b16 %v425
    %v1068 = vunpack.c.h.b16 %v425
    %v1069 = vunpack.c.l.b16 %v426
    %v1070 = vunpack.c.h.b16 %v426
    %v1071 = vunpack.c.l.b16 %v427
    %v1072 = vunpack.c.h.b16 %v427
    %v1073 = vunpack.c.l.b16 %v428
    %v1074 = vunpack.c.h.b16 %v428
    %v1075 = vunpack.c.l.b16 %v429
    %v1076 = vunpack.c.h.b16 %v429
    %v1077 = vunpack.c.l.b16 %v430
    %v1078 = vunpack.c.h.b16 %v430
    %v1079 = vunpack.c.l.b16 %v431
    %v1080 = vunpack.c.h.b16 %v431
    %v1081 = vunpack.c.l.b16 %v432
    %v1082 = vunpack.c.h.b16 %v432
    %v1083 = vunpack.c.l.b16 %v433
    %v1084 = vunpack.c.h.b16 %v433
    %v1085 = vunpack.c.l.b16 %v434
    %v1086 = vunpack.c.h.b16 %v434
    %v1087 = vunpack.c.l.b16 %v435
    %v1088 = vunpack.c.h.b16 %v435
    %v1089 = vunpack.c.l.b16 %v436
    %v1090 = vunpack.c.h.b16 %v436
    %v1091 = vunpack.c.l.b16 %v437
    %v1092 = vunpack.c.h.b16 %v437
    %v1093 = vunpack.c.l.b16 %v438
    %v1094 = vunpack.c.h.b16 %v438
    %v1095 = vunpack.c.l.b16 %v439
    %v1096 = vunpack.c.h.b16 %v439
    %v1097 = vunpack.c.l.b16 %v440
    %v1098 = vunpack.c.h.b16 %v440
    %v1099 = vunpack.c.l.b16 %v441
    %v1100 = vunpack.c.h.b16 %v441
    %v1101 = vunpack.c.l.b16 %v442
    %v1102 = vunpack.c.h.b16 %v442
    %v1103 = vunpack.c.l.b16 %v443
    %v1104 = vunpack.c.h.b16 %v443
    %v1105 = vunpack.c.l.b16 %v444
    %v1106 = vunpack.c.h.b16 %v444
    %v1107 = vunpack.c.l.b16 %v445
    %v1108 = vunpack.c.h.b16 %v445
    %v1109 = vunpack.c.l.b16 %v446
    %v1110 = vunpack.c.h.b16 %v446
    %v1111 = vunpack.c.l.b16 %v447
    %v1112 = vunpack.c.h.b16 %v447
    %v1113 = vunpack.c.l.b16 %v448
    %v1114 = vunpack.c.h.b16 %v448
    %v1115 = vunpack.c.l.b16 %v449
    %v1116 = vunpack.c.h.b16 %v449
    %v1117 = vunpack.c.l.b16 %v450
    %v1118 = vunpack.c.h.b16 %v450
    %v1119 = vunpack.c.l.b16 %v451
    %v1120 = vunpack.c.h.b16 %v451
    %v1121 = vunpack.c.l.b16 %v452
    %v1122 = vunpack.c.h.b16 %v452
    %v1123 = vunpack.c.l.b16 %v453
    %v1124 = vunpack.c.h.b16 %v453
    %v1125 = vunpack.c.l.b16 %v454
    %v1126 = vunpack.c.h.b16 %v454
    %v1127 = vunpack.c.l.b16 %v455
    %v1128 = vunpack.c.h.b16 %v455
    %v1129 = vunpack.c.l.b16 %v456
    %v1130 = vunpack.c.h.b16 %v456
    %v1131 = vunpack.c.l.b16 %v457
    %v1132 = vunpack.c.h.b16 %v457
    %v1133 = vunpack.c.l.b16 %v458
    %v1134 = vunpack.c.h.b16 %v458
    %v1135 = vunpack.c.l.b16 %v459
    %v1136 = vunpack.c.h.b16 %v459
    %v1137 = vunpack.c.l.b16 %v460
    %v1138 = vunpack.c.h.b16 %v460
    %v1139 = vunpack.c.l.b16 %v461
    %v1140 = vunpack.c.h.b16 %v461
    %v1141 = vunpack.c.l.b16 %v462
    %v1142 = vunpack.c.h.b16 %v462
    %v1143 = vunpack.c.l.b16 %v463
    %v1144 = vunpack.c.h.b16 %v463
    %v1145 = vunpack.c.l.b16 %v464
    %v1146 = vunpack.c.h.b16 %v464
    %v1147 = vpack.c.b16 %v703, %v699
    %v1148 = vpack.c.b16 %v704, %v700
    %v1149 = vpack.c.b16 %v705, %v701
    %v1150 = vpack.c.b16 %v706, %v702
    %v1151 = vpack.c.b16 %v711, %v707
    %v1152 = vpack.c.b16 %v712, %v708
    %v1153 = vpack.c.b16 %v713, %v709
    %v1154 = vpack.c.b16 %v714, %v710
    %v1155 = vpack.c.b16 %v719, %v715
    %v1156 = vpack.c.b16 %v720, %v716
    %v1157 = vpack.c.b16 %v721, %v717
    %v1158 = vpack.c.b16 %v722, %v718
    %v1159 = vpack.c.b16 %v727, %v723
    %v1160 = vpack.c.b16 %v728, %v724
    %v1161 = vpack.c.b16 %v729, %v725
    %v1162 = vpack.c.b16 %v730, %v726
    %v1163 = vpack.c.b16 %v735, %v731
    %v1164 = vpack.c.b16 %v736, %v732
    %v1165 = vpack.c.b16 %v737, %v733
    %v1166 = vpack.c.b16 %v738, %v734
    %v1167 = vpack.c.b16 %v743, %v739
    %v1168 = vpack.c.b16 %v744, %v740
    %v1169 = vpack.c.b16 %v745, %v741
    %v1170 = vpack.c.b16 %v746, %v742
    %v1171 = vpack.c.b16 %v751, %v747
    %v1172 = vpack.c.b16 %v752, %v748
    %v1173 = vpack.c.b16 %v753, %v749
    %v1174 = vpack.c.b16 %v754, %v750
    %v1175 = vpack.c.b16 %v759, %v755
    %v1176 = vpack.c.b16 %v760, %v756
    %v1177 = vpack.c.b16 %v761, %v757
    %v1178 = vpack.c.b16 %v762, %v758
    %v1179 = vpack.c.b16 %v767, %v763
    %v1180 = vpack.c.b16 %v768, %v764
    %v1181 = vpack.c.b16 %v769, %v765
    %v1182 = vpack.c.b16 %v770, %v766
    %v1183 = vpack.c.b16 %v775, %v771
    %v1184 = vpack.c.b16 %v776, %v772
    %v1185 = vpack.c.b16 %v777, %v773
    %v1186 = vpack.c.b16 %v778, %v774
    %v1187 = vpack.c.b16 %v783, %v779
    %v1188 = vpack.c.b16 %v784, %v780
    %v1189 = vpack.c.b16 %v785, %v781
    %v1190 = vpack.c.b16 %v786, %v782
    %v1191 = vpack.c.b16 %v791, %v787
    %v1192 = vpack.c.b16 %v792, %v788
    %v1193 = vpack.c.b16 %v793, %v789
    %v1194 = vpack.c.b16 %v794, %v790
    %v1195 = vpack.c.b16 %v799, %v795
    %v1196 = vpack.c.b16 %v800, %v796
    %v1197 = vpack.c.b16 %v801, %v797
    %v1198 = vpack.c.b16 %v802, %v798
    %v1199 = vpack.c.b16 %v807, %v803
    %v1200 = vpack.c.b16 %v808, %v804
    %v1201 = vpack.c.b16 %v809, %v805
    %v1202 = vpack.c.b16 %v810, %v806
    %v1203 = vpack.c.b16 %v815, %v811
    %v1204 = vpack.c.b16 %v816, %v812
    %v1205 = vpack.c.b16 %v817, %v813
    %v1206 = vpack.c.b16 %v818, %v814
    %v1207 = vpack.c.b16 %v823, %v819
    %v1208 = vpack.c.b16 %v824, %v820
    %v1209 = vpack.c.b16 %v825, %v821
    %v1210 = vpack.c.b16 %v826, %v822
    %v1211 = vpack.c.b16 %v831, %v827
    %v1212 = vpack.c.b16 %v832, %v828
    %v1213 = vpack.c.b16 %v833, %v829
    %v1214 = vpack.c.b16 %v834, %v830
    %v1215 = vpack.c.b16 %v839, %v835
    %v1216 = vpack.c.b16 %v840, %v836
    %v1217 = vpack.c.b16 %v841, %v837
    %v1218 = vpack.c.b16 %v842, %v838
    %v1219 = vpack.c.b16 %v847, %v843
    %v1220 = vpack.c.b16 %v848, %v844
    %v1221 = vpack.c.b16 %v849, %v845
    %v1222 = vpack.c.b16 %v850, %v846
    %v1223 = vpack.c.b16 %v855, %v851
    %v1224 = vpack.c.b16 %v856, %v852
    %v1225 = vpack.c.b16 %v857, %v853
    %v1226 = vpack.c.b16 %v858, %v854
    %v1227 = vpack.c.b16 %v863, %v859
    %v1228 = vpack.c.b16 %v864, %v860
    %v1229 = vpack.c.b16 %v865, %v861
    %v1230 = vpack.c.b16 %v866, %v862
    %v1231 = vpack.c.b16 %v871, %v867
    %v1232 = vpack.c.b16 %v872, %v868
    %v1233 = vpack.c.b16 %v873, %v869
    %v1234 = vpack.c.b16 %v874, %v870
    %v1235 = vpack.c.b16 %v879, %v875
    %v1236 = vpack.c.b16 %v880, %v876
    %v1237 = vpack.c.b16 %v881, %v877
    %v1238 = vpack.c.b16 %v882, %v878
    %v1239 = vpack.c.b16 %v887, %v883
    %v1240 = vpack.c.b16 %v888, %v884
    %v1241 = vpack.c.b16 %v889, %v885
    %v1242 = vpack.c.b16 %v890, %v886
    %v1243 = vpack.c.b16 %v895, %v891
    %v1244 = vpack.c.b16 %v896, %v892
    %v1245 = vpack.c.b16 %v897, %v893
    %v1246 = vpack.c.b16 %v898, %v894
    %v1247 = vpack.c.b16 %v903, %v899
    %v1248 = vpack.c.b16 %v904, %v900
    %v1249 = vpack.c.b16 %v905, %v901
    %v1250 = vpack.c.b16 %v906, %v902
    %v1251 = vpack.c.b16 %v911, %v907
    %v1252 = vpack.c.b16 %v912, %v908
    %v1253 = vpack.c.b16 %v913, %v909
    %v1254 = vpack.c.b16 %v914, %v910
    %v1255 = vpack.c.b16 %v919, %v915
    %v1256 = vpack.c.b16 %v920, %v916
    %v1257 = vpack.c.b16 %v921, %v917
    %v1258 = vpack.c.b16 %v922, %v918
    %v1259 = vpack.c.b16 %v927, %v923
    %v1260 = vpack.c.b16 %v928, %v924
    %v1261 = vpack.c.b16 %v929, %v925
    %v1262 = vpack.c.b16 %v930, %v926
    %v1263 = vpack.c.b16 %v935, %v931
    %v1264 = vpack.c.b16 %v936, %v932
    %v1265 = vpack.c.b16 %v937, %v933
    %v1266 = vpack.c.b16 %v938, %v934
    %v1267 = vpack.c.b16 %v943, %v939
    %v1268 = vpack.c.b16 %v944, %v940
    %v1269 = vpack.c.b16 %v945, %v941
    %v1270 = vpack.c.b16 %v946, %v942
    %v1271 = vpack.c.b16 %v951, %v947
    %v1272 = vpack.c.b16 %v952, %v948
    %v1273 = vpack.c.b16 %v953, %v949
    %v1274 = vpack.c.b16 %v954, %v950
    %v1275 = vpack.c.b16 %v959, %v955
    %v1276 = vpack.c.b16 %v960, %v956
    %v1277 = vpack.c.b16 %v961, %v957
    %v1278 = vpack.c.b16 %v962, %v958
    %v1279 = vpack.c.b16 %v967, %v963
    %v1280 = vpack.c.b16 %v968, %v964
    %v1281 = vpack.c.b16 %v969, %v965
    %v1282 = vpack.c.b16 %v970, %v966
    %v1283 = vpack.c.b16 %v975, %v971
    %v1284 = vpack.c.b16 %v976, %v972
    %v1285 = vpack.c.b16 %v977, %v973
    %v1286 = vpack.c.b16 %v978, %v974
    %v1287 = vpack.c.b16 %v983, %v979
    %v1288 = vpack.c.b16 %v984, %v980
    %v1289 = vpack.c.b16 %v985, %v981
    %v1290 = vpack.c.b16 %v986, %v982
    %v1291 = vpack.c.b16 %v991, %v987
    %v1292 = vpack.c.b16 %v992, %v988
    %v1293 = vpack.c.b16 %v993, %v989
    %v1294 = vpack.c.b16 %v994, %v990
    %v1295 = vpack.c.b16 %v999, %v995
    %v1296 = vpack.c.b16 %v1000, %v996
    %v1297 = vpack.c.b16 %v1001, %v997
    %v1298 = vpack.c.b16 %v1002, %v998
    %v1299 = vpack.c.b16 %v1007, %v1003
    %v1300 = vpack.c.b16 %v1008, %v1004
    %v1301 = vpack.c.b16 %v1009, %v1005
    %v1302 = vpack.c.b16 %v1010, %v1006
    %v1303 = vpack.c.b16 %v1015, %v1011
    %v1304 = vpack.c.b16 %v1016, %v1012
    %v1305 = vpack.c.b16 %v1017, %v1013
    %v1306 = vpack.c.b16 %v1018, %v1014
    %v1307 = vpack.c.b16 %v1023, %v1019
    %v1308 = vpack.c.b16 %v1024, %v1020
    %v1309 = vpack.c.b16 %v1025, %v1021
    %v1310 = vpack.c.b16 %v1026, %v1022
    %v1311 = vpack.c.b16 %v1031, %v1027
    %v1312 = vpack.c.b16 %v1032, %v1028
    %v1313 = vpack.c.b16 %v1033, %v1029
    %v1314 = vpack.c.b16 %v1034, %v1030
    %v1315 = vpack.c.b16 %v1039, %v1035
    %v1316 = vpack.c.b16 %v1040, %v1036
    %v1317 = vpack.c.b16 %v1041, %v1037
    %v1318 = vpack.c.b16 %v1042, %v1038
    %v1319 = vpack.c.b16 %v1047, %v1043
    %v1320 = vpack.c.b16 %v1048, %v1044
    %v1321 = vpack.c.b16 %v1049, %v1045
    %v1322 = vpack.c.b16 %v1050, %v1046
    %v1323 = vpack.c.b16 %v1055, %v1051
    %v1324 = vpack.c.b16 %v1056, %v1052
    %v1325 = vpack.c.b16 %v1057, %v1053
    %v1326 = vpack.c.b16 %v1058, %v1054
    %v1327 = vpack.c.b16 %v1063, %v1059
    %v1328 = vpack.c.b16 %v1064, %v1060
    %v1329 = vpack.c.b16 %v1065, %v1061
    %v1330 = vpack.c.b16 %v1066, %v1062
    %v1331 = vpack.c.b16 %v1071, %v1067
    %v1332 = vpack.c.b16 %v1072, %v1068
    %v1333 = vpack.c.b16 %v1073, %v1069
    %v1334 = vpack.c.b16 %v1074, %v1070
    %v1335 = vpack.c.b16 %v1079, %v1075
    %v1336 = vpack.c.b16 %v1080, %v1076
    %v1337 = vpack.c.b16 %v1081, %v1077
    %v1338 = vpack.c.b16 %v1082, %v1078
    %v1339 = vpack.c.b16 %v1087, %v1083
    %v1340 = vpack.c.b16 %v1088, %v1084
    %v1341 = vpack.c.b16 %v1089, %v1085
    %v1342 = vpack.c.b16 %v1090, %v1086
    %v1343 = vpack.c.b16 %v1095, %v1091
    %v1344 = vpack.c.b16 %v1096, %v1092
    %v1345 = vpack.c.b16 %v1097, %v1093
    %v1346 = vpack.c.b16 %v1098, %v1094
    %v1347 = vpack.c.b16 %v1103, %v1099
    %v1348 = vpack.c.b16 %v1104, %v1100
    %v1349 = vpack.c.b16 %v1105, %v1101
    %v1350 = vpack.c.b16 %v1106, %v1102
    %v1351 = vpack.c.b16 %v1111, %v1107
    %v1352 = vpack.c.b16 %v1112, %v1108
    %v1353 = vpack.c.b16 %v1113, %v1109
    %v1354 = vpack.c.b16 %v1114, %v1110
    %v1355 = vpack.c.b16 %v1119, %v1115
    %v1356 = vpack.c.b16 %v1120, %v1116
    %v1357 = vpack.c.b16 %v1121, %v1117
    %v1358 = vpack.c.b16 %v1122, %v1118
    %v1359 = vpack.c.b16 %v1127, %v1123
    %v1360 = vpack.c.b16 %v1128, %v1124
    %v1361 = vpack.c.b16 %v1129, %v1125
    %v1362 = vpack.c.b16 %v1130, %v1126
    %v1363 = vpack.c.b16 %v1135, %v1131
    %v1364 = vpack.c.b16 %v1136, %v1132
    %v1365 = vpack.c.b16 %v1137, %v1133
    %v1366 = vpack.c.b16 %v1138, %v1134
    %v1367 = vpack.c.b16 %v1143, %v1139
    %v1368 = vpack.c.b16 %v1144, %v1140
    %v1369 = vpack.c.b16 %v1145, %v1141
    %v1370 = vpack.c.b16 %v1146, %v1142
    %1595 = vmatpush.bf16.msra.mxu0 %v1175
    %1596 = vmatpush.bf16.msra.mxu0 %v1171
    %1597 = vmatpush.bf16.msra.mxu0 %v1167
    %1598 = vmatpush.bf16.msra.mxu0 %v1163
    %1599 = vmatpush.bf16.msra.mxu0 %v1159
    %1600 = vmatpush.bf16.msra.mxu0 %v1155
    %1601 = vmatpush.bf16.msra.mxu0 %v1151
    %1602 = vmatpush.bf16.msra.mxu0 %v1147
    %1603 = vmatmul.bf16.gmra.mxu0 %v234
    %v1604 = vpop.f32.mrf.mxu0
    %v1605 = vadd.f32 %v467, %v1604
    %v1606 = vpop.f32.mrf.mxu0
    %1607 = vdwg.mxu0
    %1608 = vmatpush.bf16.msra.mxu0 %v1207
    %1609 = vmatpush.bf16.msra.mxu0 %v1203
    %1610 = vmatpush.bf16.msra.mxu0 %v1199
    %1611 = vmatpush.bf16.msra.mxu0 %v1195
    %1612 = vmatpush.bf16.msra.mxu0 %v1191
    %1613 = vmatpush.bf16.msra.mxu0 %v1187
    %1614 = vmatpush.bf16.msra.mxu0 %v1183
    %1615 = vmatpush.bf16.msra.mxu0 %v1179
    %1616 = vmatmul.bf16.gmra.mxu0 %v235
    %v1617 = vpop.f32.mrf.mxu0
    %v1618 = vadd.f32 %v1605, %v1617
    %v1619 = vpop.f32.mrf.mxu0
    %1620 = vdwg.mxu0
    %1621 = vmatpush.bf16.msra.mxu0 %v1239
    %1622 = vmatpush.bf16.msra.mxu0 %v1235
    %1623 = vmatpush.bf16.msra.mxu0 %v1231
    %1624 = vmatpush.bf16.msra.mxu0 %v1227
    %1625 = vmatpush.bf16.msra.mxu0 %v1223
    %1626 = vmatpush.bf16.msra.mxu0 %v1219
    %1627 = vmatpush.bf16.msra.mxu0 %v1215
    %1628 = vmatpush.bf16.msra.mxu0 %v1211
    %1629 = vmatmul.bf16.gmra.mxu0 %v236
    %v1630 = vpop.f32.mrf.mxu0
    %v1631 = vadd.f32 %v1618, %v1630
    %v1632 = vpop.f32.mrf.mxu0
    %1633 = vdwg.mxu0
    %1634 = vmatpush.bf16.msra.mxu0 %v1271
    %1635 = vmatpush.bf16.msra.mxu0 %v1267
    %1636 = vmatpush.bf16.msra.mxu0 %v1263
    %1637 = vmatpush.bf16.msra.mxu0 %v1259
    %1638 = vmatpush.bf16.msra.mxu0 %v1255
    %1639 = vmatpush.bf16.msra.mxu0 %v1251
    %1640 = vmatpush.bf16.msra.mxu0 %v1247
    %1641 = vmatpush.bf16.msra.mxu0 %v1243
    %1642 = vmatmul.bf16.gmra.mxu0 %v237
    %v1643 = vpop.f32.mrf.mxu0
    %v1644 = vadd.f32 %v1631, %v1643
    %v1645 = vpop.f32.mrf.mxu0
    %1646 = vdwg.mxu0
    %1647 = vmatpush.bf16.msra.mxu0 %v1303
    %1648 = vmatpush.bf16.msra.mxu0 %v1299
    %1649 = vmatpush.bf16.msra.mxu0 %v1295
    %1650 = vmatpush.bf16.msra.mxu0 %v1291
    %1651 = vmatpush.bf16.msra.mxu0 %v1287
    %1652 = vmatpush.bf16.msra.mxu0 %v1283
    %1653 = vmatpush.bf16.msra.mxu0 %v1279
    %1654 = vmatpush.bf16.msra.mxu0 %v1275
    %1655 = vmatmul.bf16.gmra.mxu0 %v238
    %v1656 = vpop.f32.mrf.mxu0
    %v1657 = vadd.f32 %v1644, %v1656
    %v1658 = vpop.f32.mrf.mxu0
    %1659 = vdwg.mxu0
    %1660 = vmatpush.bf16.msra.mxu0 %v1335
    %1661 = vmatpush.bf16.msra.mxu0 %v1331
    %1662 = vmatpush.bf16.msra.mxu0 %v1327
    %1663 = vmatpush.bf16.msra.mxu0 %v1323
    %1664 = vmatpush.bf16.msra.mxu0 %v1319
    %1665 = vmatpush.bf16.msra.mxu0 %v1315
    %1666 = vmatpush.bf16.msra.mxu0 %v1311
    %1667 = vmatpush.bf16.msra.mxu0 %v1307
    %1668 = vmatmul.bf16.gmra.mxu0 %v239
    %v1669 = vpop.f32.mrf.mxu0
    %v1670 = vadd.f32 %v1657, %v1669
    %v1671 = vpop.f32.mrf.mxu0
    %1672 = vdwg.mxu0
    %1673 = vmatpush.bf16.msra.mxu0 %v1367
    %1674 = vmatpush.bf16.msra.mxu0 %v1363
    %1675 = vmatpush.bf16.msra.mxu0 %v1359
    %1676 = vmatpush.bf16.msra.mxu0 %v1355
    %1677 = vmatpush.bf16.msra.mxu0 %v1351
    %1678 = vmatpush.bf16.msra.mxu0 %v1347
    %1679 = vmatpush.bf16.msra.mxu0 %v1343
    %1680 = vmatpush.bf16.msra.mxu0 %v1339
    %1681 = vmatmul.bf16.gmra.mxu0 %v240
    %v1682 = vpop.f32.mrf.mxu0
    %v1683 = vadd.f32 %v1670, %v1682
    %v1684 = vpop.f32.mrf.mxu0
    %1685 = vdwg.mxu0
    %1686 = vmatpush.bf16.msra.mxu0 %v1176
    %1687 = vmatpush.bf16.msra.mxu0 %v1172
    %1688 = vmatpush.bf16.msra.mxu0 %v1168
    %1689 = vmatpush.bf16.msra.mxu0 %v1164
    %1690 = vmatpush.bf16.msra.mxu0 %v1160
    %1691 = vmatpush.bf16.msra.mxu0 %v1156
    %1692 = vmatpush.bf16.msra.mxu0 %v1152
    %1693 = vmatpush.bf16.msra.mxu0 %v1148
    %1694 = vmatmul.bf16.gmra.mxu0 %v234
    %v1695 = vpop.f32.mrf.mxu0
    %v1696 = vadd.f32 %v468, %v1695
    %v1697 = vpop.f32.mrf.mxu0
    %1698 = vdwg.mxu0
    %1699 = vmatpush.bf16.msra.mxu0 %v1208
    %1700 = vmatpush.bf16.msra.mxu0 %v1204
    %1701 = vmatpush.bf16.msra.mxu0 %v1200
    %1702 = vmatpush.bf16.msra.mxu0 %v1196
    %1703 = vmatpush.bf16.msra.mxu0 %v1192
    %1704 = vmatpush.bf16.msra.mxu0 %v1188
    %1705 = vmatpush.bf16.msra.mxu0 %v1184
    %1706 = vmatpush.bf16.msra.mxu0 %v1180
    %1707 = vmatmul.bf16.gmra.mxu0 %v235
    %v1708 = vpop.f32.mrf.mxu0
    %v1709 = vadd.f32 %v1696, %v1708
    %v1710 = vpop.f32.mrf.mxu0
    %1711 = vdwg.mxu0
    %1712 = vmatpush.bf16.msra.mxu0 %v1240
    %1713 = vmatpush.bf16.msra.mxu0 %v1236
    %1714 = vmatpush.bf16.msra.mxu0 %v1232
    %1715 = vmatpush.bf16.msra.mxu0 %v1228
    %1716 = vmatpush.bf16.msra.mxu0 %v1224
    %1717 = vmatpush.bf16.msra.mxu0 %v1220
    %1718 = vmatpush.bf16.msra.mxu0 %v1216
    %1719 = vmatpush.bf16.msra.mxu0 %v1212
    %1720 = vmatmul.bf16.gmra.mxu0 %v236
    %v1721 = vpop.f32.mrf.mxu0
    %v1722 = vadd.f32 %v1709, %v1721
    %v1723 = vpop.f32.mrf.mxu0
    %1724 = vdwg.mxu0
    %1725 = vmatpush.bf16.msra.mxu0 %v1272
    %1726 = vmatpush.bf16.msra.mxu0 %v1268
    %1727 = vmatpush.bf16.msra.mxu0 %v1264
    %1728 = vmatpush.bf16.msra.mxu0 %v1260
    %1729 = vmatpush.bf16.msra.mxu0 %v1256
    %1730 = vmatpush.bf16.msra.mxu0 %v1252
    %1731 = vmatpush.bf16.msra.mxu0 %v1248
    %1732 = vmatpush.bf16.msra.mxu0 %v1244
    %1733 = vmatmul.bf16.gmra.mxu0 %v237
    %v1734 = vpop.f32.mrf.mxu0
    %v1735 = vadd.f32 %v1722, %v1734
    %v1736 = vpop.f32.mrf.mxu0
    %1737 = vdwg.mxu0
    %1738 = vmatpush.bf16.msra.mxu0 %v1304
    %1739 = vmatpush.bf16.msra.mxu0 %v1300
    %1740 = vmatpush.bf16.msra.mxu0 %v1296
    %1741 = vmatpush.bf16.msra.mxu0 %v1292
    %1742 = vmatpush.bf16.msra.mxu0 %v1288
    %1743 = vmatpush.bf16.msra.mxu0 %v1284
    %1744 = vmatpush.bf16.msra.mxu0 %v1280
    %1745 = vmatpush.bf16.msra.mxu0 %v1276
    %1746 = vmatmul.bf16.gmra.mxu0 %v238
    %v1747 = vpop.f32.mrf.mxu0
    %v1748 = vadd.f32 %v1735, %v1747
    %v1749 = vpop.f32.mrf.mxu0
    %1750 = vdwg.mxu0
    %1751 = vmatpush.bf16.msra.mxu0 %v1336
    %1752 = vmatpush.bf16.msra.mxu0 %v1332
    %1753 = vmatpush.bf16.msra.mxu0 %v1328
    %1754 = vmatpush.bf16.msra.mxu0 %v1324
    %1755 = vmatpush.bf16.msra.mxu0 %v1320
    %1756 = vmatpush.bf16.msra.mxu0 %v1316
    %1757 = vmatpush.bf16.msra.mxu0 %v1312
    %1758 = vmatpush.bf16.msra.mxu0 %v1308
    %1759 = vmatmul.bf16.gmra.mxu0 %v239
    %v1760 = vpop.f32.mrf.mxu0
    %v1761 = vadd.f32 %v1748, %v1760
    %v1762 = vpop.f32.mrf.mxu0
    %1763 = vdwg.mxu0
    %1764 = vmatpush.bf16.msra.mxu0 %v1368
    %1765 = vmatpush.bf16.msra.mxu0 %v1364
    %1766 = vmatpush.bf16.msra.mxu0 %v1360
    %1767 = vmatpush.bf16.msra.mxu0 %v1356
    %1768 = vmatpush.bf16.msra.mxu0 %v1352
    %1769 = vmatpush.bf16.msra.mxu0 %v1348
    %1770 = vmatpush.bf16.msra.mxu0 %v1344
    %1771 = vmatpush.bf16.msra.mxu0 %v1340
    %1772 = vmatmul.bf16.gmra.mxu0 %v240
    %v1773 = vpop.f32.mrf.mxu0
    %v1774 = vadd.f32 %v1761, %v1773
    %v1775 = vpop.f32.mrf.mxu0
    %1776 = vdwg.mxu0
    %1777 = vmatpush.bf16.msra.mxu0 %v1177
    %1778 = vmatpush.bf16.msra.mxu0 %v1173
    %1779 = vmatpush.bf16.msra.mxu0 %v1169
    %1780 = vmatpush.bf16.msra.mxu0 %v1165
    %1781 = vmatpush.bf16.msra.mxu0 %v1161
    %1782 = vmatpush.bf16.msra.mxu0 %v1157
    %1783 = vmatpush.bf16.msra.mxu0 %v1153
    %1784 = vmatpush.bf16.msra.mxu0 %v1149
    %1785 = vmatmul.bf16.gmra.mxu0 %v234
    %v1786 = vpop.f32.mrf.mxu0
    %v1787 = vadd.f32 %v469, %v1786
    %v1788 = vpop.f32.mrf.mxu0
    %1789 = vdwg.mxu0
    %1790 = vmatpush.bf16.msra.mxu0 %v1209
    %1791 = vmatpush.bf16.msra.mxu0 %v1205
    %1792 = vmatpush.bf16.msra.mxu0 %v1201
    %1793 = vmatpush.bf16.msra.mxu0 %v1197
    %1794 = vmatpush.bf16.msra.mxu0 %v1193
    %1795 = vmatpush.bf16.msra.mxu0 %v1189
    %1796 = vmatpush.bf16.msra.mxu0 %v1185
    %1797 = vmatpush.bf16.msra.mxu0 %v1181
    %1798 = vmatmul.bf16.gmra.mxu0 %v235
    %v1799 = vpop.f32.mrf.mxu0
    %v1800 = vadd.f32 %v1787, %v1799
    %v1801 = vpop.f32.mrf.mxu0
    %1802 = vdwg.mxu0
    %1803 = vmatpush.bf16.msra.mxu0 %v1241
    %1804 = vmatpush.bf16.msra.mxu0 %v1237
    %1805 = vmatpush.bf16.msra.mxu0 %v1233
    %1806 = vmatpush.bf16.msra.mxu0 %v1229
    %1807 = vmatpush.bf16.msra.mxu0 %v1225
    %1808 = vmatpush.bf16.msra.mxu0 %v1221
    %1809 = vmatpush.bf16.msra.mxu0 %v1217
    %1810 = vmatpush.bf16.msra.mxu0 %v1213
    %1811 = vmatmul.bf16.gmra.mxu0 %v236
    %v1812 = vpop.f32.mrf.mxu0
    %v1813 = vadd.f32 %v1800, %v1812
    %v1814 = vpop.f32.mrf.mxu0
    %1815 = vdwg.mxu0
    %1816 = vmatpush.bf16.msra.mxu0 %v1273
    %1817 = vmatpush.bf16.msra.mxu0 %v1269
    %1818 = vmatpush.bf16.msra.mxu0 %v1265
    %1819 = vmatpush.bf16.msra.mxu0 %v1261
    %1820 = vmatpush.bf16.msra.mxu0 %v1257
    %1821 = vmatpush.bf16.msra.mxu0 %v1253
    %1822 = vmatpush.bf16.msra.mxu0 %v1249
    %1823 = vmatpush.bf16.msra.mxu0 %v1245
    %1824 = vmatmul.bf16.gmra.mxu0 %v237
    %v1825 = vpop.f32.mrf.mxu0
    %v1826 = vadd.f32 %v1813, %v1825
    %v1827 = vpop.f32.mrf.mxu0
    %1828 = vdwg.mxu0
    %1829 = vmatpush.bf16.msra.mxu0 %v1305
    %1830 = vmatpush.bf16.msra.mxu0 %v1301
    %1831 = vmatpush.bf16.msra.mxu0 %v1297
    %1832 = vmatpush.bf16.msra.mxu0 %v1293
    %1833 = vmatpush.bf16.msra.mxu0 %v1289
    %1834 = vmatpush.bf16.msra.mxu0 %v1285
    %1835 = vmatpush.bf16.msra.mxu0 %v1281
    %1836 = vmatpush.bf16.msra.mxu0 %v1277
    %1837 = vmatmul.bf16.gmra.mxu0 %v238
    %v1838 = vpop.f32.mrf.mxu0
    %v1839 = vadd.f32 %v1826, %v1838
    %v1840 = vpop.f32.mrf.mxu0
    %1841 = vdwg.mxu0
    %1842 = vmatpush.bf16.msra.mxu0 %v1337
    %1843 = vmatpush.bf16.msra.mxu0 %v1333
    %1844 = vmatpush.bf16.msra.mxu0 %v1329
    %1845 = vmatpush.bf16.msra.mxu0 %v1325
    %1846 = vmatpush.bf16.msra.mxu0 %v1321
    %1847 = vmatpush.bf16.msra.mxu0 %v1317
    %1848 = vmatpush.bf16.msra.mxu0 %v1313
    %1849 = vmatpush.bf16.msra.mxu0 %v1309
    %1850 = vmatmul.bf16.gmra.mxu0 %v239
    %v1851 = vpop.f32.mrf.mxu0
    %v1852 = vadd.f32 %v1839, %v1851
    %v1853 = vpop.f32.mrf.mxu0
    %1854 = vdwg.mxu0
    %1855 = vmatpush.bf16.msra.mxu0 %v1369
    %1856 = vmatpush.bf16.msra.mxu0 %v1365
    %1857 = vmatpush.bf16.msra.mxu0 %v1361
    %1858 = vmatpush.bf16.msra.mxu0 %v1357
    %1859 = vmatpush.bf16.msra.mxu0 %v1353
    %1860 = vmatpush.bf16.msra.mxu0 %v1349
    %1861 = vmatpush.bf16.msra.mxu0 %v1345
    %1862 = vmatpush.bf16.msra.mxu0 %v1341
    %1863 = vmatmul.bf16.gmra.mxu0 %v240
    %v1864 = vpop.f32.mrf.mxu0
    %v1865 = vadd.f32 %v1852, %v1864
    %v1866 = vpop.f32.mrf.mxu0
    %1867 = vdwg.mxu0
    %1868 = vmatpush.bf16.msra.mxu0 %v1178
    %1869 = vmatpush.bf16.msra.mxu0 %v1174
    %1870 = vmatpush.bf16.msra.mxu0 %v1170
    %1871 = vmatpush.bf16.msra.mxu0 %v1166
    %1872 = vmatpush.bf16.msra.mxu0 %v1162
    %1873 = vmatpush.bf16.msra.mxu0 %v1158
    %1874 = vmatpush.bf16.msra.mxu0 %v1154
    %1875 = vmatpush.bf16.msra.mxu0 %v1150
    %1876 = vmatmul.bf16.gmra.mxu0 %v234
    %v1877 = vpop.f32.mrf.mxu0
    %v1878 = vadd.f32 %v470, %v1877
    %v1879 = vpop.f32.mrf.mxu0
    %1880 = vdwg.mxu0
    %1881 = vmatpush.bf16.msra.mxu0 %v1210
    %1882 = vmatpush.bf16.msra.mxu0 %v1206
    %1883 = vmatpush.bf16.msra.mxu0 %v1202
    %1884 = vmatpush.bf16.msra.mxu0 %v1198
    %1885 = vmatpush.bf16.msra.mxu0 %v1194
    %1886 = vmatpush.bf16.msra.mxu0 %v1190
    %1887 = vmatpush.bf16.msra.mxu0 %v1186
    %1888 = vmatpush.bf16.msra.mxu0 %v1182
    %1889 = vmatmul.bf16.gmra.mxu0 %v235
    %v1890 = vpop.f32.mrf.mxu0
    %v1891 = vadd.f32 %v1878, %v1890
    %v1892 = vpop.f32.mrf.mxu0
    %1893 = vdwg.mxu0
    %1894 = vmatpush.bf16.msra.mxu0 %v1242
    %1895 = vmatpush.bf16.msra.mxu0 %v1238
    %1896 = vmatpush.bf16.msra.mxu0 %v1234
    %1897 = vmatpush.bf16.msra.mxu0 %v1230
    %1898 = vmatpush.bf16.msra.mxu0 %v1226
    %1899 = vmatpush.bf16.msra.mxu0 %v1222
    %1900 = vmatpush.bf16.msra.mxu0 %v1218
    %1901 = vmatpush.bf16.msra.mxu0 %v1214
    %1902 = vmatmul.bf16.gmra.mxu0 %v236
    %v1903 = vpop.f32.mrf.mxu0
    %v1904 = vadd.f32 %v1891, %v1903
    %v1905 = vpop.f32.mrf.mxu0
    %1906 = vdwg.mxu0
    %1907 = vmatpush.bf16.msra.mxu0 %v1274
    %1908 = vmatpush.bf16.msra.mxu0 %v1270
    %1909 = vmatpush.bf16.msra.mxu0 %v1266
    %1910 = vmatpush.bf16.msra.mxu0 %v1262
    %1911 = vmatpush.bf16.msra.mxu0 %v1258
    %1912 = vmatpush.bf16.msra.mxu0 %v1254
    %1913 = vmatpush.bf16.msra.mxu0 %v1250
    %1914 = vmatpush.bf16.msra.mxu0 %v1246
    %1915 = vmatmul.bf16.gmra.mxu0 %v237
    %v1916 = vpop.f32.mrf.mxu0
    %v1917 = vadd.f32 %v1904, %v1916
    %v1918 = vpop.f32.mrf.mxu0
    %1919 = vdwg.mxu0
    %1920 = vmatpush.bf16.msra.mxu0 %v1306
    %1921 = vmatpush.bf16.msra.mxu0 %v1302
    %1922 = vmatpush.bf16.msra.mxu0 %v1298
    %1923 = vmatpush.bf16.msra.mxu0 %v1294
    %1924 = vmatpush.bf16.msra.mxu0 %v1290
    %1925 = vmatpush.bf16.msra.mxu0 %v1286
    %1926 = vmatpush.bf16.msra.mxu0 %v1282
    %1927 = vmatpush.bf16.msra.mxu0 %v1278
    %1928 = vmatmul.bf16.gmra.mxu0 %v238
    %v1929 = vpop.f32.mrf.mxu0
    %v1930 = vadd.f32 %v1917, %v1929
    %v1931 = vpop.f32.mrf.mxu0
    %1932 = vdwg.mxu0
    %1933 = vmatpush.bf16.msra.mxu0 %v1338
    %1934 = vmatpush.bf16.msra.mxu0 %v1334
    %1935 = vmatpush.bf16.msra.mxu0 %v1330
    %1936 = vmatpush.bf16.msra.mxu0 %v1326
    %1937 = vmatpush.bf16.msra.mxu0 %v1322
    %1938 = vmatpush.bf16.msra.mxu0 %v1318
    %1939 = vmatpush.bf16.msra.mxu0 %v1314
    %1940 = vmatpush.bf16.msra.mxu0 %v1310
    %1941 = vmatmul.bf16.gmra.mxu0 %v239
    %v1942 = vpop.f32.mrf.mxu0
    %v1943 = vadd.f32 %v1930, %v1942
    %v1944 = vpop.f32.mrf.mxu0
    %1945 = vdwg.mxu0
    %1946 = vmatpush.bf16.msra.mxu0 %v1370
    %1947 = vmatpush.bf16.msra.mxu0 %v1366
    %1948 = vmatpush.bf16.msra.mxu0 %v1362
    %1949 = vmatpush.bf16.msra.mxu0 %v1358
    %1950 = vmatpush.bf16.msra.mxu0 %v1354
    %1951 = vmatpush.bf16.msra.mxu0 %v1350
    %1952 = vmatpush.bf16.msra.mxu0 %v1346
    %1953 = vmatpush.bf16.msra.mxu0 %v1342
    %1954 = vmatmul.bf16.gmra.mxu0 %v240
    %v1955 = vpop.f32.mrf.mxu0
    %v1956 = vadd.f32 %v1943, %v1955
    %v1957 = vpop.f32.mrf.mxu0
    %1958 = vdwg.mxu0
    %v1959 = vmax.f32 %v1683, 0.0
    %v1960 = vmax.f32 %v1774, 0.0
    %v1961 = vmax.f32 %v1865, 0.0
    %v1962 = vmax.f32 %v1956, 0.0
    %v1963 = vpack.c.bf16 %v1959, %v1959
    %v1964 = vpack.c.bf16 %v1960, %v1960
    %v1965 = vpack.c.bf16 %v1961, %v1961
    %v1966 = vpack.c.bf16 %v1962, %v1962
    %v1967 = vld [vmem:[#allocation10] sm:$0xff]
    %v1968 = vld [vmem:[#allocation10 + $0x8] sm:$0xff]
    %v1969 = vld [vmem:[#allocation10 + $0x10] sm:$0xff]
    %v1970 = vld [vmem:[#allocation10 + $0x18] sm:$0xff]
    %v1971 = vld [vmem:[#allocation10 + $0x20] sm:$0xff]
    %v1972 = vld [vmem:[#allocation10 + $0x28] sm:$0xff]
    %v1973 = vld [vmem:[#allocation10 + $0x30] sm:$0xff]
    %v1974 = vld [vmem:[#allocation10 + $0x38] sm:$0xff]
    %v1975 = vld [vmem:[#allocation10 + $0x40] sm:$0xff]
    %v1976 = vld [vmem:[#allocation10 + $0x48] sm:$0xff]
    %v1977 = vld [vmem:[#allocation10 + $0x50] sm:$0xff]
    %v1978 = vld [vmem:[#allocation10 + $0x58] sm:$0xff]
    %v1979 = vld [vmem:[#allocation10 + $0x60] sm:$0xff]
    %v1980 = vld [vmem:[#allocation10 + $0x68] sm:$0xff]
    %v1981 = vld [vmem:[#allocation10 + $0x70] sm:$0xff]
    %v1982 = vld [vmem:[#allocation10 + $0x78] sm:$0xff]
    %v1983 = vld [vmem:[#allocation10 + $0x80] sm:$0xff]
    %v1984 = vld [vmem:[#allocation10 + $0x88] sm:$0xff]
    %v1985 = vld [vmem:[#allocation10 + $0x90] sm:$0xff]
    %v1986 = vld [vmem:[#allocation10 + $0x98] sm:$0xff]
    %v1987 = vld [vmem:[#allocation10 + $0xa0] sm:$0xff]
    %v1988 = vld [vmem:[#allocation10 + $0xa8] sm:$0xff]
    %v1989 = vld [vmem:[#allocation10 + $0xb0] sm:$0xff]
    %v1990 = vld [vmem:[#allocation10 + $0xb8] sm:$0xff]
    %v1991 = vld [vmem:[#allocation10 + $0xc0] sm:$0xff]
    %v1992 = vld [vmem:[#allocation10 + $0xc8] sm:$0xff]
    %v1993 = vld [vmem:[#allocation10 + $0xd0] sm:$0xff]
    %v1994 = vld [vmem:[#allocation10 + $0xd8] sm:$0xff]
    %v1995 = vld [vmem:[#allocation10 + $0xe0] sm:$0xff]
    %v1996 = vld [vmem:[#allocation10 + $0xe8] sm:$0xff]
    %v1997 = vld [vmem:[#allocation10 + $0xf0] sm:$0xff]
    %v1998 = vld [vmem:[#allocation10 + $0xf8] sm:$0xff]
    %v1999 = vld [vmem:[#allocation10 + $0x100] sm:$0xff]
    %v2000 = vld [vmem:[#allocation10 + $0x108] sm:$0xff]
    %v2001 = vld [vmem:[#allocation10 + $0x110] sm:$0xff]
    %v2002 = vld [vmem:[#allocation10 + $0x118] sm:$0xff]
    %v2003 = vld [vmem:[#allocation10 + $0x120] sm:$0xff]
    %v2004 = vld [vmem:[#allocation10 + $0x128] sm:$0xff]
    %v2005 = vld [vmem:[#allocation10 + $0x130] sm:$0xff]
    %v2006 = vld [vmem:[#allocation10 + $0x138] sm:$0xff]
    %v2007 = vld [vmem:[#allocation10 + $0x140] sm:$0xff]
    %v2008 = vld [vmem:[#allocation10 + $0x148] sm:$0xff]
    %v2009 = vld [vmem:[#allocation10 + $0x150] sm:$0xff]
    %v2010 = vld [vmem:[#allocation10 + $0x158] sm:$0xff]
    %v2011 = vld [vmem:[#allocation10 + $0x160] sm:$0xff]
    %v2012 = vld [vmem:[#allocation10 + $0x168] sm:$0xff]
    %v2013 = vld [vmem:[#allocation10 + $0x170] sm:$0xff]
    %v2014 = vld [vmem:[#allocation10 + $0x178] sm:$0xff]
    %v2015 = vld [vmem:[#allocation10 + $0x180] sm:$0xff]
    %v2016 = vld [vmem:[#allocation10 + $0x188] sm:$0xff]
    %v2017 = vld [vmem:[#allocation10 + $0x190] sm:$0xff]
    %v2018 = vld [vmem:[#allocation10 + $0x198] sm:$0xff]
    %v2019 = vld [vmem:[#allocation10 + $0x1a0] sm:$0xff]
    %v2020 = vld [vmem:[#allocation10 + $0x1a8] sm:$0xff]
    %v2021 = vld [vmem:[#allocation10 + $0x1b0] sm:$0xff]
    %v2022 = vld [vmem:[#allocation10 + $0x1b8] sm:$0xff]
    %v2023 = vld [vmem:[#allocation10 + $0x1c0] sm:$0xff]
    %v2024 = vld [vmem:[#allocation10 + $0x1c8] sm:$0xff]
    %v2025 = vld [vmem:[#allocation10 + $0x1d0] sm:$0xff]
    %v2026 = vld [vmem:[#allocation10 + $0x1d8] sm:$0xff]
    %v2027 = vld [vmem:[#allocation10 + $0x1e0] sm:$0xff]
    %v2028 = vld [vmem:[#allocation10 + $0x1e8] sm:$0xff]
    %v2029 = vld [vmem:[#allocation10 + $0x1f0] sm:$0xff]
    %v2030 = vld [vmem:[#allocation10 + $0x1f8] sm:$0xff]
    %v2031 = vld [vmem:[#allocation11] sm:$0x3]
    %v2033 = vperm.slane %v2031, 0
    %v2034 = vperm.slane %v2031, 1
    %v2101 = vunpack.c.l.b16 %v1967
    %v2102 = vunpack.c.h.b16 %v1967
    %v2103 = vunpack.c.l.b16 %v1968
    %v2104 = vunpack.c.h.b16 %v1968
    %v2105 = vunpack.c.l.b16 %v1969
    %v2106 = vunpack.c.h.b16 %v1969
    %v2107 = vunpack.c.l.b16 %v1970
    %v2108 = vunpack.c.h.b16 %v1970
    %v2109 = vunpack.c.l.b16 %v1971
    %v2110 = vunpack.c.h.b16 %v1971
    %v2111 = vunpack.c.l.b16 %v1972
    %v2112 = vunpack.c.h.b16 %v1972
    %v2113 = vunpack.c.l.b16 %v1973
    %v2114 = vunpack.c.h.b16 %v1973
    %v2115 = vunpack.c.l.b16 %v1974
    %v2116 = vunpack.c.h.b16 %v1974
    %v2117 = vunpack.c.l.b16 %v1975
    %v2118 = vunpack.c.h.b16 %v1975
    %v2119 = vunpack.c.l.b16 %v1976
    %v2120 = vunpack.c.h.b16 %v1976
    %v2121 = vunpack.c.l.b16 %v1977
    %v2122 = vunpack.c.h.b16 %v1977
    %v2123 = vunpack.c.l.b16 %v1978
    %v2124 = vunpack.c.h.b16 %v1978
    %v2125 = vunpack.c.l.b16 %v1979
    %v2126 = vunpack.c.h.b16 %v1979
    %v2127 = vunpack.c.l.b16 %v1980
    %v2128 = vunpack.c.h.b16 %v1980
    %v2129 = vunpack.c.l.b16 %v1981
    %v2130 = vunpack.c.h.b16 %v1981
    %v2131 = vunpack.c.l.b16 %v1982
    %v2132 = vunpack.c.h.b16 %v1982
    %v2133 = vunpack.c.l.b16 %v1983
    %v2134 = vunpack.c.h.b16 %v1983
    %v2135 = vunpack.c.l.b16 %v1984
    %v2136 = vunpack.c.h.b16 %v1984
    %v2137 = vunpack.c.l.b16 %v1985
    %v2138 = vunpack.c.h.b16 %v1985
    %v2139 = vunpack.c.l.b16 %v1986
    %v2140 = vunpack.c.h.b16 %v1986
    %v2141 = vunpack.c.l.b16 %v1987
    %v2142 = vunpack.c.h.b16 %v1987
    %v2143 = vunpack.c.l.b16 %v1988
    %v2144 = vunpack.c.h.b16 %v1988
    %v2145 = vunpack.c.l.b16 %v1989
    %v2146 = vunpack.c.h.b16 %v1989
    %v2147 = vunpack.c.l.b16 %v1990
    %v2148 = vunpack.c.h.b16 %v1990
    %v2149 = vunpack.c.l.b16 %v1991
    %v2150 = vunpack.c.h.b16 %v1991
    %v2151 = vunpack.c.l.b16 %v1992
    %v2152 = vunpack.c.h.b16 %v1992
    %v2153 = vunpack.c.l.b16 %v1993
    %v2154 = vunpack.c.h.b16 %v1993
    %v2155 = vunpack.c.l.b16 %v1994
    %v2156 = vunpack.c.h.b16 %v1994
    %v2157 = vunpack.c.l.b16 %v1995
    %v2158 = vunpack.c.h.b16 %v1995
    %v2159 = vunpack.c.l.b16 %v1996
    %v2160 = vunpack.c.h.b16 %v1996
    %v2161 = vunpack.c.l.b16 %v1997
    %v2162 = vunpack.c.h.b16 %v1997
    %v2163 = vunpack.c.l.b16 %v1998
    %v2164 = vunpack.c.h.b16 %v1998
    %v2165 = vunpack.c.l.b16 %v1999
    %v2166 = vunpack.c.h.b16 %v1999
    %v2167 = vunpack.c.l.b16 %v2000
    %v2168 = vunpack.c.h.b16 %v2000
    %v2169 = vunpack.c.l.b16 %v2001
    %v2170 = vunpack.c.h.b16 %v2001
    %v2171 = vunpack.c.l.b16 %v2002
    %v2172 = vunpack.c.h.b16 %v2002
    %v2173 = vunpack.c.l.b16 %v2003
    %v2174 = vunpack.c.h.b16 %v2003
    %v2175 = vunpack.c.l.b16 %v2004
    %v2176 = vunpack.c.h.b16 %v2004
    %v2177 = vunpack.c.l.b16 %v2005
    %v2178 = vunpack.c.h.b16 %v2005
    %v2179 = vunpack.c.l.b16 %v2006
    %v2180 = vunpack.c.h.b16 %v2006
    %v2181 = vunpack.c.l.b16 %v2007
    %v2182 = vunpack.c.h.b16 %v2007
    %v2183 = vunpack.c.l.b16 %v2008
    %v2184 = vunpack.c.h.b16 %v2008
    %v2185 = vunpack.c.l.b16 %v2009
    %v2186 = vunpack.c.h.b16 %v2009
    %v2187 = vunpack.c.l.b16 %v2010
    %v2188 = vunpack.c.h.b16 %v2010
    %v2189 = vunpack.c.l.b16 %v2011
    %v2190 = vunpack.c.h.b16 %v2011
    %v2191 = vunpack.c.l.b16 %v2012
    %v2192 = vunpack.c.h.b16 %v2012
    %v2193 = vunpack.c.l.b16 %v2013
    %v2194 = vunpack.c.h.b16 %v2013
    %v2195 = vunpack.c.l.b16 %v2014
    %v2196 = vunpack.c.h.b16 %v2014
    %v2197 = vunpack.c.l.b16 %v2015
    %v2198 = vunpack.c.h.b16 %v2015
    %v2199 = vunpack.c.l.b16 %v2016
    %v2200 = vunpack.c.h.b16 %v2016
    %v2201 = vunpack.c.l.b16 %v2017
    %v2202 = vunpack.c.h.b16 %v2017
    %v2203 = vunpack.c.l.b16 %v2018
    %v2204 = vunpack.c.h.b16 %v2018
    %v2205 = vunpack.c.l.b16 %v2019
    %v2206 = vunpack.c.h.b16 %v2019
    %v2207 = vunpack.c.l.b16 %v2020
    %v2208 = vunpack.c.h.b16 %v2020
    %v2209 = vunpack.c.l.b16 %v2021
    %v2210 = vunpack.c.h.b16 %v2021
    %v2211 = vunpack.c.l.b16 %v2022
    %v2212 = vunpack.c.h.b16 %v2022
    %v2213 = vunpack.c.l.b16 %v2023
    %v2214 = vunpack.c.h.b16 %v2023
    %v2215 = vunpack.c.l.b16 %v2024
    %v2216 = vunpack.c.h.b16 %v2024
    %v2217 = vunpack.c.l.b16 %v2025
    %v2218 = vunpack.c.h.b16 %v2025
    %v2219 = vunpack.c.l.b16 %v2026
    %v2220 = vunpack.c.h.b16 %v2026
    %v2221 = vunpack.c.l.b16 %v2027
    %v2222 = vunpack.c.h.b16 %v2027
    %v2223 = vunpack.c.l.b16 %v2028
    %v2224 = vunpack.c.h.b16 %v2028
    %v2225 = vunpack.c.l.b16 %v2029
    %v2226 = vunpack.c.h.b16 %v2029
    %v2227 = vunpack.c.l.b16 %v2030
    %v2228 = vunpack.c.h.b16 %v2030
    %v2229 = vpack.c.b16 %v2103, %v2101
    %v2230 = vpack.c.b16 %v2104, %v2102
    %v2231 = vpack.c.b16 %v2107, %v2105
    %v2232 = vpack.c.b16 %v2108, %v2106
    %v2233 = vpack.c.b16 %v2111, %v2109
    %v2234 = vpack.c.b16 %v2112, %v2110
    %v2235 = vpack.c.b16 %v2115, %v2113
    %v2236 = vpack.c.b16 %v2116, %v2114
    %v2237 = vpack.c.b16 %v2119, %v2117
    %v2238 = vpack.c.b16 %v2120, %v2118
    %v2239 = vpack.c.b16 %v2123, %v2121
    %v2240 = vpack.c.b16 %v2124, %v2122
    %v2241 = vpack.c.b16 %v2127, %v2125
    %v2242 = vpack.c.b16 %v2128, %v2126
    %v2243 = vpack.c.b16 %v2131, %v2129
    %v2244 = vpack.c.b16 %v2132, %v2130
    %v2245 = vpack.c.b16 %v2135, %v2133
    %v2246 = vpack.c.b16 %v2136, %v2134
    %v2247 = vpack.c.b16 %v2139, %v2137
    %v2248 = vpack.c.b16 %v2140, %v2138
    %v2249 = vpack.c.b16 %v2143, %v2141
    %v2250 = vpack.c.b16 %v2144, %v2142
    %v2251 = vpack.c.b16 %v2147, %v2145
    %v2252 = vpack.c.b16 %v2148, %v2146
    %v2253 = vpack.c.b16 %v2151, %v2149
    %v2254 = vpack.c.b16 %v2152, %v2150
    %v2255 = vpack.c.b16 %v2155, %v2153
    %v2256 = vpack.c.b16 %v2156, %v2154
    %v2257 = vpack.c.b16 %v2159, %v2157
    %v2258 = vpack.c.b16 %v2160, %v2158
    %v2259 = vpack.c.b16 %v2163, %v2161
    %v2260 = vpack.c.b16 %v2164, %v2162
    %v2261 = vpack.c.b16 %v2167, %v2165
    %v2262 = vpack.c.b16 %v2168, %v2166
    %v2263 = vpack.c.b16 %v2171, %v2169
    %v2264 = vpack.c.b16 %v2172, %v2170
    %v2265 = vpack.c.b16 %v2175, %v2173
    %v2266 = vpack.c.b16 %v2176, %v2174
    %v2267 = vpack.c.b16 %v2179, %v2177
    %v2268 = vpack.c.b16 %v2180, %v2178
    %v2269 = vpack.c.b16 %v2183, %v2181
    %v2270 = vpack.c.b16 %v2184, %v2182
    %v2271 = vpack.c.b16 %v2187, %v2185
    %v2272 = vpack.c.b16 %v2188, %v2186
    %v2273 = vpack.c.b16 %v2191, %v2189
    %v2274 = vpack.c.b16 %v2192, %v2190
    %v2275 = vpack.c.b16 %v2195, %v2193
    %v2276 = vpack.c.b16 %v2196, %v2194
    %v2277 = vpack.c.b16 %v2199, %v2197
    %v2278 = vpack.c.b16 %v2200, %v2198
    %v2279 = vpack.c.b16 %v2203, %v2201
    %v2280 = vpack.c.b16 %v2204, %v2202
    %v2281 = vpack.c.b16 %v2207, %v2205
    %v2282 = vpack.c.b16 %v2208, %v2206
    %v2283 = vpack.c.b16 %v2211, %v2209
    %v2284 = vpack.c.b16 %v2212, %v2210
    %v2285 = vpack.c.b16 %v2215, %v2213
    %v2286 = vpack.c.b16 %v2216, %v2214
    %v2287 = vpack.c.b16 %v2219, %v2217
    %v2288 = vpack.c.b16 %v2220, %v2218
    %v2289 = vpack.c.b16 %v2223, %v2221
    %v2290 = vpack.c.b16 %v2224, %v2222
    %v2291 = vpack.c.b16 %v2227, %v2225
    %v2292 = vpack.c.b16 %v2228, %v2226
    %2357 = vmatpush.bf16.msra.mxu0 %v2243
    %2358 = vmatpush.bf16.msra.mxu0 %v2241
    %2359 = vmatpush.bf16.msra.mxu0 %v2239
    %2360 = vmatpush.bf16.msra.mxu0 %v2237
    %2361 = vmatpush.bf16.msra.mxu0 %v2235
    %2362 = vmatpush.bf16.msra.mxu0 %v2233
    %2363 = vmatpush.bf16.msra.mxu0 %v2231
    %2364 = vmatpush.bf16.msra.mxu0 %v2229
    %2365 = vmatmul.bf16.gmra.mxu0 %v1963
    %v2366 = vpop.f32.mrf.mxu0
    %v2367 = vadd.f32 %v2033, %v2366
    %v2368 = vpop.f32.mrf.mxu0
    %2369 = vdwg.mxu0
    %2370 = vmatpush.bf16.msra.mxu0 %v2259
    %2371 = vmatpush.bf16.msra.mxu0 %v2257
    %2372 = vmatpush.bf16.msra.mxu0 %v2255
    %2373 = vmatpush.bf16.msra.mxu0 %v2253
    %2374 = vmatpush.bf16.msra.mxu0 %v2251
    %2375 = vmatpush.bf16.msra.mxu0 %v2249
    %2376 = vmatpush.bf16.msra.mxu0 %v2247
    %2377 = vmatpush.bf16.msra.mxu0 %v2245
    %2378 = vmatmul.bf16.gmra.mxu0 %v1964
    %v2379 = vpop.f32.mrf.mxu0
    %v2380 = vadd.f32 %v2367, %v2379
    %v2381 = vpop.f32.mrf.mxu0
    %2382 = vdwg.mxu0
    %2383 = vmatpush.bf16.msra.mxu0 %v2275
    %2384 = vmatpush.bf16.msra.mxu0 %v2273
    %2385 = vmatpush.bf16.msra.mxu0 %v2271
    %2386 = vmatpush.bf16.msra.mxu0 %v2269
    %2387 = vmatpush.bf16.msra.mxu0 %v2267
    %2388 = vmatpush.bf16.msra.mxu0 %v2265
    %2389 = vmatpush.bf16.msra.mxu0 %v2263
    %2390 = vmatpush.bf16.msra.mxu0 %v2261
    %2391 = vmatmul.bf16.gmra.mxu0 %v1965
    %v2392 = vpop.f32.mrf.mxu0
    %v2393 = vadd.f32 %v2380, %v2392
    %v2394 = vpop.f32.mrf.mxu0
    %2395 = vdwg.mxu0
    %2396 = vmatpush.bf16.msra.mxu0 %v2291
    %2397 = vmatpush.bf16.msra.mxu0 %v2289
    %2398 = vmatpush.bf16.msra.mxu0 %v2287
    %2399 = vmatpush.bf16.msra.mxu0 %v2285
    %2400 = vmatpush.bf16.msra.mxu0 %v2283
    %2401 = vmatpush.bf16.msra.mxu0 %v2281
    %2402 = vmatpush.bf16.msra.mxu0 %v2279
    %2403 = vmatpush.bf16.msra.mxu0 %v2277
    %2404 = vmatmul.bf16.gmra.mxu0 %v1966
    %v2405 = vpop.f32.mrf.mxu0
    %v2406 = vadd.f32 %v2393, %v2405
    %v2407 = vpop.f32.mrf.mxu0
    %2408 = vdwg.mxu0
    %2409 = vmatpush.bf16.msra.mxu0 %v2244
    %2410 = vmatpush.bf16.msra.mxu0 %v2242
    %2411 = vmatpush.bf16.msra.mxu0 %v2240
    %2412 = vmatpush.bf16.msra.mxu0 %v2238
    %2413 = vmatpush.bf16.msra.mxu0 %v2236
    %2414 = vmatpush.bf16.msra.mxu0 %v2234
    %2415 = vmatpush.bf16.msra.mxu0 %v2232
    %2416 = vmatpush.bf16.msra.mxu0 %v2230
    %2417 = vmatmul.bf16.gmra.mxu0 %v1963
    %v2418 = vpop.f32.mrf.mxu0
    %v2419 = vadd.f32 %v2034, %v2418
    %v2420 = vpop.f32.mrf.mxu0
    %2421 = vdwg.mxu0
    %2422 = vmatpush.bf16.msra.mxu0 %v2260
    %2423 = vmatpush.bf16.msra.mxu0 %v2258
    %2424 = vmatpush.bf16.msra.mxu0 %v2256
    %2425 = vmatpush.bf16.msra.mxu0 %v2254
    %2426 = vmatpush.bf16.msra.mxu0 %v2252
    %2427 = vmatpush.bf16.msra.mxu0 %v2250
    %2428 = vmatpush.bf16.msra.mxu0 %v2248
    %2429 = vmatpush.bf16.msra.mxu0 %v2246
    %2430 = vmatmul.bf16.gmra.mxu0 %v1964
    %v2431 = vpop.f32.mrf.mxu0
    %v2432 = vadd.f32 %v2419, %v2431
    %v2433 = vpop.f32.mrf.mxu0
    %2434 = vdwg.mxu0
    %2435 = vmatpush.bf16.msra.mxu0 %v2276
    %2436 = vmatpush.bf16.msra.mxu0 %v2274
    %2437 = vmatpush.bf16.msra.mxu0 %v2272
    %2438 = vmatpush.bf16.msra.mxu0 %v2270
    %2439 = vmatpush.bf16.msra.mxu0 %v2268
    %2440 = vmatpush.bf16.msra.mxu0 %v2266
    %2441 = vmatpush.bf16.msra.mxu0 %v2264
    %2442 = vmatpush.bf16.msra.mxu0 %v2262
    %2443 = vmatmul.bf16.gmra.mxu0 %v1965
    %v2444 = vpop.f32.mrf.mxu0
    %v2445 = vadd.f32 %v2432, %v2444
    %v2446 = vpop.f32.mrf.mxu0
    %2447 = vdwg.mxu0
    %2448 = vmatpush.bf16.msra.mxu0 %v2292
    %2449 = vmatpush.bf16.msra.mxu0 %v2290
    %2450 = vmatpush.bf16.msra.mxu0 %v2288
    %2451 = vmatpush.bf16.msra.mxu0 %v2286
    %2452 = vmatpush.bf16.msra.mxu0 %v2284
    %2453 = vmatpush.bf16.msra.mxu0 %v2282
    %2454 = vmatpush.bf16.msra.mxu0 %v2280
    %2455 = vmatpush.bf16.msra.mxu0 %v2278
    %2456 = vmatmul.bf16.gmra.mxu0 %v1966
    %v2457 = vpop.f32.mrf.mxu0
    %v2458 = vadd.f32 %v2445, %v2457
    %v2459 = vpop.f32.mrf.mxu0
    %2460 = vdwg.mxu0
    %v2461 = vmax.f32 %v2406, 0.0
    %v2462 = vmax.f32 %v2458, 0.0
    %v2463 = vpack.c.bf16 %v2461, %v2461
    %v2464 = vpack.c.bf16 %v2462, %v2462
    %v2465 = vld [vmem:[#allocation13] sm:$0xff]
    %v2466 = vld [vmem:[#allocation13 + $0x8] sm:$0xff]
    %v2467 = vld [vmem:[#allocation13 + $0x10] sm:$0xff]
    %v2468 = vld [vmem:[#allocation13 + $0x18] sm:$0xff]
    %v2469 = vld [vmem:[#allocation13 + $0x20] sm:$0xff]
    %v2470 = vld [vmem:[#allocation13 + $0x28] sm:$0xff]
    %v2471 = vld [vmem:[#allocation13 + $0x30] sm:$0xff]
    %v2472 = vld [vmem:[#allocation13 + $0x38] sm:$0xff]
    %v2473 = vld [vmem:[#allocation13 + $0x40] sm:$0xff]
    %v2474 = vld [vmem:[#allocation13 + $0x48] sm:$0xff]
    %v2475 = vld [vmem:[#allocation13 + $0x50] sm:$0xff]
    %v2476 = vld [vmem:[#allocation13 + $0x58] sm:$0xff]
    %v2477 = vld [vmem:[#allocation13 + $0x60] sm:$0xff]
    %v2478 = vld [vmem:[#allocation13 + $0x68] sm:$0xff]
    %v2479 = vld [vmem:[#allocation13 + $0x70] sm:$0xff]
    %v2480 = vld [vmem:[#allocation13 + $0x78] sm:$0xff]
    %v2481 = vld [vmem:[#allocation13 + $0x80] sm:$0xff]
    %v2482 = vld [vmem:[#allocation13 + $0x88] sm:$0xff]
    %v2483 = vld [vmem:[#allocation13 + $0x90] sm:$0xff]
    %v2484 = vld [vmem:[#allocation13 + $0x98] sm:$0xff]
    %v2485 = vld [vmem:[#allocation13 + $0xa0] sm:$0xff]
    %v2486 = vld [vmem:[#allocation13 + $0xa8] sm:$0xff]
    %v2487 = vld [vmem:[#allocation13 + $0xb0] sm:$0xff]
    %v2488 = vld [vmem:[#allocation13 + $0xb8] sm:$0xff]
    %v2489 = vld [vmem:[#allocation13 + $0xc0] sm:$0xff]
    %v2490 = vld [vmem:[#allocation13 + $0xc8] sm:$0xff]
    %v2491 = vld [vmem:[#allocation13 + $0xd0] sm:$0xff]
    %v2492 = vld [vmem:[#allocation13 + $0xd8] sm:$0xff]
    %v2493 = vld [vmem:[#allocation13 + $0xe0] sm:$0xff]
    %v2494 = vld [vmem:[#allocation13 + $0xe8] sm:$0xff]
    %v2495 = vld [vmem:[#allocation13 + $0xf0] sm:$0xff]
    %v2496 = vld [vmem:[#allocation13 + $0xf8] sm:$0xff]
    %v2497 = vld [vmem:[#allocation14] sm:$0x3]
    %v2499 = vperm.slane %v2497, 0
    %v2500 = vperm.slane %v2497, 1
    %v2535 = vunpack.c.l.b16 %v2465
    %v2536 = vunpack.c.h.b16 %v2465
    %v2537 = vunpack.c.l.b16 %v2466
    %v2538 = vunpack.c.h.b16 %v2466
    %v2539 = vunpack.c.l.b16 %v2467
    %v2540 = vunpack.c.h.b16 %v2467
    %v2541 = vunpack.c.l.b16 %v2468
    %v2542 = vunpack.c.h.b16 %v2468
    %v2543 = vunpack.c.l.b16 %v2469
    %v2544 = vunpack.c.h.b16 %v2469
    %v2545 = vunpack.c.l.b16 %v2470
    %v2546 = vunpack.c.h.b16 %v2470
    %v2547 = vunpack.c.l.b16 %v2471
    %v2548 = vunpack.c.h.b16 %v2471
    %v2549 = vunpack.c.l.b16 %v2472
    %v2550 = vunpack.c.h.b16 %v2472
    %v2551 = vunpack.c.l.b16 %v2473
    %v2552 = vunpack.c.h.b16 %v2473
    %v2553 = vunpack.c.l.b16 %v2474
    %v2554 = vunpack.c.h.b16 %v2474
    %v2555 = vunpack.c.l.b16 %v2475
    %v2556 = vunpack.c.h.b16 %v2475
    %v2557 = vunpack.c.l.b16 %v2476
    %v2558 = vunpack.c.h.b16 %v2476
    %v2559 = vunpack.c.l.b16 %v2477
    %v2560 = vunpack.c.h.b16 %v2477
    %v2561 = vunpack.c.l.b16 %v2478
    %v2562 = vunpack.c.h.b16 %v2478
    %v2563 = vunpack.c.l.b16 %v2479
    %v2564 = vunpack.c.h.b16 %v2479
    %v2565 = vunpack.c.l.b16 %v2480
    %v2566 = vunpack.c.h.b16 %v2480
    %v2567 = vunpack.c.l.b16 %v2481
    %v2568 = vunpack.c.h.b16 %v2481
    %v2569 = vunpack.c.l.b16 %v2482
    %v2570 = vunpack.c.h.b16 %v2482
    %v2571 = vunpack.c.l.b16 %v2483
    %v2572 = vunpack.c.h.b16 %v2483
    %v2573 = vunpack.c.l.b16 %v2484
    %v2574 = vunpack.c.h.b16 %v2484
    %v2575 = vunpack.c.l.b16 %v2485
    %v2576 = vunpack.c.h.b16 %v2485
    %v2577 = vunpack.c.l.b16 %v2486
    %v2578 = vunpack.c.h.b16 %v2486
    %v2579 = vunpack.c.l.b16 %v2487
    %v2580 = vunpack.c.h.b16 %v2487
    %v2581 = vunpack.c.l.b16 %v2488
    %v2582 = vunpack.c.h.b16 %v2488
    %v2583 = vunpack.c.l.b16 %v2489
    %v2584 = vunpack.c.h.b16 %v2489
    %v2585 = vunpack.c.l.b16 %v2490
    %v2586 = vunpack.c.h.b16 %v2490
    %v2587 = vunpack.c.l.b16 %v2491
    %v2588 = vunpack.c.h.b16 %v2491
    %v2589 = vunpack.c.l.b16 %v2492
    %v2590 = vunpack.c.h.b16 %v2492
    %v2591 = vunpack.c.l.b16 %v2493
    %v2592 = vunpack.c.h.b16 %v2493
    %v2593 = vunpack.c.l.b16 %v2494
    %v2594 = vunpack.c.h.b16 %v2494
    %v2595 = vunpack.c.l.b16 %v2495
    %v2596 = vunpack.c.h.b16 %v2495
    %v2597 = vunpack.c.l.b16 %v2496
    %v2598 = vunpack.c.h.b16 %v2496
    %v2599 = vpack.c.b16 %v2537, %v2535
    %v2600 = vpack.c.b16 %v2538, %v2536
    %v2601 = vpack.c.b16 %v2541, %v2539
    %v2602 = vpack.c.b16 %v2542, %v2540
    %v2603 = vpack.c.b16 %v2545, %v2543
    %v2604 = vpack.c.b16 %v2546, %v2544
    %v2605 = vpack.c.b16 %v2549, %v2547
    %v2606 = vpack.c.b16 %v2550, %v2548
    %v2607 = vpack.c.b16 %v2553, %v2551
    %v2608 = vpack.c.b16 %v2554, %v2552
    %v2609 = vpack.c.b16 %v2557, %v2555
    %v2610 = vpack.c.b16 %v2558, %v2556
    %v2611 = vpack.c.b16 %v2561, %v2559
    %v2612 = vpack.c.b16 %v2562, %v2560
    %v2613 = vpack.c.b16 %v2565, %v2563
    %v2614 = vpack.c.b16 %v2566, %v2564
    %v2615 = vpack.c.b16 %v2569, %v2567
    %v2616 = vpack.c.b16 %v2570, %v2568
    %v2617 = vpack.c.b16 %v2573, %v2571
    %v2618 = vpack.c.b16 %v2574, %v2572
    %v2619 = vpack.c.b16 %v2577, %v2575
    %v2620 = vpack.c.b16 %v2578, %v2576
    %v2621 = vpack.c.b16 %v2581, %v2579
    %v2622 = vpack.c.b16 %v2582, %v2580
    %v2623 = vpack.c.b16 %v2585, %v2583
    %v2624 = vpack.c.b16 %v2586, %v2584
    %v2625 = vpack.c.b16 %v2589, %v2587
    %v2626 = vpack.c.b16 %v2590, %v2588
    %v2627 = vpack.c.b16 %v2593, %v2591
    %v2628 = vpack.c.b16 %v2594, %v2592
    %v2629 = vpack.c.b16 %v2597, %v2595
    %v2630 = vpack.c.b16 %v2598, %v2596
    %2663 = vmatpush.bf16.msra.mxu0 %v2613
    %2664 = vmatpush.bf16.msra.mxu0 %v2611
    %2665 = vmatpush.bf16.msra.mxu0 %v2609
    %2666 = vmatpush.bf16.msra.mxu0 %v2607
    %2667 = vmatpush.bf16.msra.mxu0 %v2605
    %2668 = vmatpush.bf16.msra.mxu0 %v2603
    %2669 = vmatpush.bf16.msra.mxu0 %v2601
    %2670 = vmatpush.bf16.msra.mxu0 %v2599
    %2671 = vmatmul.bf16.gmra.mxu0 %v2463
    %v2672 = vpop.f32.mrf.mxu0
    %v2673 = vadd.f32 %v2499, %v2672
    %v2674 = vpop.f32.mrf.mxu0
    %2675 = vdwg.mxu0
    %2676 = vmatpush.bf16.msra.mxu0 %v2629
    %2677 = vmatpush.bf16.msra.mxu0 %v2627
    %2678 = vmatpush.bf16.msra.mxu0 %v2625
    %2679 = vmatpush.bf16.msra.mxu0 %v2623
    %2680 = vmatpush.bf16.msra.mxu0 %v2621
    %2681 = vmatpush.bf16.msra.mxu0 %v2619
    %2682 = vmatpush.bf16.msra.mxu0 %v2617
    %2683 = vmatpush.bf16.msra.mxu0 %v2615
    %2684 = vmatmul.bf16.gmra.mxu0 %v2464
    %v2685 = vpop.f32.mrf.mxu0
    %v2686 = vadd.f32 %v2673, %v2685
    %v2687 = vpop.f32.mrf.mxu0
    %2688 = vdwg.mxu0
    %2689 = vmatpush.bf16.msra.mxu0 %v2614
    %2690 = vmatpush.bf16.msra.mxu0 %v2612
    %2691 = vmatpush.bf16.msra.mxu0 %v2610
    %2692 = vmatpush.bf16.msra.mxu0 %v2608
    %2693 = vmatpush.bf16.msra.mxu0 %v2606
    %2694 = vmatpush.bf16.msra.mxu0 %v2604
    %2695 = vmatpush.bf16.msra.mxu0 %v2602
    %2696 = vmatpush.bf16.msra.mxu0 %v2600
    %2697 = vmatmul.bf16.gmra.mxu0 %v2463
    %v2698 = vpop.f32.mrf.mxu0
    %v2699 = vadd.f32 %v2500, %v2698
    %v2700 = vpop.f32.mrf.mxu0
    %2701 = vdwg.mxu0
    %2702 = vmatpush.bf16.msra.mxu0 %v2630
    %2703 = vmatpush.bf16.msra.mxu0 %v2628
    %2704 = vmatpush.bf16.msra.mxu0 %v2626
    %2705 = vmatpush.bf16.msra.mxu0 %v2624
    %2706 = vmatpush.bf16.msra.mxu0 %v2622
    %2707 = vmatpush.bf16.msra.mxu0 %v2620
    %2708 = vmatpush.bf16.msra.mxu0 %v2618
    %2709 = vmatpush.bf16.msra.mxu0 %v2616
    %2710 = vmatmul.bf16.gmra.mxu0 %v2464
    %v2711 = vpop.f32.mrf.mxu0
    %v2712 = vadd.f32 %v2699, %v2711
    %v2713 = vpop.f32.mrf.mxu0
    %2714 = vdwg.mxu0
    %v2715 = vmul.f32 %v2712, 0.5
    %v2716 = vmul.f32 %v2715, 1.442695
    %v2717 = vpow.pop %v2716
    %v2718 = vld [vmem:[#allocation5] sm:$0xff]
    %v2719 = vmul.f32 %v2718, %v2717
    %v2720 = vadd.f32 %v2719, %v2686
    %v2721 = vpack.c.bf16 %v2720, %v2720
    %v2722 = vld [vmem:[#allocation16] sm:$0xff]
    %v2723 = vld [vmem:[#allocation16 + $0x8] sm:$0xff]
    %v2724 = vld [vmem:[#allocation16 + $0x10] sm:$0xff]
    %v2725 = vld [vmem:[#allocation16 + $0x18] sm:$0xff]
    %v2726 = vld [vmem:[#allocation16 + $0x20] sm:$0xff]
    %v2727 = vld [vmem:[#allocation16 + $0x28] sm:$0xff]
    %v2728 = vld [vmem:[#allocation16 + $0x30] sm:$0xff]
    %v2729 = vld [vmem:[#allocation16 + $0x38] sm:$0xff]
    %v2730 = vld [vmem:[#allocation16 + $0x40] sm:$0xff]
    %v2731 = vld [vmem:[#allocation16 + $0x48] sm:$0xff]
    %v2732 = vld [vmem:[#allocation16 + $0x50] sm:$0xff]
    %v2733 = vld [vmem:[#allocation16 + $0x58] sm:$0xff]
    %v2734 = vld [vmem:[#allocation16 + $0x60] sm:$0xff]
    %v2735 = vld [vmem:[#allocation16 + $0x68] sm:$0xff]
    %v2736 = vld [vmem:[#allocation16 + $0x70] sm:$0xff]
    %v2737 = vld [vmem:[#allocation16 + $0x78] sm:$0xff]
    %v2738 = vld [vmem:[#allocation17] sm:$0x3]
    %v2740 = vperm.slane %v2738, 0
    %v2741 = vperm.slane %v2738, 1
    %v2760 = vunpack.c.l.b16 %v2722
    %v2761 = vunpack.c.h.b16 %v2722
    %v2762 = vunpack.c.l.b16 %v2723
    %v2763 = vunpack.c.h.b16 %v2723
    %v2764 = vunpack.c.l.b16 %v2724
    %v2765 = vunpack.c.h.b16 %v2724
    %v2766 = vunpack.c.l.b16 %v2725
    %v2767 = vunpack.c.h.b16 %v2725
    %v2768 = vunpack.c.l.b16 %v2726
    %v2769 = vunpack.c.h.b16 %v2726
    %v2770 = vunpack.c.l.b16 %v2727
    %v2771 = vunpack.c.h.b16 %v2727
    %v2772 = vunpack.c.l.b16 %v2728
    %v2773 = vunpack.c.h.b16 %v2728
    %v2774 = vunpack.c.l.b16 %v2729
    %v2775 = vunpack.c.h.b16 %v2729
    %v2776 = vunpack.c.l.b16 %v2730
    %v2777 = vunpack.c.h.b16 %v2730
    %v2778 = vunpack.c.l.b16 %v2731
    %v2779 = vunpack.c.h.b16 %v2731
    %v2780 = vunpack.c.l.b16 %v2732
    %v2781 = vunpack.c.h.b16 %v2732
    %v2782 = vunpack.c.l.b16 %v2733
    %v2783 = vunpack.c.h.b16 %v2733
    %v2784 = vunpack.c.l.b16 %v2734
    %v2785 = vunpack.c.h.b16 %v2734
    %v2786 = vunpack.c.l.b16 %v2735
    %v2787 = vunpack.c.h.b16 %v2735
    %v2788 = vunpack.c.l.b16 %v2736
    %v2789 = vunpack.c.h.b16 %v2736
    %v2790 = vunpack.c.l.b16 %v2737
    %v2791 = vunpack.c.h.b16 %v2737
    %v2792 = vpack.c.b16 %v2762, %v2760
    %v2793 = vpack.c.b16 %v2763, %v2761
    %v2794 = vpack.c.b16 %v2766, %v2764
    %v2795 = vpack.c.b16 %v2767, %v2765
    %v2796 = vpack.c.b16 %v2770, %v2768
    %v2797 = vpack.c.b16 %v2771, %v2769
    %v2798 = vpack.c.b16 %v2774, %v2772
    %v2799 = vpack.c.b16 %v2775, %v2773
    %v2800 = vpack.c.b16 %v2778, %v2776
    %v2801 = vpack.c.b16 %v2779, %v2777
    %v2802 = vpack.c.b16 %v2782, %v2780
    %v2803 = vpack.c.b16 %v2783, %v2781
    %v2804 = vpack.c.b16 %v2786, %v2784
    %v2805 = vpack.c.b16 %v2787, %v2785
    %v2806 = vpack.c.b16 %v2790, %v2788
    %v2807 = vpack.c.b16 %v2791, %v2789
    %2824 = vmatpush.bf16.msra.mxu0 %v2806
    %2825 = vmatpush.bf16.msra.mxu0 %v2804
    %2826 = vmatpush.bf16.msra.mxu0 %v2802
    %2827 = vmatpush.bf16.msra.mxu0 %v2800
    %2828 = vmatpush.bf16.msra.mxu0 %v2798
    %2829 = vmatpush.bf16.msra.mxu0 %v2796
    %2830 = vmatpush.bf16.msra.mxu0 %v2794
    %2831 = vmatpush.bf16.msra.mxu0 %v2792
    %2832 = vmatmul.bf16.gmra.mxu0 %v2721
    %v2833 = vpop.f32.mrf.mxu0
    %v2834 = vadd.f32 %v2740, %v2833
    %v2835 = vpop.f32.mrf.mxu0
    %2836 = vdwg.mxu0
    %2837 = vmatpush.bf16.msra.mxu0 %v2807
    %2838 = vmatpush.bf16.msra.mxu0 %v2805
    %2839 = vmatpush.bf16.msra.mxu0 %v2803
    %2840 = vmatpush.bf16.msra.mxu0 %v2801
    %2841 = vmatpush.bf16.msra.mxu0 %v2799
    %2842 = vmatpush.bf16.msra.mxu0 %v2797
    %2843 = vmatpush.bf16.msra.mxu0 %v2795
    %2844 = vmatpush.bf16.msra.mxu0 %v2793
    %2845 = vmatmul.bf16.gmra.mxu0 %v2721
    %v2846 = vpop.f32.mrf.mxu0
    %v2847 = vadd.f32 %v2741, %v2846
    %v2848 = vpop.f32.mrf.mxu0
    %2849 = vdwg.mxu0
    %v2850 = vmax.f32 %v2834, 0.0
    %v2851 = vmax.f32 %v2847, 0.0
    %v2852 = vpack.c.bf16 %v2850, %v2850
    %v2853 = vpack.c.bf16 %v2851, %v2851
    %v2854 = vld [vmem:[#allocation19] sm:$0xff]
    %v2855 = vld [vmem:[#allocation19 + $0x8] sm:$0xff]
    %v2856 = vld [vmem:[#allocation19 + $0x10] sm:$0xff]
    %v2857 = vld [vmem:[#allocation19 + $0x18] sm:$0xff]
    %v2858 = vld [vmem:[#allocation19 + $0x20] sm:$0xff]
    %v2859 = vld [vmem:[#allocation19 + $0x28] sm:$0xff]
    %v2860 = vld [vmem:[#allocation19 + $0x30] sm:$0xff]
    %v2861 = vld [vmem:[#allocation19 + $0x38] sm:$0xff]
    %v2862 = vld [vmem:[#allocation19 + $0x40] sm:$0xff]
    %v2863 = vld [vmem:[#allocation19 + $0x48] sm:$0xff]
    %v2864 = vld [vmem:[#allocation19 + $0x50] sm:$0xff]
    %v2865 = vld [vmem:[#allocation19 + $0x58] sm:$0xff]
    %v2866 = vld [vmem:[#allocation19 + $0x60] sm:$0xff]
    %v2867 = vld [vmem:[#allocation19 + $0x68] sm:$0xff]
    %v2868 = vld [vmem:[#allocation19 + $0x70] sm:$0xff]
    %v2869 = vld [vmem:[#allocation19 + $0x78] sm:$0xff]
    %v2870 = vld [vmem:[#allocation19 + $0x80] sm:$0xff]
    %v2871 = vld [vmem:[#allocation19 + $0x88] sm:$0xff]
    %v2872 = vld [vmem:[#allocation19 + $0x90] sm:$0xff]
    %v2873 = vld [vmem:[#allocation19 + $0x98] sm:$0xff]
    %v2874 = vld [vmem:[#allocation19 + $0xa0] sm:$0xff]
    %v2875 = vld [vmem:[#allocation19 + $0xa8] sm:$0xff]
    %v2876 = vld [vmem:[#allocation19 + $0xb0] sm:$0xff]
    %v2877 = vld [vmem:[#allocation19 + $0xb8] sm:$0xff]
    %v2878 = vld [vmem:[#allocation19 + $0xc0] sm:$0xff]
    %v2879 = vld [vmem:[#allocation19 + $0xc8] sm:$0xff]
    %v2880 = vld [vmem:[#allocation19 + $0xd0] sm:$0xff]
    %v2881 = vld [vmem:[#allocation19 + $0xd8] sm:$0xff]
    %v2882 = vld [vmem:[#allocation19 + $0xe0] sm:$0xff]
    %v2883 = vld [vmem:[#allocation19 + $0xe8] sm:$0xff]
    %v2884 = vld [vmem:[#allocation19 + $0xf0] sm:$0xff]
    %v2885 = vld [vmem:[#allocation19 + $0xf8] sm:$0xff]
    %v2886 = vld [vmem:[#allocation19 + $0x100] sm:$0xff]
    %v2887 = vld [vmem:[#allocation19 + $0x108] sm:$0xff]
    %v2888 = vld [vmem:[#allocation19 + $0x110] sm:$0xff]
    %v2889 = vld [vmem:[#allocation19 + $0x118] sm:$0xff]
    %v2890 = vld [vmem:[#allocation19 + $0x120] sm:$0xff]
    %v2891 = vld [vmem:[#allocation19 + $0x128] sm:$0xff]
    %v2892 = vld [vmem:[#allocation19 + $0x130] sm:$0xff]
    %v2893 = vld [vmem:[#allocation19 + $0x138] sm:$0xff]
    %v2894 = vld [vmem:[#allocation19 + $0x140] sm:$0xff]
    %v2895 = vld [vmem:[#allocation19 + $0x148] sm:$0xff]
    %v2896 = vld [vmem:[#allocation19 + $0x150] sm:$0xff]
    %v2897 = vld [vmem:[#allocation19 + $0x158] sm:$0xff]
    %v2898 = vld [vmem:[#allocation19 + $0x160] sm:$0xff]
    %v2899 = vld [vmem:[#allocation19 + $0x168] sm:$0xff]
    %v2900 = vld [vmem:[#allocation19 + $0x170] sm:$0xff]
    %v2901 = vld [vmem:[#allocation19 + $0x178] sm:$0xff]
    %v2902 = vld [vmem:[#allocation19 + $0x180] sm:$0xff]
    %v2903 = vld [vmem:[#allocation19 + $0x188] sm:$0xff]
    %v2904 = vld [vmem:[#allocation19 + $0x190] sm:$0xff]
    %v2905 = vld [vmem:[#allocation19 + $0x198] sm:$0xff]
    %v2906 = vld [vmem:[#allocation19 + $0x1a0] sm:$0xff]
    %v2907 = vld [vmem:[#allocation19 + $0x1a8] sm:$0xff]
    %v2908 = vld [vmem:[#allocation19 + $0x1b0] sm:$0xff]
    %v2909 = vld [vmem:[#allocation19 + $0x1b8] sm:$0xff]
    %v2910 = vld [vmem:[#allocation19 + $0x1c0] sm:$0xff]
    %v2911 = vld [vmem:[#allocation19 + $0x1c8] sm:$0xff]
    %v2912 = vld [vmem:[#allocation19 + $0x1d0] sm:$0xff]
    %v2913 = vld [vmem:[#allocation19 + $0x1d8] sm:$0xff]
    %v2914 = vld [vmem:[#allocation19 + $0x1e0] sm:$0xff]
    %v2915 = vld [vmem:[#allocation19 + $0x1e8] sm:$0xff]
    %v2916 = vld [vmem:[#allocation19 + $0x1f0] sm:$0xff]
    %v2917 = vld [vmem:[#allocation19 + $0x1f8] sm:$0xff]
    %v2918 = vld [vmem:[%s11] sm:$0xf]
    %v2920 = vperm.slane %v2918, 0
    %v2921 = vperm.slane %v2918, 1
    %v2922 = vperm.slane %v2918, 2
    %v2923 = vperm.slane %v2918, 3
    %v2992 = vunpack.c.l.b16 %v2854
    %v2993 = vunpack.c.h.b16 %v2854
    %v2994 = vunpack.c.l.b16 %v2855
    %v2995 = vunpack.c.h.b16 %v2855
    %v2996 = vunpack.c.l.b16 %v2856
    %v2997 = vunpack.c.h.b16 %v2856
    %v2998 = vunpack.c.l.b16 %v2857
    %v2999 = vunpack.c.h.b16 %v2857
    %v3000 = vunpack.c.l.b16 %v2858
    %v3001 = vunpack.c.h.b16 %v2858
    %v3002 = vunpack.c.l.b16 %v2859
    %v3003 = vunpack.c.h.b16 %v2859
    %v3004 = vunpack.c.l.b16 %v2860
    %v3005 = vunpack.c.h.b16 %v2860
    %v3006 = vunpack.c.l.b16 %v2861
    %v3007 = vunpack.c.h.b16 %v2861
    %v3008 = vunpack.c.l.b16 %v2862
    %v3009 = vunpack.c.h.b16 %v2862
    %v3010 = vunpack.c.l.b16 %v2863
    %v3011 = vunpack.c.h.b16 %v2863
    %v3012 = vunpack.c.l.b16 %v2864
    %v3013 = vunpack.c.h.b16 %v2864
    %v3014 = vunpack.c.l.b16 %v2865
    %v3015 = vunpack.c.h.b16 %v2865
    %v3016 = vunpack.c.l.b16 %v2866
    %v3017 = vunpack.c.h.b16 %v2866
    %v3018 = vunpack.c.l.b16 %v2867
    %v3019 = vunpack.c.h.b16 %v2867
    %v3020 = vunpack.c.l.b16 %v2868
    %v3021 = vunpack.c.h.b16 %v2868
    %v3022 = vunpack.c.l.b16 %v2869
    %v3023 = vunpack.c.h.b16 %v2869
    %v3024 = vunpack.c.l.b16 %v2870
    %v3025 = vunpack.c.h.b16 %v2870
    %v3026 = vunpack.c.l.b16 %v2871
    %v3027 = vunpack.c.h.b16 %v2871
    %v3028 = vunpack.c.l.b16 %v2872
    %v3029 = vunpack.c.h.b16 %v2872
    %v3030 = vunpack.c.l.b16 %v2873
    %v3031 = vunpack.c.h.b16 %v2873
    %v3032 = vunpack.c.l.b16 %v2874
    %v3033 = vunpack.c.h.b16 %v2874
    %v3034 = vunpack.c.l.b16 %v2875
    %v3035 = vunpack.c.h.b16 %v2875
    %v3036 = vunpack.c.l.b16 %v2876
    %v3037 = vunpack.c.h.b16 %v2876
    %v3038 = vunpack.c.l.b16 %v2877
    %v3039 = vunpack.c.h.b16 %v2877
    %v3040 = vunpack.c.l.b16 %v2878
    %v3041 = vunpack.c.h.b16 %v2878
    %v3042 = vunpack.c.l.b16 %v2879
    %v3043 = vunpack.c.h.b16 %v2879
    %v3044 = vunpack.c.l.b16 %v2880
    %v3045 = vunpack.c.h.b16 %v2880
    %v3046 = vunpack.c.l.b16 %v2881
    %v3047 = vunpack.c.h.b16 %v2881
    %v3048 = vunpack.c.l.b16 %v2882
    %v3049 = vunpack.c.h.b16 %v2882
    %v3050 = vunpack.c.l.b16 %v2883
    %v3051 = vunpack.c.h.b16 %v2883
    %v3052 = vunpack.c.l.b16 %v2884
    %v3053 = vunpack.c.h.b16 %v2884
    %v3054 = vunpack.c.l.b16 %v2885
    %v3055 = vunpack.c.h.b16 %v2885
    %v3056 = vunpack.c.l.b16 %v2886
    %v3057 = vunpack.c.h.b16 %v2886
    %v3058 = vunpack.c.l.b16 %v2887
    %v3059 = vunpack.c.h.b16 %v2887
    %v3060 = vunpack.c.l.b16 %v2888
    %v3061 = vunpack.c.h.b16 %v2888
    %v3062 = vunpack.c.l.b16 %v2889
    %v3063 = vunpack.c.h.b16 %v2889
    %v3064 = vunpack.c.l.b16 %v2890
    %v3065 = vunpack.c.h.b16 %v2890
    %v3066 = vunpack.c.l.b16 %v2891
    %v3067 = vunpack.c.h.b16 %v2891
    %v3068 = vunpack.c.l.b16 %v2892
    %v3069 = vunpack.c.h.b16 %v2892
    %v3070 = vunpack.c.l.b16 %v2893
    %v3071 = vunpack.c.h.b16 %v2893
    %v3072 = vunpack.c.l.b16 %v2894
    %v3073 = vunpack.c.h.b16 %v2894
    %v3074 = vunpack.c.l.b16 %v2895
    %v3075 = vunpack.c.h.b16 %v2895
    %v3076 = vunpack.c.l.b16 %v2896
    %v3077 = vunpack.c.h.b16 %v2896
    %v3078 = vunpack.c.l.b16 %v2897
    %v3079 = vunpack.c.h.b16 %v2897
    %v3080 = vunpack.c.l.b16 %v2898
    %v3081 = vunpack.c.h.b16 %v2898
    %v3082 = vunpack.c.l.b16 %v2899
    %v3083 = vunpack.c.h.b16 %v2899
    %v3084 = vunpack.c.l.b16 %v2900
    %v3085 = vunpack.c.h.b16 %v2900
    %v3086 = vunpack.c.l.b16 %v2901
    %v3087 = vunpack.c.h.b16 %v2901
    %v3088 = vunpack.c.l.b16 %v2902
    %v3089 = vunpack.c.h.b16 %v2902
    %v3090 = vunpack.c.l.b16 %v2903
    %v3091 = vunpack.c.h.b16 %v2903
    %v3092 = vunpack.c.l.b16 %v2904
    %v3093 = vunpack.c.h.b16 %v2904
    %v3094 = vunpack.c.l.b16 %v2905
    %v3095 = vunpack.c.h.b16 %v2905
    %v3096 = vunpack.c.l.b16 %v2906
    %v3097 = vunpack.c.h.b16 %v2906
    %v3098 = vunpack.c.l.b16 %v2907
    %v3099 = vunpack.c.h.b16 %v2907
    %v3100 = vunpack.c.l.b16 %v2908
    %v3101 = vunpack.c.h.b16 %v2908
    %v3102 = vunpack.c.l.b16 %v2909
    %v3103 = vunpack.c.h.b16 %v2909
    %v3104 = vunpack.c.l.b16 %v2910
    %v3105 = vunpack.c.h.b16 %v2910
    %v3106 = vunpack.c.l.b16 %v2911
    %v3107 = vunpack.c.h.b16 %v2911
    %v3108 = vunpack.c.l.b16 %v2912
    %v3109 = vunpack.c.h.b16 %v2912
    %v3110 = vunpack.c.l.b16 %v2913
    %v3111 = vunpack.c.h.b16 %v2913
    %v3112 = vunpack.c.l.b16 %v2914
    %v3113 = vunpack.c.h.b16 %v2914
    %v3114 = vunpack.c.l.b16 %v2915
    %v3115 = vunpack.c.h.b16 %v2915
    %v3116 = vunpack.c.l.b16 %v2916
    %v3117 = vunpack.c.h.b16 %v2916
    %v3118 = vunpack.c.l.b16 %v2917
    %v3119 = vunpack.c.h.b16 %v2917
    %v3120 = vpack.c.b16 %v2996, %v2992
    %v3121 = vpack.c.b16 %v2997, %v2993
    %v3122 = vpack.c.b16 %v2998, %v2994
    %v3123 = vpack.c.b16 %v2999, %v2995
    %v3124 = vpack.c.b16 %v3004, %v3000
    %v3125 = vpack.c.b16 %v3005, %v3001
    %v3126 = vpack.c.b16 %v3006, %v3002
    %v3127 = vpack.c.b16 %v3007, %v3003
    %v3128 = vpack.c.b16 %v3012, %v3008
    %v3129 = vpack.c.b16 %v3013, %v3009
    %v3130 = vpack.c.b16 %v3014, %v3010
    %v3131 = vpack.c.b16 %v3015, %v3011
    %v3132 = vpack.c.b16 %v3020, %v3016
    %v3133 = vpack.c.b16 %v3021, %v3017
    %v3134 = vpack.c.b16 %v3022, %v3018
    %v3135 = vpack.c.b16 %v3023, %v3019
    %v3136 = vpack.c.b16 %v3028, %v3024
    %v3137 = vpack.c.b16 %v3029, %v3025
    %v3138 = vpack.c.b16 %v3030, %v3026
    %v3139 = vpack.c.b16 %v3031, %v3027
    %v3140 = vpack.c.b16 %v3036, %v3032
    %v3141 = vpack.c.b16 %v3037, %v3033
    %v3142 = vpack.c.b16 %v3038, %v3034
    %v3143 = vpack.c.b16 %v3039, %v3035
    %v3144 = vpack.c.b16 %v3044, %v3040
    %v3145 = vpack.c.b16 %v3045, %v3041
    %v3146 = vpack.c.b16 %v3046, %v3042
    %v3147 = vpack.c.b16 %v3047, %v3043
    %v3148 = vpack.c.b16 %v3052, %v3048
    %v3149 = vpack.c.b16 %v3053, %v3049
    %v3150 = vpack.c.b16 %v3054, %v3050
    %v3151 = vpack.c.b16 %v3055, %v3051
    %v3152 = vpack.c.b16 %v3060, %v3056
    %v3153 = vpack.c.b16 %v3061, %v3057
    %v3154 = vpack.c.b16 %v3062, %v3058
    %v3155 = vpack.c.b16 %v3063, %v3059
    %v3156 = vpack.c.b16 %v3068, %v3064
    %v3157 = vpack.c.b16 %v3069, %v3065
    %v3158 = vpack.c.b16 %v3070, %v3066
    %v3159 = vpack.c.b16 %v3071, %v3067
    %v3160 = vpack.c.b16 %v3076, %v3072
    %v3161 = vpack.c.b16 %v3077, %v3073
    %v3162 = vpack.c.b16 %v3078, %v3074
    %v3163 = vpack.c.b16 %v3079, %v3075
    %v3164 = vpack.c.b16 %v3084, %v3080
    %v3165 = vpack.c.b16 %v3085, %v3081
    %v3166 = vpack.c.b16 %v3086, %v3082
    %v3167 = vpack.c.b16 %v3087, %v3083
    %v3168 = vpack.c.b16 %v3092, %v3088
    %v3169 = vpack.c.b16 %v3093, %v3089
    %v3170 = vpack.c.b16 %v3094, %v3090
    %v3171 = vpack.c.b16 %v3095, %v3091
    %v3172 = vpack.c.b16 %v3100, %v3096
    %v3173 = vpack.c.b16 %v3101, %v3097
    %v3174 = vpack.c.b16 %v3102, %v3098
    %v3175 = vpack.c.b16 %v3103, %v3099
    %v3176 = vpack.c.b16 %v3108, %v3104
    %v3177 = vpack.c.b16 %v3109, %v3105
    %v3178 = vpack.c.b16 %v3110, %v3106
    %v3179 = vpack.c.b16 %v3111, %v3107
    %v3180 = vpack.c.b16 %v3116, %v3112
    %v3181 = vpack.c.b16 %v3117, %v3113
    %v3182 = vpack.c.b16 %v3118, %v3114
    %v3183 = vpack.c.b16 %v3119, %v3115
    %3248 = vmatpush.bf16.msra.mxu0 %v3148
    %3249 = vmatpush.bf16.msra.mxu0 %v3144
    %3250 = vmatpush.bf16.msra.mxu0 %v3140
    %3251 = vmatpush.bf16.msra.mxu0 %v3136
    %3252 = vmatpush.bf16.msra.mxu0 %v3132
    %3253 = vmatpush.bf16.msra.mxu0 %v3128
    %3254 = vmatpush.bf16.msra.mxu0 %v3124
    %3255 = vmatpush.bf16.msra.mxu0 %v3120
    %3256 = vmatmul.bf16.gmra.mxu0 %v2852
    %v3257 = vpop.f32.mrf.mxu0
    %v3258 = vadd.f32 %v2920, %v3257
    %v3259 = vpop.f32.mrf.mxu0
    %3260 = vdwg.mxu0
    %3261 = vmatpush.bf16.msra.mxu0 %v3180
    %3262 = vmatpush.bf16.msra.mxu0 %v3176
    %3263 = vmatpush.bf16.msra.mxu0 %v3172
    %3264 = vmatpush.bf16.msra.mxu0 %v3168
    %3265 = vmatpush.bf16.msra.mxu0 %v3164
    %3266 = vmatpush.bf16.msra.mxu0 %v3160
    %3267 = vmatpush.bf16.msra.mxu0 %v3156
    %3268 = vmatpush.bf16.msra.mxu0 %v3152
    %3269 = vmatmul.bf16.gmra.mxu0 %v2853
    %v3270 = vpop.f32.mrf.mxu0
    %v3271 = vadd.f32 %v3258, %v3270
    %v3272 = vpop.f32.mrf.mxu0
    %3273 = vdwg.mxu0
    %3274 = vmatpush.bf16.msra.mxu0 %v3149
    %3275 = vmatpush.bf16.msra.mxu0 %v3145
    %3276 = vmatpush.bf16.msra.mxu0 %v3141
    %3277 = vmatpush.bf16.msra.mxu0 %v3137
    %3278 = vmatpush.bf16.msra.mxu0 %v3133
    %3279 = vmatpush.bf16.msra.mxu0 %v3129
    %3280 = vmatpush.bf16.msra.mxu0 %v3125
    %3281 = vmatpush.bf16.msra.mxu0 %v3121
    %3282 = vmatmul.bf16.gmra.mxu0 %v2852
    %v3283 = vpop.f32.mrf.mxu0
    %v3284 = vadd.f32 %v2921, %v3283
    %v3285 = vpop.f32.mrf.mxu0
    %3286 = vdwg.mxu0
    %3287 = vmatpush.bf16.msra.mxu0 %v3181
    %3288 = vmatpush.bf16.msra.mxu0 %v3177
    %3289 = vmatpush.bf16.msra.mxu0 %v3173
    %3290 = vmatpush.bf16.msra.mxu0 %v3169
    %3291 = vmatpush.bf16.msra.mxu0 %v3165
    %3292 = vmatpush.bf16.msra.mxu0 %v3161
    %3293 = vmatpush.bf16.msra.mxu0 %v3157
    %3294 = vmatpush.bf16.msra.mxu0 %v3153
    %3295 = vmatmul.bf16.gmra.mxu0 %v2853
    %v3296 = vpop.f32.mrf.mxu0
    %v3297 = vadd.f32 %v3284, %v3296
    %v3298 = vpop.f32.mrf.mxu0
    %3299 = vdwg.mxu0
    %3300 = vmatpush.bf16.msra.mxu0 %v3150
    %3301 = vmatpush.bf16.msra.mxu0 %v3146
    %3302 = vmatpush.bf16.msra.mxu0 %v3142
    %3303 = vmatpush.bf16.msra.mxu0 %v3138
    %3304 = vmatpush.bf16.msra.mxu0 %v3134
    %3305 = vmatpush.bf16.msra.mxu0 %v3130
    %3306 = vmatpush.bf16.msra.mxu0 %v3126
    %3307 = vmatpush.bf16.msra.mxu0 %v3122
    %3308 = vmatmul.bf16.gmra.mxu0 %v2852
    %v3309 = vpop.f32.mrf.mxu0
    %v3310 = vadd.f32 %v2922, %v3309
    %v3311 = vpop.f32.mrf.mxu0
    %3312 = vdwg.mxu0
    %3313 = vmatpush.bf16.msra.mxu0 %v3182
    %3314 = vmatpush.bf16.msra.mxu0 %v3178
    %3315 = vmatpush.bf16.msra.mxu0 %v3174
    %3316 = vmatpush.bf16.msra.mxu0 %v3170
    %3317 = vmatpush.bf16.msra.mxu0 %v3166
    %3318 = vmatpush.bf16.msra.mxu0 %v3162
    %3319 = vmatpush.bf16.msra.mxu0 %v3158
    %3320 = vmatpush.bf16.msra.mxu0 %v3154
    %3321 = vmatmul.bf16.gmra.mxu0 %v2853
    %v3322 = vpop.f32.mrf.mxu0
    %v3323 = vadd.f32 %v3310, %v3322
    %v3324 = vpop.f32.mrf.mxu0
    %3325 = vdwg.mxu0
    %3326 = vmatpush.bf16.msra.mxu0 %v3151
    %3327 = vmatpush.bf16.msra.mxu0 %v3147
    %3328 = vmatpush.bf16.msra.mxu0 %v3143
    %3329 = vmatpush.bf16.msra.mxu0 %v3139
    %3330 = vmatpush.bf16.msra.mxu0 %v3135
    %3331 = vmatpush.bf16.msra.mxu0 %v3131
    %3332 = vmatpush.bf16.msra.mxu0 %v3127
    %3333 = vmatpush.bf16.msra.mxu0 %v3123
    %3334 = vmatmul.bf16.gmra.mxu0 %v2852
    %v3335 = vpop.f32.mrf.mxu0
    %v3336 = vadd.f32 %v2923, %v3335
    %v3337 = vpop.f32.mrf.mxu0
    %3338 = vdwg.mxu0
    %3339 = vmatpush.bf16.msra.mxu0 %v3183
    %3340 = vmatpush.bf16.msra.mxu0 %v3179
    %3341 = vmatpush.bf16.msra.mxu0 %v3175
    %3342 = vmatpush.bf16.msra.mxu0 %v3171
    %3343 = vmatpush.bf16.msra.mxu0 %v3167
    %3344 = vmatpush.bf16.msra.mxu0 %v3163
    %3345 = vmatpush.bf16.msra.mxu0 %v3159
    %3346 = vmatpush.bf16.msra.mxu0 %v3155
    %3347 = vmatmul.bf16.gmra.mxu0 %v2853
    %v3348 = vpop.f32.mrf.mxu0
    %v3349 = vadd.f32 %v3336, %v3348
    %v3350 = vpop.f32.mrf.mxu0
    %3351 = vdwg.mxu0
    %v3352 = vmax.f32 %v3271, 0.0
    %v3353 = vmax.f32 %v3297, 0.0
    %v3354 = vmax.f32 %v3323, 0.0
    %v3355 = vmax.f32 %v3349, 0.0
    %v3356 = vpack.c.bf16 %v3352, %v3352
    %v3357 = vpack.c.bf16 %v3353, %v3353
    %v3358 = vpack.c.bf16 %v3354, %v3354
    %v3359 = vpack.c.bf16 %v3355, %v3355
    %v3360 = vld [vmem:[#allocation20] sm:$0xff]
    %v3361 = vld [vmem:[#allocation20 + $0x8] sm:$0xff]
    %v3362 = vld [vmem:[#allocation20 + $0x10] sm:$0xff]
    %v3363 = vld [vmem:[#allocation20 + $0x18] sm:$0xf]
    %v3364 = vld [vmem:[#allocation20 + $0x1c] sm:$0xff]
    %v3365 = vld [vmem:[#allocation20 + $0x24] sm:$0xff]
    %v3366 = vld [vmem:[#allocation20 + $0x2c] sm:$0xff]
    %v3367 = vld [vmem:[#allocation20 + $0x34] sm:$0xf]
    %v3368 = vld [vmem:[#allocation20 + $0x38] sm:$0xff]
    %v3369 = vld [vmem:[#allocation20 + $0x40] sm:$0xff]
    %v3370 = vld [vmem:[#allocation20 + $0x48] sm:$0xff]
    %v3371 = vld [vmem:[#allocation20 + $0x50] sm:$0xf]
    %v3372 = vld [vmem:[#allocation20 + $0x54] sm:$0xff]
    %v3373 = vld [vmem:[#allocation20 + $0x5c] sm:$0xff]
    %v3374 = vld [vmem:[#allocation20 + $0x64] sm:$0xff]
    %v3375 = vld [vmem:[#allocation20 + $0x6c] sm:$0xf]
    %v3376 = vld [vmem:[#allocation20 + $0x70] sm:$0xff]
    %v3377 = vld [vmem:[#allocation20 + $0x78] sm:$0xff]
    %v3378 = vld [vmem:[#allocation20 + $0x80] sm:$0xff]
    %v3379 = vld [vmem:[#allocation20 + $0x88] sm:$0xf]
    %v3380 = vld [vmem:[#allocation20 + $0x8c] sm:$0xff]
    %v3381 = vld [vmem:[#allocation20 + $0x94] sm:$0xff]
    %v3382 = vld [vmem:[#allocation20 + $0x9c] sm:$0xff]
    %v3383 = vld [vmem:[#allocation20 + $0xa4] sm:$0xf]
    %v3384 = vld [vmem:[#allocation20 + $0xa8] sm:$0xff]
    %v3385 = vld [vmem:[#allocation20 + $0xb0] sm:$0xff]
    %v3386 = vld [vmem:[#allocation20 + $0xb8] sm:$0xff]
    %v3387 = vld [vmem:[#allocation20 + $0xc0] sm:$0xf]
    %v3388 = vld [vmem:[#allocation20 + $0xc4] sm:$0xff]
    %v3389 = vld [vmem:[#allocation20 + $0xcc] sm:$0xff]
    %v3390 = vld [vmem:[#allocation20 + $0xd4] sm:$0xff]
    %v3391 = vld [vmem:[#allocation20 + $0xdc] sm:$0xf]
    %v3392 = vld [vmem:[#allocation20 + $0xe0] sm:$0xff]
    %v3393 = vld [vmem:[#allocation20 + $0xe8] sm:$0xff]
    %v3394 = vld [vmem:[#allocation20 + $0xf0] sm:$0xff]
    %v3395 = vld [vmem:[#allocation20 + $0xf8] sm:$0xf]
    %v3396 = vld [vmem:[#allocation20 + $0xfc] sm:$0xff]
    %v3397 = vld [vmem:[#allocation20 + $0x104] sm:$0xff]
    %v3398 = vld [vmem:[#allocation20 + $0x10c] sm:$0xff]
    %v3399 = vld [vmem:[#allocation20 + $0x114] sm:$0xf]
    %v3400 = vld [vmem:[#allocation20 + $0x118] sm:$0xff]
    %v3401 = vld [vmem:[#allocation20 + $0x120] sm:$0xff]
    %v3402 = vld [vmem:[#allocation20 + $0x128] sm:$0xff]
    %v3403 = vld [vmem:[#allocation20 + $0x130] sm:$0xf]
    %v3404 = vld [vmem:[#allocation20 + $0x134] sm:$0xff]
    %v3405 = vld [vmem:[#allocation20 + $0x13c] sm:$0xff]
    %v3406 = vld [vmem:[#allocation20 + $0x144] sm:$0xff]
    %v3407 = vld [vmem:[#allocation20 + $0x14c] sm:$0xf]
    %v3408 = vld [vmem:[#allocation20 + $0x150] sm:$0xff]
    %v3409 = vld [vmem:[#allocation20 + $0x158] sm:$0xff]
    %v3410 = vld [vmem:[#allocation20 + $0x160] sm:$0xff]
    %v3411 = vld [vmem:[#allocation20 + $0x168] sm:$0xf]
    %v3412 = vld [vmem:[#allocation20 + $0x16c] sm:$0xff]
    %v3413 = vld [vmem:[#allocation20 + $0x174] sm:$0xff]
    %v3414 = vld [vmem:[#allocation20 + $0x17c] sm:$0xff]
    %v3415 = vld [vmem:[#allocation20 + $0x184] sm:$0xf]
    %v3416 = vld [vmem:[#allocation20 + $0x188] sm:$0xff]
    %v3417 = vld [vmem:[#allocation20 + $0x190] sm:$0xff]
    %v3418 = vld [vmem:[#allocation20 + $0x198] sm:$0xff]
    %v3419 = vld [vmem:[#allocation20 + $0x1a0] sm:$0xf]
    %v3420 = vld [vmem:[#allocation20 + $0x1a4] sm:$0xff]
    %v3421 = vld [vmem:[#allocation20 + $0x1ac] sm:$0xff]
    %v3422 = vld [vmem:[#allocation20 + $0x1b4] sm:$0xff]
    %v3423 = vld [vmem:[#allocation20 + $0x1bc] sm:$0xf]
    %v3424 = vld [vmem:[#allocation20 + $0x1c0] sm:$0xff]
    %v3425 = vld [vmem:[#allocation20 + $0x1c8] sm:$0xff]
    %v3426 = vld [vmem:[#allocation20 + $0x1d0] sm:$0xff]
    %v3427 = vld [vmem:[#allocation20 + $0x1d8] sm:$0xf]
    %v3428 = vld [vmem:[#allocation20 + $0x1dc] sm:$0xff]
    %v3429 = vld [vmem:[#allocation20 + $0x1e4] sm:$0xff]
    %v3430 = vld [vmem:[#allocation20 + $0x1ec] sm:$0xff]
    %v3431 = vld [vmem:[#allocation20 + $0x1f4] sm:$0xf]
    %v3432 = vld [vmem:[#allocation20 + $0x1f8] sm:$0xff]
    %v3433 = vld [vmem:[#allocation20 + $0x200] sm:$0xff]
    %v3434 = vld [vmem:[#allocation20 + $0x208] sm:$0xff]
    %v3435 = vld [vmem:[#allocation20 + $0x210] sm:$0xf]
    %v3436 = vld [vmem:[#allocation20 + $0x214] sm:$0xff]
    %v3437 = vld [vmem:[#allocation20 + $0x21c] sm:$0xff]
    %v3438 = vld [vmem:[#allocation20 + $0x224] sm:$0xff]
    %v3439 = vld [vmem:[#allocation20 + $0x22c] sm:$0xf]
    %v3440 = vld [vmem:[#allocation20 + $0x230] sm:$0xff]
    %v3441 = vld [vmem:[#allocation20 + $0x238] sm:$0xff]
    %v3442 = vld [vmem:[#allocation20 + $0x240] sm:$0xff]
    %v3443 = vld [vmem:[#allocation20 + $0x248] sm:$0xf]
    %v3444 = vld [vmem:[#allocation20 + $0x24c] sm:$0xff]
    %v3445 = vld [vmem:[#allocation20 + $0x254] sm:$0xff]
    %v3446 = vld [vmem:[#allocation20 + $0x25c] sm:$0xff]
    %v3447 = vld [vmem:[#allocation20 + $0x264] sm:$0xf]
    %v3448 = vld [vmem:[#allocation20 + $0x268] sm:$0xff]
    %v3449 = vld [vmem:[#allocation20 + $0x270] sm:$0xff]
    %v3450 = vld [vmem:[#allocation20 + $0x278] sm:$0xff]
    %v3451 = vld [vmem:[#allocation20 + $0x280] sm:$0xf]
    %v3452 = vld [vmem:[#allocation20 + $0x284] sm:$0xff]
    %v3453 = vld [vmem:[#allocation20 + $0x28c] sm:$0xff]
    %v3454 = vld [vmem:[#allocation20 + $0x294] sm:$0xff]
    %v3455 = vld [vmem:[#allocation20 + $0x29c] sm:$0xf]
    %v3456 = vld [vmem:[#allocation20 + $0x2a0] sm:$0xff]
    %v3457 = vld [vmem:[#allocation20 + $0x2a8] sm:$0xff]
    %v3458 = vld [vmem:[#allocation20 + $0x2b0] sm:$0xff]
    %v3459 = vld [vmem:[#allocation20 + $0x2b8] sm:$0xf]
    %v3460 = vld [vmem:[#allocation20 + $0x2bc] sm:$0xff]
    %v3461 = vld [vmem:[#allocation20 + $0x2c4] sm:$0xff]
    %v3462 = vld [vmem:[#allocation20 + $0x2cc] sm:$0xff]
    %v3463 = vld [vmem:[#allocation20 + $0x2d4] sm:$0xf]
    %v3464 = vld [vmem:[#allocation20 + $0x2d8] sm:$0xff]
    %v3465 = vld [vmem:[#allocation20 + $0x2e0] sm:$0xff]
    %v3466 = vld [vmem:[#allocation20 + $0x2e8] sm:$0xff]
    %v3467 = vld [vmem:[#allocation20 + $0x2f0] sm:$0xf]
    %v3468 = vld [vmem:[#allocation20 + $0x2f4] sm:$0xff]
    %v3469 = vld [vmem:[#allocation20 + $0x2fc] sm:$0xff]
    %v3470 = vld [vmem:[#allocation20 + $0x304] sm:$0xff]
    %v3471 = vld [vmem:[#allocation20 + $0x30c] sm:$0xf]
    %v3472 = vld [vmem:[#allocation20 + $0x310] sm:$0xff]
    %v3473 = vld [vmem:[#allocation20 + $0x318] sm:$0xff]
    %v3474 = vld [vmem:[#allocation20 + $0x320] sm:$0xff]
    %v3475 = vld [vmem:[#allocation20 + $0x328] sm:$0xf]
    %v3476 = vld [vmem:[#allocation20 + $0x32c] sm:$0xff]
    %v3477 = vld [vmem:[#allocation20 + $0x334] sm:$0xff]
    %v3478 = vld [vmem:[#allocation20 + $0x33c] sm:$0xff]
    %v3479 = vld [vmem:[#allocation20 + $0x344] sm:$0xf]
    %v3480 = vld [vmem:[#allocation20 + $0x348] sm:$0xff]
    %v3481 = vld [vmem:[#allocation20 + $0x350] sm:$0xff]
    %v3482 = vld [vmem:[#allocation20 + $0x358] sm:$0xff]
    %v3483 = vld [vmem:[#allocation20 + $0x360] sm:$0xf]
    %v3484 = vld [vmem:[#allocation20 + $0x364] sm:$0xff]
    %v3485 = vld [vmem:[#allocation20 + $0x36c] sm:$0xff]
    %v3486 = vld [vmem:[#allocation20 + $0x374] sm:$0xff]
    %v3487 = vld [vmem:[#allocation20 + $0x37c] sm:$0xf]
    %v3488 = vld [vmem:[#allocation20 + $0x380] sm:$0xff]
    %v3489 = vld [vmem:[#allocation20 + $0x388] sm:$0xff]
    %v3490 = vld [vmem:[#allocation20 + $0x390] sm:$0xff]
    %v3491 = vld [vmem:[#allocation20 + $0x398] sm:$0xf]
    %v3492 = vld [vmem:[#allocation20 + $0x39c] sm:$0xff]
    %v3493 = vld [vmem:[#allocation20 + $0x3a4] sm:$0xff]
    %v3494 = vld [vmem:[#allocation20 + $0x3ac] sm:$0xff]
    %v3495 = vld [vmem:[#allocation20 + $0x3b4] sm:$0xf]
    %v3496 = vld [vmem:[#allocation20 + $0x3b8] sm:$0xff]
    %v3497 = vld [vmem:[#allocation20 + $0x3c0] sm:$0xff]
    %v3498 = vld [vmem:[#allocation20 + $0x3c8] sm:$0xff]
    %v3499 = vld [vmem:[#allocation20 + $0x3d0] sm:$0xf]
    %v3500 = vld [vmem:[#allocation20 + $0x3d4] sm:$0xff]
    %v3501 = vld [vmem:[#allocation20 + $0x3dc] sm:$0xff]
    %v3502 = vld [vmem:[#allocation20 + $0x3e4] sm:$0xff]
    %v3503 = vld [vmem:[#allocation20 + $0x3ec] sm:$0xf]
    %v3504 = vld [vmem:[#allocation20 + $0x3f0] sm:$0xff]
    %v3505 = vld [vmem:[#allocation20 + $0x3f8] sm:$0xff]
    %v3506 = vld [vmem:[#allocation20 + $0x400] sm:$0xff]
    %v3507 = vld [vmem:[#allocation20 + $0x408] sm:$0xf]
    %v3508 = vld [vmem:[#allocation20 + $0x40c] sm:$0xff]
    %v3509 = vld [vmem:[#allocation20 + $0x414] sm:$0xff]
    %v3510 = vld [vmem:[#allocation20 + $0x41c] sm:$0xff]
    %v3511 = vld [vmem:[#allocation20 + $0x424] sm:$0xf]
    %v3512 = vld [vmem:[#allocation20 + $0x428] sm:$0xff]
    %v3513 = vld [vmem:[#allocation20 + $0x430] sm:$0xff]
    %v3514 = vld [vmem:[#allocation20 + $0x438] sm:$0xff]
    %v3515 = vld [vmem:[#allocation20 + $0x440] sm:$0xf]
    %v3516 = vld [vmem:[#allocation20 + $0x444] sm:$0xff]
    %v3517 = vld [vmem:[#allocation20 + $0x44c] sm:$0xff]
    %v3518 = vld [vmem:[#allocation20 + $0x454] sm:$0xff]
    %v3519 = vld [vmem:[#allocation20 + $0x45c] sm:$0xf]
    %v3520 = vld [vmem:[#allocation20 + $0x460] sm:$0xff]
    %v3521 = vld [vmem:[#allocation20 + $0x468] sm:$0xff]
    %v3522 = vld [vmem:[#allocation20 + $0x470] sm:$0xff]
    %v3523 = vld [vmem:[#allocation20 + $0x478] sm:$0xf]
    %v3524 = vld [vmem:[#allocation20 + $0x47c] sm:$0xff]
    %v3525 = vld [vmem:[#allocation20 + $0x484] sm:$0xff]
    %v3526 = vld [vmem:[#allocation20 + $0x48c] sm:$0xff]
    %v3527 = vld [vmem:[#allocation20 + $0x494] sm:$0xf]
    %v3528 = vld [vmem:[#allocation20 + $0x498] sm:$0xff]
    %v3529 = vld [vmem:[#allocation20 + $0x4a0] sm:$0xff]
    %v3530 = vld [vmem:[#allocation20 + $0x4a8] sm:$0xff]
    %v3531 = vld [vmem:[#allocation20 + $0x4b0] sm:$0xf]
    %v3532 = vld [vmem:[#allocation20 + $0x4b4] sm:$0xff]
    %v3533 = vld [vmem:[#allocation20 + $0x4bc] sm:$0xff]
    %v3534 = vld [vmem:[#allocation20 + $0x4c4] sm:$0xff]
    %v3535 = vld [vmem:[#allocation20 + $0x4cc] sm:$0xf]
    %v3536 = vld [vmem:[#allocation20 + $0x4d0] sm:$0xff]
    %v3537 = vld [vmem:[#allocation20 + $0x4d8] sm:$0xff]
    %v3538 = vld [vmem:[#allocation20 + $0x4e0] sm:$0xff]
    %v3539 = vld [vmem:[#allocation20 + $0x4e8] sm:$0xf]
    %v3540 = vld [vmem:[#allocation20 + $0x4ec] sm:$0xff]
    %v3541 = vld [vmem:[#allocation20 + $0x4f4] sm:$0xff]
    %v3542 = vld [vmem:[#allocation20 + $0x4fc] sm:$0xff]
    %v3543 = vld [vmem:[#allocation20 + $0x504] sm:$0xf]
    %v3544 = vld [vmem:[#allocation20 + $0x508] sm:$0xff]
    %v3545 = vld [vmem:[#allocation20 + $0x510] sm:$0xff]
    %v3546 = vld [vmem:[#allocation20 + $0x518] sm:$0xff]
    %v3547 = vld [vmem:[#allocation20 + $0x520] sm:$0xf]
    %v3548 = vld [vmem:[#allocation20 + $0x524] sm:$0xff]
    %v3549 = vld [vmem:[#allocation20 + $0x52c] sm:$0xff]
    %v3550 = vld [vmem:[#allocation20 + $0x534] sm:$0xff]
    %v3551 = vld [vmem:[#allocation20 + $0x53c] sm:$0xf]
    %v3552 = vld [vmem:[#allocation20 + $0x540] sm:$0xff]
    %v3553 = vld [vmem:[#allocation20 + $0x548] sm:$0xff]
    %v3554 = vld [vmem:[#allocation20 + $0x550] sm:$0xff]
    %v3555 = vld [vmem:[#allocation20 + $0x558] sm:$0xf]
    %v3556 = vld [vmem:[#allocation20 + $0x55c] sm:$0xff]
    %v3557 = vld [vmem:[#allocation20 + $0x564] sm:$0xff]
    %v3558 = vld [vmem:[#allocation20 + $0x56c] sm:$0xff]
    %v3559 = vld [vmem:[#allocation20 + $0x574] sm:$0xf]
    %v3560 = vld [vmem:[#allocation20 + $0x578] sm:$0xff]
    %v3561 = vld [vmem:[#allocation20 + $0x580] sm:$0xff]
    %v3562 = vld [vmem:[#allocation20 + $0x588] sm:$0xff]
    %v3563 = vld [vmem:[#allocation20 + $0x590] sm:$0xf]
    %v3564 = vld [vmem:[#allocation20 + $0x594] sm:$0xff]
    %v3565 = vld [vmem:[#allocation20 + $0x59c] sm:$0xff]
    %v3566 = vld [vmem:[#allocation20 + $0x5a4] sm:$0xff]
    %v3567 = vld [vmem:[#allocation20 + $0x5ac] sm:$0xf]
    %v3568 = vld [vmem:[#allocation20 + $0x5b0] sm:$0xff]
    %v3569 = vld [vmem:[#allocation20 + $0x5b8] sm:$0xff]
    %v3570 = vld [vmem:[#allocation20 + $0x5c0] sm:$0xff]
    %v3571 = vld [vmem:[#allocation20 + $0x5c8] sm:$0xf]
    %v3572 = vld [vmem:[#allocation20 + $0x5cc] sm:$0xff]
    %v3573 = vld [vmem:[#allocation20 + $0x5d4] sm:$0xff]
    %v3574 = vld [vmem:[#allocation20 + $0x5dc] sm:$0xff]
    %v3575 = vld [vmem:[#allocation20 + $0x5e4] sm:$0xf]
    %v3576 = vld [vmem:[#allocation20 + $0x5e8] sm:$0xff]
    %v3577 = vld [vmem:[#allocation20 + $0x5f0] sm:$0xff]
    %v3578 = vld [vmem:[#allocation20 + $0x5f8] sm:$0xff]
    %v3579 = vld [vmem:[#allocation20 + $0x600] sm:$0xf]
    %v3580 = vld [vmem:[#allocation20 + $0x604] sm:$0xff]
    %v3581 = vld [vmem:[#allocation20 + $0x60c] sm:$0xff]
    %v3582 = vld [vmem:[#allocation20 + $0x614] sm:$0xff]
    %v3583 = vld [vmem:[#allocation20 + $0x61c] sm:$0xf]
    %v3584 = vld [vmem:[#allocation20 + $0x620] sm:$0xff]
    %v3585 = vld [vmem:[#allocation20 + $0x628] sm:$0xff]
    %v3586 = vld [vmem:[#allocation20 + $0x630] sm:$0xff]
    %v3587 = vld [vmem:[#allocation20 + $0x638] sm:$0xf]
    %v3588 = vld [vmem:[#allocation20 + $0x63c] sm:$0xff]
    %v3589 = vld [vmem:[#allocation20 + $0x644] sm:$0xff]
    %v3590 = vld [vmem:[#allocation20 + $0x64c] sm:$0xff]
    %v3591 = vld [vmem:[#allocation20 + $0x654] sm:$0xf]
    %v3592 = vld [vmem:[#allocation20 + $0x658] sm:$0xff]
    %v3593 = vld [vmem:[#allocation20 + $0x660] sm:$0xff]
    %v3594 = vld [vmem:[#allocation20 + $0x668] sm:$0xff]
    %v3595 = vld [vmem:[#allocation20 + $0x670] sm:$0xf]
    %v3596 = vld [vmem:[#allocation20 + $0x674] sm:$0xff]
    %v3597 = vld [vmem:[#allocation20 + $0x67c] sm:$0xff]
    %v3598 = vld [vmem:[#allocation20 + $0x684] sm:$0xff]
    %v3599 = vld [vmem:[#allocation20 + $0x68c] sm:$0xf]
    %v3600 = vld [vmem:[#allocation20 + $0x690] sm:$0xff]
    %v3601 = vld [vmem:[#allocation20 + $0x698] sm:$0xff]
    %v3602 = vld [vmem:[#allocation20 + $0x6a0] sm:$0xff]
    %v3603 = vld [vmem:[#allocation20 + $0x6a8] sm:$0xf]
    %v3604 = vld [vmem:[#allocation20 + $0x6ac] sm:$0xff]
    %v3605 = vld [vmem:[#allocation20 + $0x6b4] sm:$0xff]
    %v3606 = vld [vmem:[#allocation20 + $0x6bc] sm:$0xff]
    %v3607 = vld [vmem:[#allocation20 + $0x6c4] sm:$0xf]
    %v3608 = vld [vmem:[#allocation20 + $0x6c8] sm:$0xff]
    %v3609 = vld [vmem:[#allocation20 + $0x6d0] sm:$0xff]
    %v3610 = vld [vmem:[#allocation20 + $0x6d8] sm:$0xff]
    %v3611 = vld [vmem:[#allocation20 + $0x6e0] sm:$0xf]
    %v3612 = vld [vmem:[#allocation20 + $0x6e4] sm:$0xff]
    %v3613 = vld [vmem:[#allocation20 + $0x6ec] sm:$0xff]
    %v3614 = vld [vmem:[#allocation20 + $0x6f4] sm:$0xff]
    %v3615 = vld [vmem:[#allocation20 + $0x6fc] sm:$0xf]
    %v3616 = vld [vmem:[%s13] sm:$0xff]
    %v3618 = vperm.slane %v3616, 0
    %v3619 = vperm.slane %v3616, 1
    %v3620 = vperm.slane %v3616, 2
    %v3621 = vperm.slane %v3616, 3
    %v3622 = vperm.slane %v3616, 4
    %v3623 = vperm.slane %v3616, 5
    %v3624 = vperm.slane %v3616, 6
    %v3888 = vunpack.c.l.b16 %v3360
    %v3889 = vunpack.c.h.b16 %v3360
    %v3890 = vunpack.c.l.b16 %v3361
    %v3891 = vunpack.c.h.b16 %v3361
    %v3892 = vunpack.c.l.b16 %v3362
    %v3893 = vunpack.c.h.b16 %v3362
    %v3894 = vunpack.c.l.b16 %v3363
    %v3895 = vunpack.c.l.b16 %v3364
    %v3896 = vunpack.c.h.b16 %v3364
    %v3897 = vunpack.c.l.b16 %v3365
    %v3898 = vunpack.c.h.b16 %v3365
    %v3899 = vunpack.c.l.b16 %v3366
    %v3900 = vunpack.c.h.b16 %v3366
    %v3901 = vunpack.c.l.b16 %v3367
    %v3902 = vunpack.c.l.b16 %v3368
    %v3903 = vunpack.c.h.b16 %v3368
    %v3904 = vunpack.c.l.b16 %v3369
    %v3905 = vunpack.c.h.b16 %v3369
    %v3906 = vunpack.c.l.b16 %v3370
    %v3907 = vunpack.c.h.b16 %v3370
    %v3908 = vunpack.c.l.b16 %v3371
    %v3909 = vunpack.c.l.b16 %v3372
    %v3910 = vunpack.c.h.b16 %v3372
    %v3911 = vunpack.c.l.b16 %v3373
    %v3912 = vunpack.c.h.b16 %v3373
    %v3913 = vunpack.c.l.b16 %v3374
    %v3914 = vunpack.c.h.b16 %v3374
    %v3915 = vunpack.c.l.b16 %v3375
    %v3916 = vunpack.c.l.b16 %v3376
    %v3917 = vunpack.c.h.b16 %v3376
    %v3918 = vunpack.c.l.b16 %v3377
    %v3919 = vunpack.c.h.b16 %v3377
    %v3920 = vunpack.c.l.b16 %v3378
    %v3921 = vunpack.c.h.b16 %v3378
    %v3922 = vunpack.c.l.b16 %v3379
    %v3923 = vunpack.c.l.b16 %v3380
    %v3924 = vunpack.c.h.b16 %v3380
    %v3925 = vunpack.c.l.b16 %v3381
    %v3926 = vunpack.c.h.b16 %v3381
    %v3927 = vunpack.c.l.b16 %v3382
    %v3928 = vunpack.c.h.b16 %v3382
    %v3929 = vunpack.c.l.b16 %v3383
    %v3930 = vunpack.c.l.b16 %v3384
    %v3931 = vunpack.c.h.b16 %v3384
    %v3932 = vunpack.c.l.b16 %v3385
    %v3933 = vunpack.c.h.b16 %v3385
    %v3934 = vunpack.c.l.b16 %v3386
    %v3935 = vunpack.c.h.b16 %v3386
    %v3936 = vunpack.c.l.b16 %v3387
    %v3937 = vunpack.c.l.b16 %v3388
    %v3938 = vunpack.c.h.b16 %v3388
    %v3939 = vunpack.c.l.b16 %v3389
    %v3940 = vunpack.c.h.b16 %v3389
    %v3941 = vunpack.c.l.b16 %v3390
    %v3942 = vunpack.c.h.b16 %v3390
    %v3943 = vunpack.c.l.b16 %v3391
    %v3944 = vunpack.c.l.b16 %v3392
    %v3945 = vunpack.c.h.b16 %v3392
    %v3946 = vunpack.c.l.b16 %v3393
    %v3947 = vunpack.c.h.b16 %v3393
    %v3948 = vunpack.c.l.b16 %v3394
    %v3949 = vunpack.c.h.b16 %v3394
    %v3950 = vunpack.c.l.b16 %v3395
    %v3951 = vunpack.c.l.b16 %v3396
    %v3952 = vunpack.c.h.b16 %v3396
    %v3953 = vunpack.c.l.b16 %v3397
    %v3954 = vunpack.c.h.b16 %v3397
    %v3955 = vunpack.c.l.b16 %v3398
    %v3956 = vunpack.c.h.b16 %v3398
    %v3957 = vunpack.c.l.b16 %v3399
    %v3958 = vunpack.c.l.b16 %v3400
    %v3959 = vunpack.c.h.b16 %v3400
    %v3960 = vunpack.c.l.b16 %v3401
    %v3961 = vunpack.c.h.b16 %v3401
    %v3962 = vunpack.c.l.b16 %v3402
    %v3963 = vunpack.c.h.b16 %v3402
    %v3964 = vunpack.c.l.b16 %v3403
    %v3965 = vunpack.c.l.b16 %v3404
    %v3966 = vunpack.c.h.b16 %v3404
    %v3967 = vunpack.c.l.b16 %v3405
    %v3968 = vunpack.c.h.b16 %v3405
    %v3969 = vunpack.c.l.b16 %v3406
    %v3970 = vunpack.c.h.b16 %v3406
    %v3971 = vunpack.c.l.b16 %v3407
    %v3972 = vunpack.c.l.b16 %v3408
    %v3973 = vunpack.c.h.b16 %v3408
    %v3974 = vunpack.c.l.b16 %v3409
    %v3975 = vunpack.c.h.b16 %v3409
    %v3976 = vunpack.c.l.b16 %v3410
    %v3977 = vunpack.c.h.b16 %v3410
    %v3978 = vunpack.c.l.b16 %v3411
    %v3979 = vunpack.c.l.b16 %v3412
    %v3980 = vunpack.c.h.b16 %v3412
    %v3981 = vunpack.c.l.b16 %v3413
    %v3982 = vunpack.c.h.b16 %v3413
    %v3983 = vunpack.c.l.b16 %v3414
    %v3984 = vunpack.c.h.b16 %v3414
    %v3985 = vunpack.c.l.b16 %v3415
    %v3986 = vunpack.c.l.b16 %v3416
    %v3987 = vunpack.c.h.b16 %v3416
    %v3988 = vunpack.c.l.b16 %v3417
    %v3989 = vunpack.c.h.b16 %v3417
    %v3990 = vunpack.c.l.b16 %v3418
    %v3991 = vunpack.c.h.b16 %v3418
    %v3992 = vunpack.c.l.b16 %v3419
    %v3993 = vunpack.c.l.b16 %v3420
    %v3994 = vunpack.c.h.b16 %v3420
    %v3995 = vunpack.c.l.b16 %v3421
    %v3996 = vunpack.c.h.b16 %v3421
    %v3997 = vunpack.c.l.b16 %v3422
    %v3998 = vunpack.c.h.b16 %v3422
    %v3999 = vunpack.c.l.b16 %v3423
    %v4000 = vunpack.c.l.b16 %v3424
    %v4001 = vunpack.c.h.b16 %v3424
    %v4002 = vunpack.c.l.b16 %v3425
    %v4003 = vunpack.c.h.b16 %v3425
    %v4004 = vunpack.c.l.b16 %v3426
    %v4005 = vunpack.c.h.b16 %v3426
    %v4006 = vunpack.c.l.b16 %v3427
    %v4007 = vunpack.c.l.b16 %v3428
    %v4008 = vunpack.c.h.b16 %v3428
    %v4009 = vunpack.c.l.b16 %v3429
    %v4010 = vunpack.c.h.b16 %v3429
    %v4011 = vunpack.c.l.b16 %v3430
    %v4012 = vunpack.c.h.b16 %v3430
    %v4013 = vunpack.c.l.b16 %v3431
    %v4014 = vunpack.c.l.b16 %v3432
    %v4015 = vunpack.c.h.b16 %v3432
    %v4016 = vunpack.c.l.b16 %v3433
    %v4017 = vunpack.c.h.b16 %v3433
    %v4018 = vunpack.c.l.b16 %v3434
    %v4019 = vunpack.c.h.b16 %v3434
    %v4020 = vunpack.c.l.b16 %v3435
    %v4021 = vunpack.c.l.b16 %v3436
    %v4022 = vunpack.c.h.b16 %v3436
    %v4023 = vunpack.c.l.b16 %v3437
    %v4024 = vunpack.c.h.b16 %v3437
    %v4025 = vunpack.c.l.b16 %v3438
    %v4026 = vunpack.c.h.b16 %v3438
    %v4027 = vunpack.c.l.b16 %v3439
    %v4028 = vunpack.c.l.b16 %v3440
    %v4029 = vunpack.c.h.b16 %v3440
    %v4030 = vunpack.c.l.b16 %v3441
    %v4031 = vunpack.c.h.b16 %v3441
    %v4032 = vunpack.c.l.b16 %v3442
    %v4033 = vunpack.c.h.b16 %v3442
    %v4034 = vunpack.c.l.b16 %v3443
    %v4035 = vunpack.c.l.b16 %v3444
    %v4036 = vunpack.c.h.b16 %v3444
    %v4037 = vunpack.c.l.b16 %v3445
    %v4038 = vunpack.c.h.b16 %v3445
    %v4039 = vunpack.c.l.b16 %v3446
    %v4040 = vunpack.c.h.b16 %v3446
    %v4041 = vunpack.c.l.b16 %v3447
    %v4042 = vunpack.c.l.b16 %v3448
    %v4043 = vunpack.c.h.b16 %v3448
    %v4044 = vunpack.c.l.b16 %v3449
    %v4045 = vunpack.c.h.b16 %v3449
    %v4046 = vunpack.c.l.b16 %v3450
    %v4047 = vunpack.c.h.b16 %v3450
    %v4048 = vunpack.c.l.b16 %v3451
    %v4049 = vunpack.c.l.b16 %v3452
    %v4050 = vunpack.c.h.b16 %v3452
    %v4051 = vunpack.c.l.b16 %v3453
    %v4052 = vunpack.c.h.b16 %v3453
    %v4053 = vunpack.c.l.b16 %v3454
    %v4054 = vunpack.c.h.b16 %v3454
    %v4055 = vunpack.c.l.b16 %v3455
    %v4056 = vunpack.c.l.b16 %v3456
    %v4057 = vunpack.c.h.b16 %v3456
    %v4058 = vunpack.c.l.b16 %v3457
    %v4059 = vunpack.c.h.b16 %v3457
    %v4060 = vunpack.c.l.b16 %v3458
    %v4061 = vunpack.c.h.b16 %v3458
    %v4062 = vunpack.c.l.b16 %v3459
    %v4063 = vunpack.c.l.b16 %v3460
    %v4064 = vunpack.c.h.b16 %v3460
    %v4065 = vunpack.c.l.b16 %v3461
    %v4066 = vunpack.c.h.b16 %v3461
    %v4067 = vunpack.c.l.b16 %v3462
    %v4068 = vunpack.c.h.b16 %v3462
    %v4069 = vunpack.c.l.b16 %v3463
    %v4070 = vunpack.c.l.b16 %v3464
    %v4071 = vunpack.c.h.b16 %v3464
    %v4072 = vunpack.c.l.b16 %v3465
    %v4073 = vunpack.c.h.b16 %v3465
    %v4074 = vunpack.c.l.b16 %v3466
    %v4075 = vunpack.c.h.b16 %v3466
    %v4076 = vunpack.c.l.b16 %v3467
    %v4077 = vunpack.c.l.b16 %v3468
    %v4078 = vunpack.c.h.b16 %v3468
    %v4079 = vunpack.c.l.b16 %v3469
    %v4080 = vunpack.c.h.b16 %v3469
    %v4081 = vunpack.c.l.b16 %v3470
    %v4082 = vunpack.c.h.b16 %v3470
    %v4083 = vunpack.c.l.b16 %v3471
    %v4084 = vunpack.c.l.b16 %v3472
    %v4085 = vunpack.c.h.b16 %v3472
    %v4086 = vunpack.c.l.b16 %v3473
    %v4087 = vunpack.c.h.b16 %v3473
    %v4088 = vunpack.c.l.b16 %v3474
    %v4089 = vunpack.c.h.b16 %v3474
    %v4090 = vunpack.c.l.b16 %v3475
    %v4091 = vunpack.c.l.b16 %v3476
    %v4092 = vunpack.c.h.b16 %v3476
    %v4093 = vunpack.c.l.b16 %v3477
    %v4094 = vunpack.c.h.b16 %v3477
    %v4095 = vunpack.c.l.b16 %v3478
    %v4096 = vunpack.c.h.b16 %v3478
    %v4097 = vunpack.c.l.b16 %v3479
    %v4098 = vunpack.c.l.b16 %v3480
    %v4099 = vunpack.c.h.b16 %v3480
    %v4100 = vunpack.c.l.b16 %v3481
    %v4101 = vunpack.c.h.b16 %v3481
    %v4102 = vunpack.c.l.b16 %v3482
    %v4103 = vunpack.c.h.b16 %v3482
    %v4104 = vunpack.c.l.b16 %v3483
    %v4105 = vunpack.c.l.b16 %v3484
    %v4106 = vunpack.c.h.b16 %v3484
    %v4107 = vunpack.c.l.b16 %v3485
    %v4108 = vunpack.c.h.b16 %v3485
    %v4109 = vunpack.c.l.b16 %v3486
    %v4110 = vunpack.c.h.b16 %v3486
    %v4111 = vunpack.c.l.b16 %v3487
    %v4112 = vunpack.c.l.b16 %v3488
    %v4113 = vunpack.c.h.b16 %v3488
    %v4114 = vunpack.c.l.b16 %v3489
    %v4115 = vunpack.c.h.b16 %v3489
    %v4116 = vunpack.c.l.b16 %v3490
    %v4117 = vunpack.c.h.b16 %v3490
    %v4118 = vunpack.c.l.b16 %v3491
    %v4119 = vunpack.c.l.b16 %v3492
    %v4120 = vunpack.c.h.b16 %v3492
    %v4121 = vunpack.c.l.b16 %v3493
    %v4122 = vunpack.c.h.b16 %v3493
    %v4123 = vunpack.c.l.b16 %v3494
    %v4124 = vunpack.c.h.b16 %v3494
    %v4125 = vunpack.c.l.b16 %v3495
    %v4126 = vunpack.c.l.b16 %v3496
    %v4127 = vunpack.c.h.b16 %v3496
    %v4128 = vunpack.c.l.b16 %v3497
    %v4129 = vunpack.c.h.b16 %v3497
    %v4130 = vunpack.c.l.b16 %v3498
    %v4131 = vunpack.c.h.b16 %v3498
    %v4132 = vunpack.c.l.b16 %v3499
    %v4133 = vunpack.c.l.b16 %v3500
    %v4134 = vunpack.c.h.b16 %v3500
    %v4135 = vunpack.c.l.b16 %v3501
    %v4136 = vunpack.c.h.b16 %v3501
    %v4137 = vunpack.c.l.b16 %v3502
    %v4138 = vunpack.c.h.b16 %v3502
    %v4139 = vunpack.c.l.b16 %v3503
    %v4140 = vunpack.c.l.b16 %v3504
    %v4141 = vunpack.c.h.b16 %v3504
    %v4142 = vunpack.c.l.b16 %v3505
    %v4143 = vunpack.c.h.b16 %v3505
    %v4144 = vunpack.c.l.b16 %v3506
    %v4145 = vunpack.c.h.b16 %v3506
    %v4146 = vunpack.c.l.b16 %v3507
    %v4147 = vunpack.c.l.b16 %v3508
    %v4148 = vunpack.c.h.b16 %v3508
    %v4149 = vunpack.c.l.b16 %v3509
    %v4150 = vunpack.c.h.b16 %v3509
    %v4151 = vunpack.c.l.b16 %v3510
    %v4152 = vunpack.c.h.b16 %v3510
    %v4153 = vunpack.c.l.b16 %v3511
    %v4154 = vunpack.c.l.b16 %v3512
    %v4155 = vunpack.c.h.b16 %v3512
    %v4156 = vunpack.c.l.b16 %v3513
    %v4157 = vunpack.c.h.b16 %v3513
    %v4158 = vunpack.c.l.b16 %v3514
    %v4159 = vunpack.c.h.b16 %v3514
    %v4160 = vunpack.c.l.b16 %v3515
    %v4161 = vunpack.c.l.b16 %v3516
    %v4162 = vunpack.c.h.b16 %v3516
    %v4163 = vunpack.c.l.b16 %v3517
    %v4164 = vunpack.c.h.b16 %v3517
    %v4165 = vunpack.c.l.b16 %v3518
    %v4166 = vunpack.c.h.b16 %v3518
    %v4167 = vunpack.c.l.b16 %v3519
    %v4168 = vunpack.c.l.b16 %v3520
    %v4169 = vunpack.c.h.b16 %v3520
    %v4170 = vunpack.c.l.b16 %v3521
    %v4171 = vunpack.c.h.b16 %v3521
    %v4172 = vunpack.c.l.b16 %v3522
    %v4173 = vunpack.c.h.b16 %v3522
    %v4174 = vunpack.c.l.b16 %v3523
    %v4175 = vunpack.c.l.b16 %v3524
    %v4176 = vunpack.c.h.b16 %v3524
    %v4177 = vunpack.c.l.b16 %v3525
    %v4178 = vunpack.c.h.b16 %v3525
    %v4179 = vunpack.c.l.b16 %v3526
    %v4180 = vunpack.c.h.b16 %v3526
    %v4181 = vunpack.c.l.b16 %v3527
    %v4182 = vunpack.c.l.b16 %v3528
    %v4183 = vunpack.c.h.b16 %v3528
    %v4184 = vunpack.c.l.b16 %v3529
    %v4185 = vunpack.c.h.b16 %v3529
    %v4186 = vunpack.c.l.b16 %v3530
    %v4187 = vunpack.c.h.b16 %v3530
    %v4188 = vunpack.c.l.b16 %v3531
    %v4189 = vunpack.c.l.b16 %v3532
    %v4190 = vunpack.c.h.b16 %v3532
    %v4191 = vunpack.c.l.b16 %v3533
    %v4192 = vunpack.c.h.b16 %v3533
    %v4193 = vunpack.c.l.b16 %v3534
    %v4194 = vunpack.c.h.b16 %v3534
    %v4195 = vunpack.c.l.b16 %v3535
    %v4196 = vunpack.c.l.b16 %v3536
    %v4197 = vunpack.c.h.b16 %v3536
    %v4198 = vunpack.c.l.b16 %v3537
    %v4199 = vunpack.c.h.b16 %v3537
    %v4200 = vunpack.c.l.b16 %v3538
    %v4201 = vunpack.c.h.b16 %v3538
    %v4202 = vunpack.c.l.b16 %v3539
    %v4203 = vunpack.c.l.b16 %v3540
    %v4204 = vunpack.c.h.b16 %v3540
    %v4205 = vunpack.c.l.b16 %v3541
    %v4206 = vunpack.c.h.b16 %v3541
    %v4207 = vunpack.c.l.b16 %v3542
    %v4208 = vunpack.c.h.b16 %v3542
    %v4209 = vunpack.c.l.b16 %v3543
    %v4210 = vunpack.c.l.b16 %v3544
    %v4211 = vunpack.c.h.b16 %v3544
    %v4212 = vunpack.c.l.b16 %v3545
    %v4213 = vunpack.c.h.b16 %v3545
    %v4214 = vunpack.c.l.b16 %v3546
    %v4215 = vunpack.c.h.b16 %v3546
    %v4216 = vunpack.c.l.b16 %v3547
    %v4217 = vunpack.c.l.b16 %v3548
    %v4218 = vunpack.c.h.b16 %v3548
    %v4219 = vunpack.c.l.b16 %v3549
    %v4220 = vunpack.c.h.b16 %v3549
    %v4221 = vunpack.c.l.b16 %v3550
    %v4222 = vunpack.c.h.b16 %v3550
    %v4223 = vunpack.c.l.b16 %v3551
    %v4224 = vunpack.c.l.b16 %v3552
    %v4225 = vunpack.c.h.b16 %v3552
    %v4226 = vunpack.c.l.b16 %v3553
    %v4227 = vunpack.c.h.b16 %v3553
    %v4228 = vunpack.c.l.b16 %v3554
    %v4229 = vunpack.c.h.b16 %v3554
    %v4230 = vunpack.c.l.b16 %v3555
    %v4231 = vunpack.c.l.b16 %v3556
    %v4232 = vunpack.c.h.b16 %v3556
    %v4233 = vunpack.c.l.b16 %v3557
    %v4234 = vunpack.c.h.b16 %v3557
    %v4235 = vunpack.c.l.b16 %v3558
    %v4236 = vunpack.c.h.b16 %v3558
    %v4237 = vunpack.c.l.b16 %v3559
    %v4238 = vunpack.c.l.b16 %v3560
    %v4239 = vunpack.c.h.b16 %v3560
    %v4240 = vunpack.c.l.b16 %v3561
    %v4241 = vunpack.c.h.b16 %v3561
    %v4242 = vunpack.c.l.b16 %v3562
    %v4243 = vunpack.c.h.b16 %v3562
    %v4244 = vunpack.c.l.b16 %v3563
    %v4245 = vunpack.c.l.b16 %v3564
    %v4246 = vunpack.c.h.b16 %v3564
    %v4247 = vunpack.c.l.b16 %v3565
    %v4248 = vunpack.c.h.b16 %v3565
    %v4249 = vunpack.c.l.b16 %v3566
    %v4250 = vunpack.c.h.b16 %v3566
    %v4251 = vunpack.c.l.b16 %v3567
    %v4252 = vunpack.c.l.b16 %v3568
    %v4253 = vunpack.c.h.b16 %v3568
    %v4254 = vunpack.c.l.b16 %v3569
    %v4255 = vunpack.c.h.b16 %v3569
    %v4256 = vunpack.c.l.b16 %v3570
    %v4257 = vunpack.c.h.b16 %v3570
    %v4258 = vunpack.c.l.b16 %v3571
    %v4259 = vunpack.c.l.b16 %v3572
    %v4260 = vunpack.c.h.b16 %v3572
    %v4261 = vunpack.c.l.b16 %v3573
    %v4262 = vunpack.c.h.b16 %v3573
    %v4263 = vunpack.c.l.b16 %v3574
    %v4264 = vunpack.c.h.b16 %v3574
    %v4265 = vunpack.c.l.b16 %v3575
    %v4266 = vunpack.c.l.b16 %v3576
    %v4267 = vunpack.c.h.b16 %v3576
    %v4268 = vunpack.c.l.b16 %v3577
    %v4269 = vunpack.c.h.b16 %v3577
    %v4270 = vunpack.c.l.b16 %v3578
    %v4271 = vunpack.c.h.b16 %v3578
    %v4272 = vunpack.c.l.b16 %v3579
    %v4273 = vunpack.c.l.b16 %v3580
    %v4274 = vunpack.c.h.b16 %v3580
    %v4275 = vunpack.c.l.b16 %v3581
    %v4276 = vunpack.c.h.b16 %v3581
    %v4277 = vunpack.c.l.b16 %v3582
    %v4278 = vunpack.c.h.b16 %v3582
    %v4279 = vunpack.c.l.b16 %v3583
    %v4280 = vunpack.c.l.b16 %v3584
    %v4281 = vunpack.c.h.b16 %v3584
    %v4282 = vunpack.c.l.b16 %v3585
    %v4283 = vunpack.c.h.b16 %v3585
    %v4284 = vunpack.c.l.b16 %v3586
    %v4285 = vunpack.c.h.b16 %v3586
    %v4286 = vunpack.c.l.b16 %v3587
    %v4287 = vunpack.c.l.b16 %v3588
    %v4288 = vunpack.c.h.b16 %v3588
    %v4289 = vunpack.c.l.b16 %v3589
    %v4290 = vunpack.c.h.b16 %v3589
    %v4291 = vunpack.c.l.b16 %v3590
    %v4292 = vunpack.c.h.b16 %v3590
    %v4293 = vunpack.c.l.b16 %v3591
    %v4294 = vunpack.c.l.b16 %v3592
    %v4295 = vunpack.c.h.b16 %v3592
    %v4296 = vunpack.c.l.b16 %v3593
    %v4297 = vunpack.c.h.b16 %v3593
    %v4298 = vunpack.c.l.b16 %v3594
    %v4299 = vunpack.c.h.b16 %v3594
    %v4300 = vunpack.c.l.b16 %v3595
    %v4301 = vunpack.c.l.b16 %v3596
    %v4302 = vunpack.c.h.b16 %v3596
    %v4303 = vunpack.c.l.b16 %v3597
    %v4304 = vunpack.c.h.b16 %v3597
    %v4305 = vunpack.c.l.b16 %v3598
    %v4306 = vunpack.c.h.b16 %v3598
    %v4307 = vunpack.c.l.b16 %v3599
    %v4308 = vunpack.c.l.b16 %v3600
    %v4309 = vunpack.c.h.b16 %v3600
    %v4310 = vunpack.c.l.b16 %v3601
    %v4311 = vunpack.c.h.b16 %v3601
    %v4312 = vunpack.c.l.b16 %v3602
    %v4313 = vunpack.c.h.b16 %v3602
    %v4314 = vunpack.c.l.b16 %v3603
    %v4315 = vunpack.c.l.b16 %v3604
    %v4316 = vunpack.c.h.b16 %v3604
    %v4317 = vunpack.c.l.b16 %v3605
    %v4318 = vunpack.c.h.b16 %v3605
    %v4319 = vunpack.c.l.b16 %v3606
    %v4320 = vunpack.c.h.b16 %v3606
    %v4321 = vunpack.c.l.b16 %v3607
    %v4322 = vunpack.c.l.b16 %v3608
    %v4323 = vunpack.c.h.b16 %v3608
    %v4324 = vunpack.c.l.b16 %v3609
    %v4325 = vunpack.c.h.b16 %v3609
    %v4326 = vunpack.c.l.b16 %v3610
    %v4327 = vunpack.c.h.b16 %v3610
    %v4328 = vunpack.c.l.b16 %v3611
    %v4329 = vunpack.c.l.b16 %v3612
    %v4330 = vunpack.c.h.b16 %v3612
    %v4331 = vunpack.c.l.b16 %v3613
    %v4332 = vunpack.c.h.b16 %v3613
    %v4333 = vunpack.c.l.b16 %v3614
    %v4334 = vunpack.c.h.b16 %v3614
    %v4335 = vunpack.c.l.b16 %v3615
    %v4336 = vpack.c.b16 %v3895, %v3888
    %v4337 = vpack.c.b16 %v3896, %v3889
    %v4338 = vpack.c.b16 %v3897, %v3890
    %v4339 = vpack.c.b16 %v3898, %v3891
    %v4340 = vpack.c.b16 %v3899, %v3892
    %v4341 = vpack.c.b16 %v3900, %v3893
    %v4342 = vpack.c.b16 %v3901, %v3894
    %v4343 = vpack.c.b16 %v3909, %v3902
    %v4344 = vpack.c.b16 %v3910, %v3903
    %v4345 = vpack.c.b16 %v3911, %v3904
    %v4346 = vpack.c.b16 %v3912, %v3905
    %v4347 = vpack.c.b16 %v3913, %v3906
    %v4348 = vpack.c.b16 %v3914, %v3907
    %v4349 = vpack.c.b16 %v3915, %v3908
    %v4350 = vpack.c.b16 %v3923, %v3916
    %v4351 = vpack.c.b16 %v3924, %v3917
    %v4352 = vpack.c.b16 %v3925, %v3918
    %v4353 = vpack.c.b16 %v3926, %v3919
    %v4354 = vpack.c.b16 %v3927, %v3920
    %v4355 = vpack.c.b16 %v3928, %v3921
    %v4356 = vpack.c.b16 %v3929, %v3922
    %v4357 = vpack.c.b16 %v3937, %v3930
    %v4358 = vpack.c.b16 %v3938, %v3931
    %v4359 = vpack.c.b16 %v3939, %v3932
    %v4360 = vpack.c.b16 %v3940, %v3933
    %v4361 = vpack.c.b16 %v3941, %v3934
    %v4362 = vpack.c.b16 %v3942, %v3935
    %v4363 = vpack.c.b16 %v3943, %v3936
    %v4364 = vpack.c.b16 %v3951, %v3944
    %v4365 = vpack.c.b16 %v3952, %v3945
    %v4366 = vpack.c.b16 %v3953, %v3946
    %v4367 = vpack.c.b16 %v3954, %v3947
    %v4368 = vpack.c.b16 %v3955, %v3948
    %v4369 = vpack.c.b16 %v3956, %v3949
    %v4370 = vpack.c.b16 %v3957, %v3950
    %v4371 = vpack.c.b16 %v3965, %v3958
    %v4372 = vpack.c.b16 %v3966, %v3959
    %v4373 = vpack.c.b16 %v3967, %v3960
    %v4374 = vpack.c.b16 %v3968, %v3961
    %v4375 = vpack.c.b16 %v3969, %v3962
    %v4376 = vpack.c.b16 %v3970, %v3963
    %v4377 = vpack.c.b16 %v3971, %v3964
    %v4378 = vpack.c.b16 %v3979, %v3972
    %v4379 = vpack.c.b16 %v3980, %v3973
    %v4380 = vpack.c.b16 %v3981, %v3974
    %v4381 = vpack.c.b16 %v3982, %v3975
    %v4382 = vpack.c.b16 %v3983, %v3976
    %v4383 = vpack.c.b16 %v3984, %v3977
    %v4384 = vpack.c.b16 %v3985, %v3978
    %v4385 = vpack.c.b16 %v3993, %v3986
    %v4386 = vpack.c.b16 %v3994, %v3987
    %v4387 = vpack.c.b16 %v3995, %v3988
    %v4388 = vpack.c.b16 %v3996, %v3989
    %v4389 = vpack.c.b16 %v3997, %v3990
    %v4390 = vpack.c.b16 %v3998, %v3991
    %v4391 = vpack.c.b16 %v3999, %v3992
    %v4392 = vpack.c.b16 %v4007, %v4000
    %v4393 = vpack.c.b16 %v4008, %v4001
    %v4394 = vpack.c.b16 %v4009, %v4002
    %v4395 = vpack.c.b16 %v4010, %v4003
    %v4396 = vpack.c.b16 %v4011, %v4004
    %v4397 = vpack.c.b16 %v4012, %v4005
    %v4398 = vpack.c.b16 %v4013, %v4006
    %v4399 = vpack.c.b16 %v4021, %v4014
    %v4400 = vpack.c.b16 %v4022, %v4015
    %v4401 = vpack.c.b16 %v4023, %v4016
    %v4402 = vpack.c.b16 %v4024, %v4017
    %v4403 = vpack.c.b16 %v4025, %v4018
    %v4404 = vpack.c.b16 %v4026, %v4019
    %v4405 = vpack.c.b16 %v4027, %v4020
    %v4406 = vpack.c.b16 %v4035, %v4028
    %v4407 = vpack.c.b16 %v4036, %v4029
    %v4408 = vpack.c.b16 %v4037, %v4030
    %v4409 = vpack.c.b16 %v4038, %v4031
    %v4410 = vpack.c.b16 %v4039, %v4032
    %v4411 = vpack.c.b16 %v4040, %v4033
    %v4412 = vpack.c.b16 %v4041, %v4034
    %v4413 = vpack.c.b16 %v4049, %v4042
    %v4414 = vpack.c.b16 %v4050, %v4043
    %v4415 = vpack.c.b16 %v4051, %v4044
    %v4416 = vpack.c.b16 %v4052, %v4045
    %v4417 = vpack.c.b16 %v4053, %v4046
    %v4418 = vpack.c.b16 %v4054, %v4047
    %v4419 = vpack.c.b16 %v4055, %v4048
    %v4420 = vpack.c.b16 %v4063, %v4056
    %v4421 = vpack.c.b16 %v4064, %v4057
    %v4422 = vpack.c.b16 %v4065, %v4058
    %v4423 = vpack.c.b16 %v4066, %v4059
    %v4424 = vpack.c.b16 %v4067, %v4060
    %v4425 = vpack.c.b16 %v4068, %v4061
    %v4426 = vpack.c.b16 %v4069, %v4062
    %v4427 = vpack.c.b16 %v4077, %v4070
    %v4428 = vpack.c.b16 %v4078, %v4071
    %v4429 = vpack.c.b16 %v4079, %v4072
    %v4430 = vpack.c.b16 %v4080, %v4073
    %v4431 = vpack.c.b16 %v4081, %v4074
    %v4432 = vpack.c.b16 %v4082, %v4075
    %v4433 = vpack.c.b16 %v4083, %v4076
    %v4434 = vpack.c.b16 %v4091, %v4084
    %v4435 = vpack.c.b16 %v4092, %v4085
    %v4436 = vpack.c.b16 %v4093, %v4086
    %v4437 = vpack.c.b16 %v4094, %v4087
    %v4438 = vpack.c.b16 %v4095, %v4088
    %v4439 = vpack.c.b16 %v4096, %v4089
    %v4440 = vpack.c.b16 %v4097, %v4090
    %v4441 = vpack.c.b16 %v4105, %v4098
    %v4442 = vpack.c.b16 %v4106, %v4099
    %v4443 = vpack.c.b16 %v4107, %v4100
    %v4444 = vpack.c.b16 %v4108, %v4101
    %v4445 = vpack.c.b16 %v4109, %v4102
    %v4446 = vpack.c.b16 %v4110, %v4103
    %v4447 = vpack.c.b16 %v4111, %v4104
    %v4448 = vpack.c.b16 %v4119, %v4112
    %v4449 = vpack.c.b16 %v4120, %v4113
    %v4450 = vpack.c.b16 %v4121, %v4114
    %v4451 = vpack.c.b16 %v4122, %v4115
    %v4452 = vpack.c.b16 %v4123, %v4116
    %v4453 = vpack.c.b16 %v4124, %v4117
    %v4454 = vpack.c.b16 %v4125, %v4118
    %v4455 = vpack.c.b16 %v4133, %v4126
    %v4456 = vpack.c.b16 %v4134, %v4127
    %v4457 = vpack.c.b16 %v4135, %v4128
    %v4458 = vpack.c.b16 %v4136, %v4129
    %v4459 = vpack.c.b16 %v4137, %v4130
    %v4460 = vpack.c.b16 %v4138, %v4131
    %v4461 = vpack.c.b16 %v4139, %v4132
    %v4462 = vpack.c.b16 %v4147, %v4140
    %v4463 = vpack.c.b16 %v4148, %v4141
    %v4464 = vpack.c.b16 %v4149, %v4142
    %v4465 = vpack.c.b16 %v4150, %v4143
    %v4466 = vpack.c.b16 %v4151, %v4144
    %v4467 = vpack.c.b16 %v4152, %v4145
    %v4468 = vpack.c.b16 %v4153, %v4146
    %v4469 = vpack.c.b16 %v4161, %v4154
    %v4470 = vpack.c.b16 %v4162, %v4155
    %v4471 = vpack.c.b16 %v4163, %v4156
    %v4472 = vpack.c.b16 %v4164, %v4157
    %v4473 = vpack.c.b16 %v4165, %v4158
    %v4474 = vpack.c.b16 %v4166, %v4159
    %v4475 = vpack.c.b16 %v4167, %v4160
    %v4476 = vpack.c.b16 %v4175, %v4168
    %v4477 = vpack.c.b16 %v4176, %v4169
    %v4478 = vpack.c.b16 %v4177, %v4170
    %v4479 = vpack.c.b16 %v4178, %v4171
    %v4480 = vpack.c.b16 %v4179, %v4172
    %v4481 = vpack.c.b16 %v4180, %v4173
    %v4482 = vpack.c.b16 %v4181, %v4174
    %v4483 = vpack.c.b16 %v4189, %v4182
    %v4484 = vpack.c.b16 %v4190, %v4183
    %v4485 = vpack.c.b16 %v4191, %v4184
    %v4486 = vpack.c.b16 %v4192, %v4185
    %v4487 = vpack.c.b16 %v4193, %v4186
    %v4488 = vpack.c.b16 %v4194, %v4187
    %v4489 = vpack.c.b16 %v4195, %v4188
    %v4490 = vpack.c.b16 %v4203, %v4196
    %v4491 = vpack.c.b16 %v4204, %v4197
    %v4492 = vpack.c.b16 %v4205, %v4198
    %v4493 = vpack.c.b16 %v4206, %v4199
    %v4494 = vpack.c.b16 %v4207, %v4200
    %v4495 = vpack.c.b16 %v4208, %v4201
    %v4496 = vpack.c.b16 %v4209, %v4202
    %v4497 = vpack.c.b16 %v4217, %v4210
    %v4498 = vpack.c.b16 %v4218, %v4211
    %v4499 = vpack.c.b16 %v4219, %v4212
    %v4500 = vpack.c.b16 %v4220, %v4213
    %v4501 = vpack.c.b16 %v4221, %v4214
    %v4502 = vpack.c.b16 %v4222, %v4215
    %v4503 = vpack.c.b16 %v4223, %v4216
    %v4504 = vpack.c.b16 %v4231, %v4224
    %v4505 = vpack.c.b16 %v4232, %v4225
    %v4506 = vpack.c.b16 %v4233, %v4226
    %v4507 = vpack.c.b16 %v4234, %v4227
    %v4508 = vpack.c.b16 %v4235, %v4228
    %v4509 = vpack.c.b16 %v4236, %v4229
    %v4510 = vpack.c.b16 %v4237, %v4230
    %v4511 = vpack.c.b16 %v4245, %v4238
    %v4512 = vpack.c.b16 %v4246, %v4239
    %v4513 = vpack.c.b16 %v4247, %v4240
    %v4514 = vpack.c.b16 %v4248, %v4241
    %v4515 = vpack.c.b16 %v4249, %v4242
    %v4516 = vpack.c.b16 %v4250, %v4243
    %v4517 = vpack.c.b16 %v4251, %v4244
    %v4518 = vpack.c.b16 %v4259, %v4252
    %v4519 = vpack.c.b16 %v4260, %v4253
    %v4520 = vpack.c.b16 %v4261, %v4254
    %v4521 = vpack.c.b16 %v4262, %v4255
    %v4522 = vpack.c.b16 %v4263, %v4256
    %v4523 = vpack.c.b16 %v4264, %v4257
    %v4524 = vpack.c.b16 %v4265, %v4258
    %v4525 = vpack.c.b16 %v4273, %v4266
    %v4526 = vpack.c.b16 %v4274, %v4267
    %v4527 = vpack.c.b16 %v4275, %v4268
    %v4528 = vpack.c.b16 %v4276, %v4269
    %v4529 = vpack.c.b16 %v4277, %v4270
    %v4530 = vpack.c.b16 %v4278, %v4271
    %v4531 = vpack.c.b16 %v4279, %v4272
    %v4532 = vpack.c.b16 %v4287, %v4280
    %v4533 = vpack.c.b16 %v4288, %v4281
    %v4534 = vpack.c.b16 %v4289, %v4282
    %v4535 = vpack.c.b16 %v4290, %v4283
    %v4536 = vpack.c.b16 %v4291, %v4284
    %v4537 = vpack.c.b16 %v4292, %v4285
    %v4538 = vpack.c.b16 %v4293, %v4286
    %v4539 = vpack.c.b16 %v4301, %v4294
    %v4540 = vpack.c.b16 %v4302, %v4295
    %v4541 = vpack.c.b16 %v4303, %v4296
    %v4542 = vpack.c.b16 %v4304, %v4297
    %v4543 = vpack.c.b16 %v4305, %v4298
    %v4544 = vpack.c.b16 %v4306, %v4299
    %v4545 = vpack.c.b16 %v4307, %v4300
    %v4546 = vpack.c.b16 %v4315, %v4308
    %v4547 = vpack.c.b16 %v4316, %v4309
    %v4548 = vpack.c.b16 %v4317, %v4310
    %v4549 = vpack.c.b16 %v4318, %v4311
    %v4550 = vpack.c.b16 %v4319, %v4312
    %v4551 = vpack.c.b16 %v4320, %v4313
    %v4552 = vpack.c.b16 %v4321, %v4314
    %v4553 = vpack.c.b16 %v4329, %v4322
    %v4554 = vpack.c.b16 %v4330, %v4323
    %v4555 = vpack.c.b16 %v4331, %v4324
    %v4556 = vpack.c.b16 %v4332, %v4325
    %v4557 = vpack.c.b16 %v4333, %v4326
    %v4558 = vpack.c.b16 %v4334, %v4327
    %v4559 = vpack.c.b16 %v4335, %v4328
    %4784 = vmatpush.bf16.msra.mxu0 %v4385
    %4785 = vmatpush.bf16.msra.mxu0 %v4378
    %4786 = vmatpush.bf16.msra.mxu0 %v4371
    %4787 = vmatpush.bf16.msra.mxu0 %v4364
    %4788 = vmatpush.bf16.msra.mxu0 %v4357
    %4789 = vmatpush.bf16.msra.mxu0 %v4350
    %4790 = vmatpush.bf16.msra.mxu0 %v4343
    %4791 = vmatpush.bf16.msra.mxu0 %v4336
    %4792 = vmatmul.bf16.gmra.mxu0 %v3356
    %v4793 = vpop.f32.mrf.mxu0
    %v4794 = vadd.f32 %v3618, %v4793
    %v4795 = vpop.f32.mrf.mxu0
    %4796 = vdwg.mxu0
    %4797 = vmatpush.bf16.msra.mxu0 %v4441
    %4798 = vmatpush.bf16.msra.mxu0 %v4434
    %4799 = vmatpush.bf16.msra.mxu0 %v4427
    %4800 = vmatpush.bf16.msra.mxu0 %v4420
    %4801 = vmatpush.bf16.msra.mxu0 %v4413
    %4802 = vmatpush.bf16.msra.mxu0 %v4406
    %4803 = vmatpush.bf16.msra.mxu0 %v4399
    %4804 = vmatpush.bf16.msra.mxu0 %v4392
    %4805 = vmatmul.bf16.gmra.mxu0 %v3357
    %v4806 = vpop.f32.mrf.mxu0
    %v4807 = vadd.f32 %v4794, %v4806
    %v4808 = vpop.f32.mrf.mxu0
    %4809 = vdwg.mxu0
    %4810 = vmatpush.bf16.msra.mxu0 %v4497
    %4811 = vmatpush.bf16.msra.mxu0 %v4490
    %4812 = vmatpush.bf16.msra.mxu0 %v4483
    %4813 = vmatpush.bf16.msra.mxu0 %v4476
    %4814 = vmatpush.bf16.msra.mxu0 %v4469
    %4815 = vmatpush.bf16.msra.mxu0 %v4462
    %4816 = vmatpush.bf16.msra.mxu0 %v4455
    %4817 = vmatpush.bf16.msra.mxu0 %v4448
    %4818 = vmatmul.bf16.gmra.mxu0 %v3358
    %v4819 = vpop.f32.mrf.mxu0
    %v4820 = vadd.f32 %v4807, %v4819
    %v4821 = vpop.f32.mrf.mxu0
    %4822 = vdwg.mxu0
    %4823 = vmatpush.bf16.msra.mxu0 %v4553
    %4824 = vmatpush.bf16.msra.mxu0 %v4546
    %4825 = vmatpush.bf16.msra.mxu0 %v4539
    %4826 = vmatpush.bf16.msra.mxu0 %v4532
    %4827 = vmatpush.bf16.msra.mxu0 %v4525
    %4828 = vmatpush.bf16.msra.mxu0 %v4518
    %4829 = vmatpush.bf16.msra.mxu0 %v4511
    %4830 = vmatpush.bf16.msra.mxu0 %v4504
    %4831 = vmatmul.bf16.gmra.mxu0 %v3359
    %v4832 = vpop.f32.mrf.mxu0
    %v4833 = vadd.f32 %v4820, %v4832
    %v4834 = vpop.f32.mrf.mxu0
    %4835 = vdwg.mxu0
    %4836 = vmatpush.bf16.msra.mxu0 %v4386
    %4837 = vmatpush.bf16.msra.mxu0 %v4379
    %4838 = vmatpush.bf16.msra.mxu0 %v4372
    %4839 = vmatpush.bf16.msra.mxu0 %v4365
    %4840 = vmatpush.bf16.msra.mxu0 %v4358
    %4841 = vmatpush.bf16.msra.mxu0 %v4351
    %4842 = vmatpush.bf16.msra.mxu0 %v4344
    %4843 = vmatpush.bf16.msra.mxu0 %v4337
    %4844 = vmatmul.bf16.gmra.mxu0 %v3356
    %v4845 = vpop.f32.mrf.mxu0
    %v4846 = vadd.f32 %v3619, %v4845
    %v4847 = vpop.f32.mrf.mxu0
    %4848 = vdwg.mxu0
    %4849 = vmatpush.bf16.msra.mxu0 %v4442
    %4850 = vmatpush.bf16.msra.mxu0 %v4435
    %4851 = vmatpush.bf16.msra.mxu0 %v4428
    %4852 = vmatpush.bf16.msra.mxu0 %v4421
    %4853 = vmatpush.bf16.msra.mxu0 %v4414
    %4854 = vmatpush.bf16.msra.mxu0 %v4407
    %4855 = vmatpush.bf16.msra.mxu0 %v4400
    %4856 = vmatpush.bf16.msra.mxu0 %v4393
    %4857 = vmatmul.bf16.gmra.mxu0 %v3357
    %v4858 = vpop.f32.mrf.mxu0
    %v4859 = vadd.f32 %v4846, %v4858
    %v4860 = vpop.f32.mrf.mxu0
    %4861 = vdwg.mxu0
    %4862 = vmatpush.bf16.msra.mxu0 %v4498
    %4863 = vmatpush.bf16.msra.mxu0 %v4491
    %4864 = vmatpush.bf16.msra.mxu0 %v4484
    %4865 = vmatpush.bf16.msra.mxu0 %v4477
    %4866 = vmatpush.bf16.msra.mxu0 %v4470
    %4867 = vmatpush.bf16.msra.mxu0 %v4463
    %4868 = vmatpush.bf16.msra.mxu0 %v4456
    %4869 = vmatpush.bf16.msra.mxu0 %v4449
    %4870 = vmatmul.bf16.gmra.mxu0 %v3358
    %v4871 = vpop.f32.mrf.mxu0
    %v4872 = vadd.f32 %v4859, %v4871
    %v4873 = vpop.f32.mrf.mxu0
    %4874 = vdwg.mxu0
    %4875 = vmatpush.bf16.msra.mxu0 %v4554
    %4876 = vmatpush.bf16.msra.mxu0 %v4547
    %4877 = vmatpush.bf16.msra.mxu0 %v4540
    %4878 = vmatpush.bf16.msra.mxu0 %v4533
    %4879 = vmatpush.bf16.msra.mxu0 %v4526
    %4880 = vmatpush.bf16.msra.mxu0 %v4519
    %4881 = vmatpush.bf16.msra.mxu0 %v4512
    %4882 = vmatpush.bf16.msra.mxu0 %v4505
    %4883 = vmatmul.bf16.gmra.mxu0 %v3359
    %v4884 = vpop.f32.mrf.mxu0
    %v4885 = vadd.f32 %v4872, %v4884
    %v4886 = vpop.f32.mrf.mxu0
    %4887 = vdwg.mxu0
    %4888 = vmatpush.bf16.msra.mxu0 %v4387
    %4889 = vmatpush.bf16.msra.mxu0 %v4380
    %4890 = vmatpush.bf16.msra.mxu0 %v4373
    %4891 = vmatpush.bf16.msra.mxu0 %v4366
    %4892 = vmatpush.bf16.msra.mxu0 %v4359
    %4893 = vmatpush.bf16.msra.mxu0 %v4352
    %4894 = vmatpush.bf16.msra.mxu0 %v4345
    %4895 = vmatpush.bf16.msra.mxu0 %v4338
    %4896 = vmatmul.bf16.gmra.mxu0 %v3356
    %v4897 = vpop.f32.mrf.mxu0
    %v4898 = vadd.f32 %v3620, %v4897
    %v4899 = vpop.f32.mrf.mxu0
    %4900 = vdwg.mxu0
    %4901 = vmatpush.bf16.msra.mxu0 %v4443
    %4902 = vmatpush.bf16.msra.mxu0 %v4436
    %4903 = vmatpush.bf16.msra.mxu0 %v4429
    %4904 = vmatpush.bf16.msra.mxu0 %v4422
    %4905 = vmatpush.bf16.msra.mxu0 %v4415
    %4906 = vmatpush.bf16.msra.mxu0 %v4408
    %4907 = vmatpush.bf16.msra.mxu0 %v4401
    %4908 = vmatpush.bf16.msra.mxu0 %v4394
    %4909 = vmatmul.bf16.gmra.mxu0 %v3357
    %v4910 = vpop.f32.mrf.mxu0
    %v4911 = vadd.f32 %v4898, %v4910
    %v4912 = vpop.f32.mrf.mxu0
    %4913 = vdwg.mxu0
    %4914 = vmatpush.bf16.msra.mxu0 %v4499
    %4915 = vmatpush.bf16.msra.mxu0 %v4492
    %4916 = vmatpush.bf16.msra.mxu0 %v4485
    %4917 = vmatpush.bf16.msra.mxu0 %v4478
    %4918 = vmatpush.bf16.msra.mxu0 %v4471
    %4919 = vmatpush.bf16.msra.mxu0 %v4464
    %4920 = vmatpush.bf16.msra.mxu0 %v4457
    %4921 = vmatpush.bf16.msra.mxu0 %v4450
    %4922 = vmatmul.bf16.gmra.mxu0 %v3358
    %v4923 = vpop.f32.mrf.mxu0
    %v4924 = vadd.f32 %v4911, %v4923
    %v4925 = vpop.f32.mrf.mxu0
    %4926 = vdwg.mxu0
    %4927 = vmatpush.bf16.msra.mxu0 %v4555
    %4928 = vmatpush.bf16.msra.mxu0 %v4548
    %4929 = vmatpush.bf16.msra.mxu0 %v4541
    %4930 = vmatpush.bf16.msra.mxu0 %v4534
    %4931 = vmatpush.bf16.msra.mxu0 %v4527
    %4932 = vmatpush.bf16.msra.mxu0 %v4520
    %4933 = vmatpush.bf16.msra.mxu0 %v4513
    %4934 = vmatpush.bf16.msra.mxu0 %v4506
    %4935 = vmatmul.bf16.gmra.mxu0 %v3359
    %v4936 = vpop.f32.mrf.mxu0
    %v4937 = vadd.f32 %v4924, %v4936
    %v4938 = vpop.f32.mrf.mxu0
    %4939 = vdwg.mxu0
    %4940 = vmatpush.bf16.msra.mxu0 %v4388
    %4941 = vmatpush.bf16.msra.mxu0 %v4381
    %4942 = vmatpush.bf16.msra.mxu0 %v4374
    %4943 = vmatpush.bf16.msra.mxu0 %v4367
    %4944 = vmatpush.bf16.msra.mxu0 %v4360
    %4945 = vmatpush.bf16.msra.mxu0 %v4353
    %4946 = vmatpush.bf16.msra.mxu0 %v4346
    %4947 = vmatpush.bf16.msra.mxu0 %v4339
    %4948 = vmatmul.bf16.gmra.mxu0 %v3356
    %v4949 = vpop.f32.mrf.mxu0
    %v4950 = vadd.f32 %v3621, %v4949
    %v4951 = vpop.f32.mrf.mxu0
    %4952 = vdwg.mxu0
    %4953 = vmatpush.bf16.msra.mxu0 %v4444
    %4954 = vmatpush.bf16.msra.mxu0 %v4437
    %4955 = vmatpush.bf16.msra.mxu0 %v4430
    %4956 = vmatpush.bf16.msra.mxu0 %v4423
    %4957 = vmatpush.bf16.msra.mxu0 %v4416
    %4958 = vmatpush.bf16.msra.mxu0 %v4409
    %4959 = vmatpush.bf16.msra.mxu0 %v4402
    %4960 = vmatpush.bf16.msra.mxu0 %v4395
    %4961 = vmatmul.bf16.gmra.mxu0 %v3357
    %v4962 = vpop.f32.mrf.mxu0
    %v4963 = vadd.f32 %v4950, %v4962
    %v4964 = vpop.f32.mrf.mxu0
    %4965 = vdwg.mxu0
    %4966 = vmatpush.bf16.msra.mxu0 %v4500
    %4967 = vmatpush.bf16.msra.mxu0 %v4493
    %4968 = vmatpush.bf16.msra.mxu0 %v4486
    %4969 = vmatpush.bf16.msra.mxu0 %v4479
    %4970 = vmatpush.bf16.msra.mxu0 %v4472
    %4971 = vmatpush.bf16.msra.mxu0 %v4465
    %4972 = vmatpush.bf16.msra.mxu0 %v4458
    %4973 = vmatpush.bf16.msra.mxu0 %v4451
    %4974 = vmatmul.bf16.gmra.mxu0 %v3358
    %v4975 = vpop.f32.mrf.mxu0
    %v4976 = vadd.f32 %v4963, %v4975
    %v4977 = vpop.f32.mrf.mxu0
    %4978 = vdwg.mxu0
    %4979 = vmatpush.bf16.msra.mxu0 %v4556
    %4980 = vmatpush.bf16.msra.mxu0 %v4549
    %4981 = vmatpush.bf16.msra.mxu0 %v4542
    %4982 = vmatpush.bf16.msra.mxu0 %v4535
    %4983 = vmatpush.bf16.msra.mxu0 %v4528
    %4984 = vmatpush.bf16.msra.mxu0 %v4521
    %4985 = vmatpush.bf16.msra.mxu0 %v4514
    %4986 = vmatpush.bf16.msra.mxu0 %v4507
    %4987 = vmatmul.bf16.gmra.mxu0 %v3359
    %v4988 = vpop.f32.mrf.mxu0
    %v4989 = vadd.f32 %v4976, %v4988
    %v4990 = vpop.f32.mrf.mxu0
    %4991 = vdwg.mxu0
    %4992 = vmatpush.bf16.msra.mxu0 %v4389
    %4993 = vmatpush.bf16.msra.mxu0 %v4382
    %4994 = vmatpush.bf16.msra.mxu0 %v4375
    %4995 = vmatpush.bf16.msra.mxu0 %v4368
    %4996 = vmatpush.bf16.msra.mxu0 %v4361
    %4997 = vmatpush.bf16.msra.mxu0 %v4354
    %4998 = vmatpush.bf16.msra.mxu0 %v4347
    %4999 = vmatpush.bf16.msra.mxu0 %v4340
    %5000 = vmatmul.bf16.gmra.mxu0 %v3356
    %v5001 = vpop.f32.mrf.mxu0
    %v5002 = vadd.f32 %v3622, %v5001
    %v5003 = vpop.f32.mrf.mxu0
    %5004 = vdwg.mxu0
    %5005 = vmatpush.bf16.msra.mxu0 %v4445
    %5006 = vmatpush.bf16.msra.mxu0 %v4438
    %5007 = vmatpush.bf16.msra.mxu0 %v4431
    %5008 = vmatpush.bf16.msra.mxu0 %v4424
    %5009 = vmatpush.bf16.msra.mxu0 %v4417
    %5010 = vmatpush.bf16.msra.mxu0 %v4410
    %5011 = vmatpush.bf16.msra.mxu0 %v4403
    %5012 = vmatpush.bf16.msra.mxu0 %v4396
    %5013 = vmatmul.bf16.gmra.mxu0 %v3357
    %v5014 = vpop.f32.mrf.mxu0
    %v5015 = vadd.f32 %v5002, %v5014
    %v5016 = vpop.f32.mrf.mxu0
    %5017 = vdwg.mxu0
    %5018 = vmatpush.bf16.msra.mxu0 %v4501
    %5019 = vmatpush.bf16.msra.mxu0 %v4494
    %5020 = vmatpush.bf16.msra.mxu0 %v4487
    %5021 = vmatpush.bf16.msra.mxu0 %v4480
    %5022 = vmatpush.bf16.msra.mxu0 %v4473
    %5023 = vmatpush.bf16.msra.mxu0 %v4466
    %5024 = vmatpush.bf16.msra.mxu0 %v4459
    %5025 = vmatpush.bf16.msra.mxu0 %v4452
    %5026 = vmatmul.bf16.gmra.mxu0 %v3358
    %v5027 = vpop.f32.mrf.mxu0
    %v5028 = vadd.f32 %v5015, %v5027
    %v5029 = vpop.f32.mrf.mxu0
    %5030 = vdwg.mxu0
    %5031 = vmatpush.bf16.msra.mxu0 %v4557
    %5032 = vmatpush.bf16.msra.mxu0 %v4550
    %5033 = vmatpush.bf16.msra.mxu0 %v4543
    %5034 = vmatpush.bf16.msra.mxu0 %v4536
    %5035 = vmatpush.bf16.msra.mxu0 %v4529
    %5036 = vmatpush.bf16.msra.mxu0 %v4522
    %5037 = vmatpush.bf16.msra.mxu0 %v4515
    %5038 = vmatpush.bf16.msra.mxu0 %v4508
    %5039 = vmatmul.bf16.gmra.mxu0 %v3359
    %v5040 = vpop.f32.mrf.mxu0
    %v5041 = vadd.f32 %v5028, %v5040
    %v5042 = vpop.f32.mrf.mxu0
    %5043 = vdwg.mxu0
    %5044 = vmatpush.bf16.msra.mxu0 %v4390
    %5045 = vmatpush.bf16.msra.mxu0 %v4383
    %5046 = vmatpush.bf16.msra.mxu0 %v4376
    %5047 = vmatpush.bf16.msra.mxu0 %v4369
    %5048 = vmatpush.bf16.msra.mxu0 %v4362
    %5049 = vmatpush.bf16.msra.mxu0 %v4355
    %5050 = vmatpush.bf16.msra.mxu0 %v4348
    %5051 = vmatpush.bf16.msra.mxu0 %v4341
    %5052 = vmatmul.bf16.gmra.mxu0 %v3356
    %v5053 = vpop.f32.mrf.mxu0
    %v5054 = vadd.f32 %v3623, %v5053
    %v5055 = vpop.f32.mrf.mxu0
    %5056 = vdwg.mxu0
    %5057 = vmatpush.bf16.msra.mxu0 %v4446
    %5058 = vmatpush.bf16.msra.mxu0 %v4439
    %5059 = vmatpush.bf16.msra.mxu0 %v4432
    %5060 = vmatpush.bf16.msra.mxu0 %v4425
    %5061 = vmatpush.bf16.msra.mxu0 %v4418
    %5062 = vmatpush.bf16.msra.mxu0 %v4411
    %5063 = vmatpush.bf16.msra.mxu0 %v4404
    %5064 = vmatpush.bf16.msra.mxu0 %v4397
    %5065 = vmatmul.bf16.gmra.mxu0 %v3357
    %v5066 = vpop.f32.mrf.mxu0
    %v5067 = vadd.f32 %v5054, %v5066
    %v5068 = vpop.f32.mrf.mxu0
    %5069 = vdwg.mxu0
    %5070 = vmatpush.bf16.msra.mxu0 %v4502
    %5071 = vmatpush.bf16.msra.mxu0 %v4495
    %5072 = vmatpush.bf16.msra.mxu0 %v4488
    %5073 = vmatpush.bf16.msra.mxu0 %v4481
    %5074 = vmatpush.bf16.msra.mxu0 %v4474
    %5075 = vmatpush.bf16.msra.mxu0 %v4467
    %5076 = vmatpush.bf16.msra.mxu0 %v4460
    %5077 = vmatpush.bf16.msra.mxu0 %v4453
    %5078 = vmatmul.bf16.gmra.mxu0 %v3358
    %v5079 = vpop.f32.mrf.mxu0
    %v5080 = vadd.f32 %v5067, %v5079
    %v5081 = vpop.f32.mrf.mxu0
    %5082 = vdwg.mxu0
    %5083 = vmatpush.bf16.msra.mxu0 %v4558
    %5084 = vmatpush.bf16.msra.mxu0 %v4551
    %5085 = vmatpush.bf16.msra.mxu0 %v4544
    %5086 = vmatpush.bf16.msra.mxu0 %v4537
    %5087 = vmatpush.bf16.msra.mxu0 %v4530
    %5088 = vmatpush.bf16.msra.mxu0 %v4523
    %5089 = vmatpush.bf16.msra.mxu0 %v4516
    %5090 = vmatpush.bf16.msra.mxu0 %v4509
    %5091 = vmatmul.bf16.gmra.mxu0 %v3359
    %v5092 = vpop.f32.mrf.mxu0
    %v5093 = vadd.f32 %v5080, %v5092
    %v5094 = vpop.f32.mrf.mxu0
    %5095 = vdwg.mxu0
    %5096 = vmatpush.bf16.msra.mxu0 %v4391
    %5097 = vmatpush.bf16.msra.mxu0 %v4384
    %5098 = vmatpush.bf16.msra.mxu0 %v4377
    %5099 = vmatpush.bf16.msra.mxu0 %v4370
    %5100 = vmatpush.bf16.msra.mxu0 %v4363
    %5101 = vmatpush.bf16.msra.mxu0 %v4356
    %5102 = vmatpush.bf16.msra.mxu0 %v4349
    %5103 = vmatpush.bf16.msra.mxu0 %v4342
    %5104 = vmatmul.bf16.gmra.mxu0 %v3356
    %v5105 = vpop.f32.mrf.mxu0
    %v5106 = vadd.f32 %v3624, %v5105
    %v5107 = vpop.f32.mrf.mxu0
    %5108 = vdwg.mxu0
    %5109 = vmatpush.bf16.msra.mxu0 %v4447
    %5110 = vmatpush.bf16.msra.mxu0 %v4440
    %5111 = vmatpush.bf16.msra.mxu0 %v4433
    %5112 = vmatpush.bf16.msra.mxu0 %v4426
    %5113 = vmatpush.bf16.msra.mxu0 %v4419
    %5114 = vmatpush.bf16.msra.mxu0 %v4412
    %5115 = vmatpush.bf16.msra.mxu0 %v4405
    %5116 = vmatpush.bf16.msra.mxu0 %v4398
    %5117 = vmatmul.bf16.gmra.mxu0 %v3357
    %v5118 = vpop.f32.mrf.mxu0
    %v5119 = vadd.f32 %v5106, %v5118
    %v5120 = vpop.f32.mrf.mxu0
    %5121 = vdwg.mxu0
    %5122 = vmatpush.bf16.msra.mxu0 %v4503
    %5123 = vmatpush.bf16.msra.mxu0 %v4496
    %5124 = vmatpush.bf16.msra.mxu0 %v4489
    %5125 = vmatpush.bf16.msra.mxu0 %v4482
    %5126 = vmatpush.bf16.msra.mxu0 %v4475
    %5127 = vmatpush.bf16.msra.mxu0 %v4468
    %5128 = vmatpush.bf16.msra.mxu0 %v4461
    %5129 = vmatpush.bf16.msra.mxu0 %v4454
    %5130 = vmatmul.bf16.gmra.mxu0 %v3358
    %v5131 = vpop.f32.mrf.mxu0
    %v5132 = vadd.f32 %v5119, %v5131
    %v5133 = vpop.f32.mrf.mxu0
    %5134 = vdwg.mxu0
    %5135 = vmatpush.bf16.msra.mxu0 %v4559
    %5136 = vmatpush.bf16.msra.mxu0 %v4552
    %5137 = vmatpush.bf16.msra.mxu0 %v4545
    %5138 = vmatpush.bf16.msra.mxu0 %v4538
    %5139 = vmatpush.bf16.msra.mxu0 %v4531
    %5140 = vmatpush.bf16.msra.mxu0 %v4524
    %5141 = vmatpush.bf16.msra.mxu0 %v4517
    %5142 = vmatpush.bf16.msra.mxu0 %v4510
    %5143 = vmatmul.bf16.gmra.mxu0 %v3359
    %v5144 = vpop.f32.mrf.mxu0
    %v5145 = vadd.f32 %v5132, %v5144
    %v5146 = vpop.f32.mrf.mxu0
    %5147 = vdwg.mxu0
    %v5148 = vtanh.pop %v4833
    %v5149 = vtanh.pop %v4885
    %v5150 = vtanh.pop %v4937
    %v5151 = vtanh.pop %v4989
    %v5152 = vtanh.pop %v5041
    %v5153 = vtanh.pop %v5093
    %v5154 = vtanh.pop %v5145
    %5155 = vst [vmem:[#allocation22] sm:$0xff] %v5148
    %5156 = vst [vmem:[#allocation22 + $0x8] sm:$0xff] %v5149
    %5157 = vst [vmem:[#allocation22 + $0x10] sm:$0xff] %v5150
    %5158 = vst [vmem:[#allocation22 + $0x18] sm:$0xff] %v5151
    %5159 = vst [vmem:[#allocation22 + $0x20] sm:$0xff] %v5152
    %5160 = vst [vmem:[#allocation22 + $0x28] sm:$0xff] %v5153
    %5161 = vst [vmem:[#allocation22 + $0x30] sm:$0xff] %v5154
    %5162 = vst [vmem:[#allocation23] sm:$0xff] %v2686
    %5163 = vst [vmem:[#allocation25] sm:$0xff] %v2712
    // Predicated region
    $region106: #{tpu_custom_call.1} parent=1 // pred_check
      _
    $region107: #{tpu_custom_call.1} parent=1 // pred_check_branch
      %5165 = sbr.rel (0) target = $region109
    $region108: #{tpu_custom_call.1} parent=1 // pred_region
      %5167 = vsyncadd [#allocation4], 0
      %s5169 = sshll.u32 [#allocation22], 4
      %s5170 = int_to_ptr.vmem [resolvable:$true] %s5169
      %s5171 = sshll.u32 %s14, 4
      %s5172 = int_to_ptr.hbm [resolvable:$true] %s5171
      %5174 = dma.vmem_to_hbm [thread:$0]  %s5170, 896, %s5172, [#allocation4]
    $region109: #{tpu_custom_call.1} parent=1 // pred_fallthru
      _
    // Predicated region
    $region110: #{tpu_custom_call.1} parent=1 // pred_check
      _
    $region111: #{tpu_custom_call.1} parent=1 // pred_check_branch
      %5176 = sbr.rel (0) target = $region113
    $region112: #{tpu_custom_call.1} parent=1 // pred_region
      %5178 = vsyncadd [#allocation24], 0
      %s5180 = sshll.u32 [#allocation23], 4
      %s5181 = int_to_ptr.vmem [resolvable:$true] %s5180
      %s5182 = sshll.u32 %s15, 4
      %s5183 = int_to_ptr.hbm [resolvable:$true] %s5182
      %5185 = dma.vmem_to_hbm [thread:$0]  %s5181, 128, %s5183, [#allocation24]
    $region113: #{tpu_custom_call.1} parent=1 // pred_fallthru
      _
    // Predicated region
    $region114: #{tpu_custom_call.1} parent=1 // pred_check
      _
    $region115: #{tpu_custom_call.1} parent=1 // pred_check_branch
      %5187 = sbr.rel (0) target = $region117
    $region116: #{tpu_custom_call.1} parent=1 // pred_region
      %5189 = vsyncadd [#allocation24], 0
      %s5191 = sshll.u32 [#allocation25], 4
      %s5192 = int_to_ptr.vmem [resolvable:$true] %s5191
      %s5193 = sshll.u32 %s16, 4
      %s5194 = int_to_ptr.hbm [resolvable:$true] %s5193
      %5196 = dma.vmem_to_hbm [thread:$0]  %s5192, 128, %s5194, [#allocation24]
    $region117: #{tpu_custom_call.1} parent=1 // pred_fallthru
      _
    // Predicated region
    $region118: #{tpu_custom_call.1} parent=1 // pred_check
      _
    $region119: #{tpu_custom_call.1} parent=1 // pred_check_branch
      %5198 = sbr.rel (0) target = $region121
    $region120: #{tpu_custom_call.1} parent=1 // pred_region
      %5200 = dma.done [#allocation4], 896
    $region121: #{tpu_custom_call.1} parent=1 // pred_fallthru
      _
    // Predicated region
    $region122: #{tpu_custom_call.1} parent=1 // pred_check
      _
    $region123: #{tpu_custom_call.1} parent=1 // pred_check_branch
      %5202 = sbr.rel (0) target = $region125
    $region124: #{tpu_custom_call.1} parent=1 // pred_region
      %5204 = dma.done [#allocation24], 128
    $region125: #{tpu_custom_call.1} parent=1 // pred_fallthru
      _
    // Predicated region
    $region126: #{tpu_custom_call.1} parent=1 // pred_check
      _
    $region127: #{tpu_custom_call.1} parent=1 // pred_check_branch
      %5206 = sbr.rel (0) target = $region129
    $region128: #{tpu_custom_call.1} parent=1 // pred_region
      %5208 = dma.done [#allocation24], 128
    $region129: #{tpu_custom_call.1} parent=1 // pred_fallthru
      _
    %5209 = vsyncpa [#allocation3], 1
    %5210 = vsyncpa [#allocation6], 1
    %5211 = vsyncpa [#allocation9], 1
    %5212 = vsyncpa [#allocation12], 1
    %5213 = vsyncpa [#allocation15], 1
    %5214 = vsyncpa [#allocation18], 1
    %5215 = vsyncpa [#allocation21], 1
    %5216 = vsyncpa [#allocation4], 1
    %5217 = vsyncpa [#allocation24], 1

</llo_original>
